<compile_context>
chip_gen: v7x
topology: tpu7x:2x2x1
jax: 0.10.0
libtpu: 0.0.40
codegen_flags: <defaults>
</compile_context>

<pallas_src>
import math

import jax
import jax.numpy as jnp
from jax.experimental import pallas as pl
from jax.experimental.pallas import tpu as pltpu


def _bottleneck_kernel(x_ref, w1_ref, b1_ref, w2_ref, b2_ref, w3_ref, b3_ref,
                       o_ref):
    """One image (one batch element) per grid step.

    x_ref : (H, W, Cin)  bf16   unpadded NHWC image (batch dim squeezed)
    w1_ref: (Cin, P)     bf16   conv1 weight * bn1 scale
    b1_ref: (1, P)       f32    folded bn1 bias
    w2_ref: (9, P, P)    bf16   conv2 weight * bn2 scale, index k = kh*3 + kw
    b2_ref: (1, P)       f32
    w3_ref: (P, Cout)    bf16   conv3 weight * bn3 scale
    b3_ref: (1, Cout)    f32
    o_ref : (H, W, Cout) bf16
    """
    H, W, Cin = x_ref.shape
    P = w1_ref.shape[1]
    Cout = w3_ref.shape[1]

    x = x_ref[...]                                  # bf16
    x2d = x.reshape(H * W, Cin)                     # aligned: W % 8 == 0

    # ---- conv1 (1x1) + folded-BN bias + ReLU (f32 VPU math) ----
    h1 = jnp.dot(x2d, w1_ref[...], preferred_element_type=jnp.float32)
    h1f = jnp.maximum(h1 + b1_ref[...], 0.0).reshape(H, W, P)

    # ---- conv2 (3x3, stride 1, 'same') as 9 accumulated MXU dots ----
    # Column (sublane) shifts are built once in f32, then cast to bf16; row
    # shifts act on the leading dim and are cheap.  Zero fill realises the
    # 'same' padding (so the residual/input never needs a padded copy).
    zcol = jnp.zeros((H, 1, P), jnp.float32)
    h1_xm1 = jnp.concatenate([zcol, h1f[:, :W - 1, :]], axis=1)   # h1[y, x-1]
    h1_xp1 = jnp.concatenate([h1f[:, 1:, :], zcol], axis=1)       # h1[y, x+1]
    cols = (h1_xm1.astype(jnp.bfloat16),
            h1f.astype(jnp.bfloat16),
            h1_xp1.astype(jnp.bfloat16))                          # ox = -1,0,+1
    zrow = jnp.zeros((1, W, P), jnp.bfloat16)

    acc = jnp.zeros((H * W, P), jnp.float32)
    for oy in (-1, 0, 1):                     # tap value = h1[y+oy, x+ox]
        for ox in (-1, 0, 1):
            c = cols[ox + 1]
            if oy == -1:
                tap = jnp.concatenate([zrow, c[:H - 1]], axis=0)
            elif oy == 1:
                tap = jnp.concatenate([c[1:], zrow], axis=0)
            else:
                tap = c
            k = (oy + 1) * 3 + (ox + 1)       # == kh*3 + kw
            acc = acc + jnp.dot(tap.reshape(H * W, P), w2_ref[k],
                                preferred_element_type=jnp.float32)
    h2 = jnp.maximum(acc + b2_ref[...], 0.0).astype(jnp.bfloat16)

    # ---- conv3 (1x1) + bias + residual add + ReLU ----
    h3 = jnp.dot(h2, w3_ref[...], preferred_element_type=jnp.float32)
    h3 = h3 + b3_ref[...] + x2d.astype(jnp.float32)      # Cin == Cout
    o_ref[...] = jnp.maximum(h3, 0.0).reshape(H, W, Cout).astype(o_ref.dtype)


def bottleneck_forward(x_nhwc, w1, b1, w2, b2, w3, b3):
    """Eval-mode Bottleneck forward (stride=1, downsample=None).

    x_nhwc: (N, H, W, Cin) bf16 (W must be a multiple of 8).
    w1 (Cin,P) / w2 (9,P,P) / w3 (P,Cout): bf16 with BN scale folded in.
    b1/b2/b3: (1,C) f32 folded BN biases.
    """
    N, H, W, Cin = x_nhwc.shape
    Cout = w3.shape[1]
    if Cin != Cout:
        raise ValueError(f"residual add requires Cin == Cout, got {Cin} vs {Cout}")
    if W % 8 != 0:
        raise ValueError(f"W={W} must be a multiple of 8 for aligned reshapes")

    def const_spec(arr):
        nd = arr.ndim
        # Constant operands: fetched once, single-buffered to save VMEM.
        return pl.BlockSpec(arr.shape, lambda n, _nd=nd: (0,) * _nd,
                            pipeline_mode=pl.Buffered(1))

    return pl.pallas_call(
        _bottleneck_kernel,
        out_shape=jax.ShapeDtypeStruct((N, H, W, Cout), x_nhwc.dtype),
        grid=(N,),
        in_specs=[
            pl.BlockSpec((None, H, W, Cin), lambda n: (n, 0, 0, 0)),
            const_spec(w1), const_spec(b1),
            const_spec(w2), const_spec(b2),
            const_spec(w3), const_spec(b3),
        ],
        out_specs=pl.BlockSpec((None, H, W, Cout), lambda n: (n, 0, 0, 0)),
        compiler_params=pltpu.CompilerParams(
            dimension_semantics=("parallel",),
            # Fits every generation at these sizes; raise toward ~100 MiB on
            # v5e/v6e (128 MiB VMEM) and keep <= ~56 MiB on v7x (64 MiB) if
            # the whole-image tile is enlarged.
            vmem_limit_bytes=48 * 1024 * 1024),
    )(x_nhwc, w1, b1, w2, b2, w3, b3)


if __name__ == "__main__":
    key = jax.random.PRNGKey(0)
    # Lane-dense demo: planes=32 -> Cin = Cout = planes*4 = 128.
    N, planes, H, W = 2, 32, 16, 16
    inplanes = planes * 4               # residual add requires Cin == planes*4
    eps = 1e-5

    keys = jax.random.split(key, 7)
    # PyTorch-layout conv weights (out, in, kh, kw).
    w1_t = jax.random.normal(keys[0], (planes, inplanes, 1, 1), jnp.float32) / math.sqrt(inplanes)
    w2_t = jax.random.normal(keys[1], (planes, planes, 3, 3), jnp.float32) / math.sqrt(planes * 9)
    w3_t = jax.random.normal(keys[2], (planes * 4, planes, 1, 1), jnp.float32) / math.sqrt(planes)

    # Eval-mode BatchNorm with non-trivial gamma/beta/running stats.
    def bn_fold(C, k):
        kg, kb, km, kv = jax.random.split(k, 4)
        gamma = 0.5 + jax.random.uniform(kg, (C,), jnp.float32)
        beta = 0.5 * jax.random.normal(kb, (C,), jnp.float32)
        mean = 0.5 * jax.random.normal(km, (C,), jnp.float32)
        var = 0.5 + jax.random.uniform(kv, (C,), jnp.float32)
        scale = gamma / jnp.sqrt(var + eps)
        bias = beta - mean * scale
        return scale, bias

    s1, bias1 = bn_fold(planes, keys[3])
    s2, bias2 = bn_fold(planes, keys[4])
    s3, bias3 = bn_fold(planes * 4, keys[5])

    # Fold BN scales into conv weights, convert to HWIO / matmul layouts,
    # store MXU weights in bf16.
    w1_hwio = jnp.transpose(w1_t * s1[:, None, None, None], (2, 3, 1, 0))   # (1,1,Cin,P)
    w2_hwio = jnp.transpose(w2_t * s2[:, None, None, None], (2, 3, 1, 0))   # (3,3,P,P)
    w3_hwio = jnp.transpose(w3_t * s3[:, None, None, None], (2, 3, 1, 0))   # (1,1,P,Cout)

    w1_k = w1_hwio.reshape(inplanes, planes).astype(jnp.bfloat16)
    w2_k = w2_hwio.reshape(9, planes, planes).astype(jnp.bfloat16)          # k = kh*3+kw
    w3_k = w3_hwio.reshape(planes, planes * 4).astype(jnp.bfloat16)
    b1_k = bias1.reshape(1, -1)
    b2_k = bias2.reshape(1, -1)
    b3_k = bias3.reshape(1, -1)

    x_nchw = jax.random.normal(keys[6], (N, inplanes, H, W), jnp.float32)
    x_nhwc = jnp.transpose(x_nchw, (0, 2, 3, 1)).astype(jnp.bfloat16)

    out = bottleneck_forward(x_nhwc, w1_k, b1_k, w2_k, b2_k, w3_k, b3_k)
    out = jax.block_until_ready(out)

    # Pure-JAX reference using the same folded bf16 weights / bf16 activations
    # with f32 accumulation.
    def conv_bf16(x, w_bf16, padding):
        return jax.lax.conv_general_dilated(
            x.astype(jnp.bfloat16), w_bf16, (1, 1), padding,
            dimension_numbers=("NHWC", "HWIO", "NHWC"),
            preferred_element_type=jnp.float32)

    r = jnp.maximum(conv_bf16(x_nhwc, w1_hwio.astype(jnp.bfloat16), "VALID")
                    + b1_k.reshape(1, 1, 1, -1), 0.0)
    r = jnp.maximum(conv_bf16(r, w2_hwio.astype(jnp.bfloat16), ((1, 1), (1, 1)))
                    + b2_k.reshape(1, 1, 1, -1), 0.0)
    r = conv_bf16(r, w3_hwio.astype(jnp.bfloat16), "VALID") + b3_k.reshape(1, 1, 1, -1)
    r = jnp.maximum(r + x_nhwc.astype(jnp.float32), 0.0)

    assert out.shape == (N, H, W, inplanes)
    out_f32 = out.astype(jnp.float32)
    max_err = jnp.max(jnp.abs(out_f32 - r))
    assert jnp.allclose(out_f32, r, atol=3e-2, rtol=3e-2), (
        f"mismatch vs JAX reference, max abs err {max_err:.3e}")
    print("KERNEL_OK")
</pallas_src>

<mosaic_0001>
module attributes {stable_mosaic.version = 11 : i64} {
  func.func @_bottleneck_kernel(%arg0: i32, %arg1: memref<1x16x16x128xbf16, #tpu.memory_space<vmem>>, %arg2: memref<128x32xbf16, #tpu.memory_space<vmem>>, %arg3: memref<1x32xf32, #tpu.memory_space<vmem>>, %arg4: memref<9x32x32xbf16, #tpu.memory_space<vmem>>, %arg5: memref<1x32xf32, #tpu.memory_space<vmem>>, %arg6: memref<32x128xbf16, #tpu.memory_space<vmem>>, %arg7: memref<1x128xf32, #tpu.memory_space<vmem>>, %arg8: memref<1x16x16x128xbf16, #tpu.memory_space<vmem>>) attributes {dimension_semantics = [#tpu.dimension_semantics<parallel>], iteration_bounds = array<i64: 2>, scalar_prefetch = 0 : i64, scratch_operands = 0 : i64, tpu.core_type = #tpu.core_type<tc>, window_params = [{transform_indices = @transform_0, window_bounds = array<i64: 1, 16, 16, 128>}, {pipeline_mode = #tpu.pipeline_mode<synchronous>, transform_indices = @transform_1, window_bounds = array<i64: 128, 32>}, {pipeline_mode = #tpu.pipeline_mode<synchronous>, transform_indices = @transform_2, window_bounds = array<i64: 1, 32>}, {pipeline_mode = #tpu.pipeline_mode<synchronous>, transform_indices = @transform_3, window_bounds = array<i64: 9, 32, 32>}, {pipeline_mode = #tpu.pipeline_mode<synchronous>, transform_indices = @transform_4, window_bounds = array<i64: 1, 32>}, {pipeline_mode = #tpu.pipeline_mode<synchronous>, transform_indices = @transform_5, window_bounds = array<i64: 32, 128>}, {pipeline_mode = #tpu.pipeline_mode<synchronous>, transform_indices = @transform_6, window_bounds = array<i64: 1, 128>}, {transform_indices = @transform_7, window_bounds = array<i64: 1, 16, 16, 128>}]} {
    %c0 = arith.constant 0 : index
    %c0_0 = arith.constant 0 : index
    %c0_1 = arith.constant 0 : index
    %c0_2 = arith.constant 0 : index
    %0 = vector.load %arg1[%c0, %c0_0, %c0_1, %c0_2] : memref<1x16x16x128xbf16, #tpu.memory_space<vmem>>, vector<1x16x16x128xbf16>
    %1 = vector.shape_cast %0 : vector<1x16x16x128xbf16> to vector<16x16x128xbf16>
    %2 = vector.shape_cast %1 : vector<16x16x128xbf16> to vector<256x128xbf16>
    %c0_3 = arith.constant 0 : index
    %c0_4 = arith.constant 0 : index
    %3 = vector.load %arg2[%c0_3, %c0_4] : memref<128x32xbf16, #tpu.memory_space<vmem>>, vector<128x32xbf16>
    %cst = arith.constant dense<0.000000e+00> : vector<256x32xf32>
    %4 = tpu.matmul %2, %3, %cst {dimension_numbers = #tpu.dot_dimension_numbers<[1], [0], [0], [1], [0, 0, 1, 1], [], []>} : vector<256x128xbf16>, vector<128x32xbf16>, vector<256x32xf32> -> vector<256x32xf32>
    %c0_5 = arith.constant 0 : index
    %c0_6 = arith.constant 0 : index
    %5 = vector.load %arg3[%c0_5, %c0_6] : memref<1x32xf32, #tpu.memory_space<vmem>>, vector<1x32xf32>
    %6 = vector.broadcast %5 : vector<1x32xf32> to vector<256x32xf32>
    %7 = arith.addf %4, %6 : vector<256x32xf32>
    %cst_7 = arith.constant 0.000000e+00 : f32
    %8 = vector.broadcast %cst_7 : f32 to vector<256x32xf32>
    %9 = arith.maximumf %7, %8 : vector<256x32xf32>
    %10 = vector.shape_cast %9 : vector<256x32xf32> to vector<16x16x32xf32>
    %cst_8 = arith.constant 0.000000e+00 : f32
    %11 = vector.broadcast %cst_8 : f32 to vector<16x1x32xf32>
    %12 = vector.extract_strided_slice %10 {offsets = [0, 0, 0], sizes = [16, 15, 32], strides = [1, 1, 1]} : vector<16x16x32xf32> to vector<16x15x32xf32>
    %13 = tpu.concatenate %11, %12 in 1 : vector<16x1x32xf32>, vector<16x15x32xf32> -> vector<16x16x32xf32>
    %14 = vector.extract_strided_slice %10 {offsets = [0, 1, 0], sizes = [16, 15, 32], strides = [1, 1, 1]} : vector<16x16x32xf32> to vector<16x15x32xf32>
    %15 = tpu.concatenate %14, %11 in 1 : vector<16x15x32xf32>, vector<16x1x32xf32> -> vector<16x16x32xf32>
    %16 = arith.truncf %13 : vector<16x16x32xf32> to vector<16x16x32xbf16>
    %17 = arith.truncf %10 : vector<16x16x32xf32> to vector<16x16x32xbf16>
    %18 = arith.truncf %15 : vector<16x16x32xf32> to vector<16x16x32xbf16>
    %cst_9 = arith.constant 0.000000e+00 : bf16
    %19 = vector.broadcast %cst_9 : bf16 to vector<1x16x32xbf16>
    %cst_10 = arith.constant 0.000000e+00 : f32
    %20 = vector.broadcast %cst_10 : f32 to vector<256x32xf32>
    %21 = vector.extract_strided_slice %16 {offsets = [0, 0, 0], sizes = [15, 16, 32], strides = [1, 1, 1]} : vector<16x16x32xbf16> to vector<15x16x32xbf16>
    %22 = tpu.concatenate %19, %21 in 0 : vector<1x16x32xbf16>, vector<15x16x32xbf16> -> vector<16x16x32xbf16>
    %23 = vector.shape_cast %22 : vector<16x16x32xbf16> to vector<256x32xbf16>
    %c0_11 = arith.constant 0 : index
    %c0_12 = arith.constant 0 : index
    %c0_13 = arith.constant 0 : index
    %24 = vector.load %arg4[%c0_11, %c0_12, %c0_13] : memref<9x32x32xbf16, #tpu.memory_space<vmem>>, vector<1x32x32xbf16>
    %25 = vector.shape_cast %24 : vector<1x32x32xbf16> to vector<32x32xbf16>
    %cst_14 = arith.constant dense<0.000000e+00> : vector<256x32xf32>
    %26 = tpu.matmul %23, %25, %cst_14 {dimension_numbers = #tpu.dot_dimension_numbers<[1], [0], [0], [1], [0, 0, 1, 1], [], []>} : vector<256x32xbf16>, vector<32x32xbf16>, vector<256x32xf32> -> vector<256x32xf32>
    %27 = arith.addf %20, %26 : vector<256x32xf32>
    %28 = vector.extract_strided_slice %17 {offsets = [0, 0, 0], sizes = [15, 16, 32], strides = [1, 1, 1]} : vector<16x16x32xbf16> to vector<15x16x32xbf16>
    %29 = tpu.concatenate %19, %28 in 0 : vector<1x16x32xbf16>, vector<15x16x32xbf16> -> vector<16x16x32xbf16>
    %30 = vector.shape_cast %29 : vector<16x16x32xbf16> to vector<256x32xbf16>
    %c1 = arith.constant 1 : index
    %c0_15 = arith.constant 0 : index
    %c0_16 = arith.constant 0 : index
    %31 = vector.load %arg4[%c1, %c0_15, %c0_16] : memref<9x32x32xbf16, #tpu.memory_space<vmem>>, vector<1x32x32xbf16>
    %32 = vector.shape_cast %31 : vector<1x32x32xbf16> to vector<32x32xbf16>
    %cst_17 = arith.constant dense<0.000000e+00> : vector<256x32xf32>
    %33 = tpu.matmul %30, %32, %cst_17 {dimension_numbers = #tpu.dot_dimension_numbers<[1], [0], [0], [1], [0, 0, 1, 1], [], []>} : vector<256x32xbf16>, vector<32x32xbf16>, vector<256x32xf32> -> vector<256x32xf32>
    %34 = arith.addf %27, %33 : vector<256x32xf32>
    %35 = vector.extract_strided_slice %18 {offsets = [0, 0, 0], sizes = [15, 16, 32], strides = [1, 1, 1]} : vector<16x16x32xbf16> to vector<15x16x32xbf16>
    %36 = tpu.concatenate %19, %35 in 0 : vector<1x16x32xbf16>, vector<15x16x32xbf16> -> vector<16x16x32xbf16>
    %37 = vector.shape_cast %36 : vector<16x16x32xbf16> to vector<256x32xbf16>
    %c2 = arith.constant 2 : index
    %c0_18 = arith.constant 0 : index
    %c0_19 = arith.constant 0 : index
    %38 = vector.load %arg4[%c2, %c0_18, %c0_19] : memref<9x32x32xbf16, #tpu.memory_space<vmem>>, vector<1x32x32xbf16>
    %39 = vector.shape_cast %38 : vector<1x32x32xbf16> to vector<32x32xbf16>
    %cst_20 = arith.constant dense<0.000000e+00> : vector<256x32xf32>
    %40 = tpu.matmul %37, %39, %cst_20 {dimension_numbers = #tpu.dot_dimension_numbers<[1], [0], [0], [1], [0, 0, 1, 1], [], []>} : vector<256x32xbf16>, vector<32x32xbf16>, vector<256x32xf32> -> vector<256x32xf32>
    %41 = arith.addf %34, %40 : vector<256x32xf32>
    %42 = vector.shape_cast %16 : vector<16x16x32xbf16> to vector<256x32xbf16>
    %c3 = arith.constant 3 : index
    %c0_21 = arith.constant 0 : index
    %c0_22 = arith.constant 0 : index
    %43 = vector.load %arg4[%c3, %c0_21, %c0_22] : memref<9x32x32xbf16, #tpu.memory_space<vmem>>, vector<1x32x32xbf16>
    %44 = vector.shape_cast %43 : vector<1x32x32xbf16> to vector<32x32xbf16>
    %cst_23 = arith.constant dense<0.000000e+00> : vector<256x32xf32>
    %45 = tpu.matmul %42, %44, %cst_23 {dimension_numbers = #tpu.dot_dimension_numbers<[1], [0], [0], [1], [0, 0, 1, 1], [], []>} : vector<256x32xbf16>, vector<32x32xbf16>, vector<256x32xf32> -> vector<256x32xf32>
    %46 = arith.addf %41, %45 : vector<256x32xf32>
    %47 = vector.shape_cast %17 : vector<16x16x32xbf16> to vector<256x32xbf16>
    %c4 = arith.constant 4 : index
    %c0_24 = arith.constant 0 : index
    %c0_25 = arith.constant 0 : index
    %48 = vector.load %arg4[%c4, %c0_24, %c0_25] : memref<9x32x32xbf16, #tpu.memory_space<vmem>>, vector<1x32x32xbf16>
    %49 = vector.shape_cast %48 : vector<1x32x32xbf16> to vector<32x32xbf16>
    %cst_26 = arith.constant dense<0.000000e+00> : vector<256x32xf32>
    %50 = tpu.matmul %47, %49, %cst_26 {dimension_numbers = #tpu.dot_dimension_numbers<[1], [0], [0], [1], [0, 0, 1, 1], [], []>} : vector<256x32xbf16>, vector<32x32xbf16>, vector<256x32xf32> -> vector<256x32xf32>
    %51 = arith.addf %46, %50 : vector<256x32xf32>
    %52 = vector.shape_cast %18 : vector<16x16x32xbf16> to vector<256x32xbf16>
    %c5 = arith.constant 5 : index
    %c0_27 = arith.constant 0 : index
    %c0_28 = arith.constant 0 : index
    %53 = vector.load %arg4[%c5, %c0_27, %c0_28] : memref<9x32x32xbf16, #tpu.memory_space<vmem>>, vector<1x32x32xbf16>
    %54 = vector.shape_cast %53 : vector<1x32x32xbf16> to vector<32x32xbf16>
    %cst_29 = arith.constant dense<0.000000e+00> : vector<256x32xf32>
    %55 = tpu.matmul %52, %54, %cst_29 {dimension_numbers = #tpu.dot_dimension_numbers<[1], [0], [0], [1], [0, 0, 1, 1], [], []>} : vector<256x32xbf16>, vector<32x32xbf16>, vector<256x32xf32> -> vector<256x32xf32>
    %56 = arith.addf %51, %55 : vector<256x32xf32>
    %57 = vector.extract_strided_slice %16 {offsets = [1, 0, 0], sizes = [15, 16, 32], strides = [1, 1, 1]} : vector<16x16x32xbf16> to vector<15x16x32xbf16>
    %58 = tpu.concatenate %57, %19 in 0 : vector<15x16x32xbf16>, vector<1x16x32xbf16> -> vector<16x16x32xbf16>
    %59 = vector.shape_cast %58 : vector<16x16x32xbf16> to vector<256x32xbf16>
    %c6 = arith.constant 6 : index
    %c0_30 = arith.constant 0 : index
    %c0_31 = arith.constant 0 : index
    %60 = vector.load %arg4[%c6, %c0_30, %c0_31] : memref<9x32x32xbf16, #tpu.memory_space<vmem>>, vector<1x32x32xbf16>
    %61 = vector.shape_cast %60 : vector<1x32x32xbf16> to vector<32x32xbf16>
    %cst_32 = arith.constant dense<0.000000e+00> : vector<256x32xf32>
    %62 = tpu.matmul %59, %61, %cst_32 {dimension_numbers = #tpu.dot_dimension_numbers<[1], [0], [0], [1], [0, 0, 1, 1], [], []>} : vector<256x32xbf16>, vector<32x32xbf16>, vector<256x32xf32> -> vector<256x32xf32>
    %63 = arith.addf %56, %62 : vector<256x32xf32>
    %64 = vector.extract_strided_slice %17 {offsets = [1, 0, 0], sizes = [15, 16, 32], strides = [1, 1, 1]} : vector<16x16x32xbf16> to vector<15x16x32xbf16>
    %65 = tpu.concatenate %64, %19 in 0 : vector<15x16x32xbf16>, vector<1x16x32xbf16> -> vector<16x16x32xbf16>
    %66 = vector.shape_cast %65 : vector<16x16x32xbf16> to vector<256x32xbf16>
    %c7 = arith.constant 7 : index
    %c0_33 = arith.constant 0 : index
    %c0_34 = arith.constant 0 : index
    %67 = vector.load %arg4[%c7, %c0_33, %c0_34] : memref<9x32x32xbf16, #tpu.memory_space<vmem>>, vector<1x32x32xbf16>
    %68 = vector.shape_cast %67 : vector<1x32x32xbf16> to vector<32x32xbf16>
    %cst_35 = arith.constant dense<0.000000e+00> : vector<256x32xf32>
    %69 = tpu.matmul %66, %68, %cst_35 {dimension_numbers = #tpu.dot_dimension_numbers<[1], [0], [0], [1], [0, 0, 1, 1], [], []>} : vector<256x32xbf16>, vector<32x32xbf16>, vector<256x32xf32> -> vector<256x32xf32>
    %70 = arith.addf %63, %69 : vector<256x32xf32>
    %71 = vector.extract_strided_slice %18 {offsets = [1, 0, 0], sizes = [15, 16, 32], strides = [1, 1, 1]} : vector<16x16x32xbf16> to vector<15x16x32xbf16>
    %72 = tpu.concatenate %71, %19 in 0 : vector<15x16x32xbf16>, vector<1x16x32xbf16> -> vector<16x16x32xbf16>
    %73 = vector.shape_cast %72 : vector<16x16x32xbf16> to vector<256x32xbf16>
    %c8 = arith.constant 8 : index
    %c0_36 = arith.constant 0 : index
    %c0_37 = arith.constant 0 : index
    %74 = vector.load %arg4[%c8, %c0_36, %c0_37] : memref<9x32x32xbf16, #tpu.memory_space<vmem>>, vector<1x32x32xbf16>
    %75 = vector.shape_cast %74 : vector<1x32x32xbf16> to vector<32x32xbf16>
    %cst_38 = arith.constant dense<0.000000e+00> : vector<256x32xf32>
    %76 = tpu.matmul %73, %75, %cst_38 {dimension_numbers = #tpu.dot_dimension_numbers<[1], [0], [0], [1], [0, 0, 1, 1], [], []>} : vector<256x32xbf16>, vector<32x32xbf16>, vector<256x32xf32> -> vector<256x32xf32>
    %77 = arith.addf %70, %76 : vector<256x32xf32>
    %c0_39 = arith.constant 0 : index
    %c0_40 = arith.constant 0 : index
    %78 = vector.load %arg5[%c0_39, %c0_40] : memref<1x32xf32, #tpu.memory_space<vmem>>, vector<1x32xf32>
    %79 = vector.broadcast %78 : vector<1x32xf32> to vector<256x32xf32>
    %80 = arith.addf %77, %79 : vector<256x32xf32>
    %cst_41 = arith.constant 0.000000e+00 : f32
    %81 = vector.broadcast %cst_41 : f32 to vector<256x32xf32>
    %82 = arith.maximumf %80, %81 : vector<256x32xf32>
    %83 = arith.truncf %82 : vector<256x32xf32> to vector<256x32xbf16>
    %c0_42 = arith.constant 0 : index
    %c0_43 = arith.constant 0 : index
    %84 = vector.load %arg6[%c0_42, %c0_43] : memref<32x128xbf16, #tpu.memory_space<vmem>>, vector<32x128xbf16>
    %cst_44 = arith.constant dense<0.000000e+00> : vector<256x128xf32>
    %85 = tpu.matmul %83, %84, %cst_44 {dimension_numbers = #tpu.dot_dimension_numbers<[1], [0], [0], [1], [0, 0, 1, 1], [], []>} : vector<256x32xbf16>, vector<32x128xbf16>, vector<256x128xf32> -> vector<256x128xf32>
    %c0_45 = arith.constant 0 : index
    %c0_46 = arith.constant 0 : index
    %86 = vector.load %arg7[%c0_45, %c0_46] : memref<1x128xf32, #tpu.memory_space<vmem>>, vector<1x128xf32>
    %87 = vector.broadcast %86 : vector<1x128xf32> to vector<256x128xf32>
    %88 = arith.addf %85, %87 : vector<256x128xf32>
    %89 = arith.extf %2 : vector<256x128xbf16> to vector<256x128xf32>
    %90 = arith.addf %88, %89 : vector<256x128xf32>
    %cst_47 = arith.constant 0.000000e+00 : f32
    %91 = vector.broadcast %cst_47 : f32 to vector<256x128xf32>
    %92 = arith.maximumf %90, %91 : vector<256x128xf32>
    %93 = vector.shape_cast %92 : vector<256x128xf32> to vector<16x16x128xf32>
    %94 = arith.truncf %93 : vector<16x16x128xf32> to vector<16x16x128xbf16>
    %c0_48 = arith.constant 0 : index
    %c0_49 = arith.constant 0 : index
    %c0_50 = arith.constant 0 : index
    %c0_51 = arith.constant 0 : index
    %95 = vector.load %arg8[%c0_48, %c0_49, %c0_50, %c0_51] : memref<1x16x16x128xbf16, #tpu.memory_space<vmem>>, vector<1x16x16x128xbf16>
    %96 = vector.shape_cast %95 : vector<1x16x16x128xbf16> to vector<16x16x128xbf16>
    %97 = vector.shape_cast %94 : vector<16x16x128xbf16> to vector<1x16x16x128xbf16>
    tpu.vector_store %arg8[%c0_48, %c0_49, %c0_50, %c0_51], %97 {strides = array<i32>} : memref<1x16x16x128xbf16, #tpu.memory_space<vmem>>, vector<1x16x16x128xbf16>,
    return
  }
  func.func @transform_0(%arg0: i32) -> (i32, i32, i32, i32) {
    %c0_i32 = arith.constant 0 : i32
    %c0_i32_0 = arith.constant 0 : i32
    %c0_i32_1 = arith.constant 0 : i32
    %c0_i32_2 = arith.constant 0 : i32
    return %arg0, %c0_i32, %c0_i32_0, %c0_i32_1 : i32, i32, i32, i32
  }
  func.func @transform_1(%arg0: i32) -> (i32, i32) {
    %c0_i32 = arith.constant 0 : i32
    %c0_i32_0 = arith.constant 0 : i32
    %c0_i32_1 = arith.constant 0 : i32
    return %c0_i32, %c0_i32_0 : i32, i32
  }
  func.func @transform_2(%arg0: i32) -> (i32, i32) {
    %c0_i32 = arith.constant 0 : i32
    %c0_i32_0 = arith.constant 0 : i32
    %c0_i32_1 = arith.constant 0 : i32
    return %c0_i32, %c0_i32_0 : i32, i32
  }
  func.func @transform_3(%arg0: i32) -> (i32, i32, i32) {
    %c0_i32 = arith.constant 0 : i32
    %c0_i32_0 = arith.constant 0 : i32
    %c0_i32_1 = arith.constant 0 : i32
    %c0_i32_2 = arith.constant 0 : i32
    return %c0_i32, %c0_i32_0, %c0_i32_1 : i32, i32, i32
  }
  func.func @transform_4(%arg0: i32) -> (i32, i32) {
    %c0_i32 = arith.constant 0 : i32
    %c0_i32_0 = arith.constant 0 : i32
    %c0_i32_1 = arith.constant 0 : i32
    return %c0_i32, %c0_i32_0 : i32, i32
  }
  func.func @transform_5(%arg0: i32) -> (i32, i32) {
    %c0_i32 = arith.constant 0 : i32
    %c0_i32_0 = arith.constant 0 : i32
    %c0_i32_1 = arith.constant 0 : i32
    return %c0_i32, %c0_i32_0 : i32, i32
  }
  func.func @transform_6(%arg0: i32) -> (i32, i32) {
    %c0_i32 = arith.constant 0 : i32
    %c0_i32_0 = arith.constant 0 : i32
    %c0_i32_1 = arith.constant 0 : i32
    return %c0_i32, %c0_i32_0 : i32, i32
  }
  func.func @transform_7(%arg0: i32) -> (i32, i32, i32, i32) {
    %c0_i32 = arith.constant 0 : i32
    %c0_i32_0 = arith.constant 0 : i32
    %c0_i32_1 = arith.constant 0 : i32
    %c0_i32_2 = arith.constant 0 : i32
    return %arg0, %c0_i32, %c0_i32_0, %c0_i32_1 : i32, i32, i32, i32
  }
}

</mosaic_0001>

<llo_original>
// kernel: tpu_custom_call.1
$region0: #{tpu_custom_call.1}
  #allocation0 [shape = 'u32[]', space=smem, size = 0x4, offset = 0x4, fixed_abs, tag = 'smem constant byte address 0x4 - core index']
  #allocation1 [shape = 'u32[144,128]{1,0:T(1,128)}', space=vmem, size = 0x12000, scoped, tag = 'internal scratch']
  %s0 = inlined_call_operand.hbm [shape: bf16[2,16,16,128], index: 0, kind: input, shape index: {}]
  %s1 = inlined_call_operand.vmem [shape: bf16[128,32], index: 1, kind: input, shape index: {}]
  %s2 = inlined_call_operand.vmem [shape: f32[1,32], index: 2, kind: input, shape index: {}]
  %s3 = inlined_call_operand.hbm [shape: bf16[9,32,32], index: 3, kind: input, shape index: {}]
  %s4 = inlined_call_operand.vmem [shape: f32[1,32], index: 4, kind: input, shape index: {}]
  %s5 = inlined_call_operand.vmem [shape: bf16[32,128], index: 5, kind: input, shape index: {}]
  %s6 = inlined_call_operand.vmem [shape: f32[1,128], index: 6, kind: input, shape index: {}]
  %s7 = inlined_call_operand.hbm [shape: bf16[2,16,16,128], index: 7, kind: output, shape index: {}]
  %s8 = sld [smem:[#allocation0]]
  $region69: #{tpu_custom_call.1} parent=0
    _
  %s10 = ssub.s32 1, %s8
  %s11 = scalar_select 0, %s10, %s8
  $region1: #{tpu_custom_call.1} parent=0
    #allocation2 [shape = 'u8[131072]{0}', space=vmem, size = 0x20000, scoped, tag = 'input window, operand 0']
    #allocation3 [shape = 's32[2]{0}', space=sflag, size = 0x8, scoped, tag = 'scoped memory for tpu_custom_call.1']
    #allocation4 [shape = 's32[2]{0}', space=sflag, size = 0x8, scoped, tag = 'scoped memory for tpu_custom_call.1']
    #allocation5 [shape = 'u8[73728]{0}', space=vmem, size = 0x12000, scoped, tag = 'input window, operand 3, single buffered']
    #allocation6 [shape = 's32[1]{0}', space=sflag, size = 0x4, scoped, tag = 'scoped memory for tpu_custom_call.1']
    #allocation7 [shape = 'u8[131072]{0}', space=vmem, size = 0x20000, scoped, tag = 'output window, operand 0']
    %12 = vsyncpa [#allocation3], 0
    %s13 = scalar_lea.sflag [#allocation3], 1
    %14 = vsyncpa %s13, 0
    %15 = vsyncpa [#allocation6], 0
    %16 = vsyncpa [#allocation4], 0
    %s17 = scalar_lea.sflag [#allocation4], 1
    %18 = vsyncpa %s17, 0
    loop: start=0, step=1, limit=4
    $region2: #{tpu_custom_call.1} parent=1 // loop_pre_header
      _
    $region3: #{tpu_custom_call.1} parent=1 // loop_header
      %s20 = sphi 0, %s24
      %p21 = scmp.ge.s32.totalorder %s20, 4
      %s30 = sphi 0, %s32
      %s33 = sphi 0, %s30
      %s34 = sphi 0, %s33
      %s50 = sphi 0, %s34
      %s54 = sphi 0, %s54
      %s56 = sphi 0, %s54
      %s57 = sphi 0, %s56
      %s71 = sphi 0, %s57
      %s75 = sphi 0, %s75
      %s77 = sphi 0, %s75
      %s78 = sphi 0, %s77
      %s92 = sphi 0, %s78
      %s96 = sphi 0, %s96
      %s98 = sphi 0, %s96
      %s99 = sphi 0, %s98
      %s113 = sphi 0, %s99
      %s117 = sphi 0, %s117
      %s119 = sphi 0, %s117
      %s120 = sphi 0, %s119
      %s134 = sphi 0, %s120
      %s138 = sphi 0, %s138
      %s140 = sphi 0, %s138
      %s141 = sphi 0, %s140
      %s155 = sphi 0, %s141
      %s159 = sphi 0, %s159
      %s161 = sphi 0, %s159
      %s162 = sphi 0, %s161
      %s176 = sphi 0, %s162
      %s182 = sphi 0, %s184
      %s185 = sphi 0, %s182
      %s186 = sphi 0, %s185
      %s202 = sphi 0, %s186
    $region4: #{tpu_custom_call.1} parent=1 // loop_header_branch
      %23 = sbr.rel (%p21) target = $region8
    $region5: #{tpu_custom_call.1} parent=1 // loop_body
      %s25 = ssub.s32 %s20, 1
      %s26 = ssub.s32 %s20, 2
      %s27 = sadd.s32 %s20, 1
      %s28 = ssub.s32 %s20, %s27
      %p29 = scmp.eq.s32.totalorder %s28, 0
      %s31 = sadd.s32 %s30, 1
      %s32 = scalar_select %p29, %s30, %s31
      %p35 = pneg %p29
      %p36 = scmp.eq.s32.totalorder %s20, 1
      %p37 = por %p35, %p36
      %p38 = scmp.ne.s32.totalorder %s30, %s33
      %p39 = scmp.eq.s32.totalorder %s20, 0
      %p40 = por %p38, %p39
      %p41 = scmp.ne.s32.totalorder %s30, %s33
      %p42 = scmp.eq.s32.totalorder %s25, 1
      %p43 = por %p41, %p42
      %p44 = scmp.ne.s32.totalorder %s33, %s34
      %p45 = scmp.eq.s32.totalorder %s25, 0
      %p46 = por %p44, %p45
      %p47 = scmp.ne.s32.totalorder %s33, %s34
      %p48 = scmp.eq.s32.totalorder %s26, 1
      %p49 = por %p47, %p48
      %p51 = scmp.ne.s32.totalorder %s34, %s50
      %p52 = scmp.eq.s32.totalorder %s26, 0
      %p53 = por %p51, %p52
      %s55 = sadd.s32 %s54, 1
      %p58 = scmp.eq.s32.totalorder %s20, 1
      %p59 = scmp.ne.s32.totalorder %s54, %s56
      %p60 = scmp.eq.s32.totalorder %s20, 0
      %p61 = por %p59, %p60
      %p62 = scmp.ne.s32.totalorder %s54, %s56
      %p63 = scmp.eq.s32.totalorder %s25, 1
      %p64 = por %p62, %p63
      %p65 = scmp.ne.s32.totalorder %s56, %s57
      %p66 = scmp.eq.s32.totalorder %s25, 0
      %p67 = por %p65, %p66
      %p68 = scmp.ne.s32.totalorder %s56, %s57
      %p69 = scmp.eq.s32.totalorder %s26, 1
      %p70 = por %p68, %p69
      %p72 = scmp.ne.s32.totalorder %s57, %s71
      %p73 = scmp.eq.s32.totalorder %s26, 0
      %p74 = por %p72, %p73
      %s76 = sadd.s32 %s75, 1
      %p79 = scmp.eq.s32.totalorder %s20, 1
      %p80 = scmp.ne.s32.totalorder %s75, %s77
      %p81 = scmp.eq.s32.totalorder %s20, 0
      %p82 = por %p80, %p81
      %p83 = scmp.ne.s32.totalorder %s75, %s77
      %p84 = scmp.eq.s32.totalorder %s25, 1
      %p85 = por %p83, %p84
      %p86 = scmp.ne.s32.totalorder %s77, %s78
      %p87 = scmp.eq.s32.totalorder %s25, 0
      %p88 = por %p86, %p87
      %p89 = scmp.ne.s32.totalorder %s77, %s78
      %p90 = scmp.eq.s32.totalorder %s26, 1
      %p91 = por %p89, %p90
      %p93 = scmp.ne.s32.totalorder %s78, %s92
      %p94 = scmp.eq.s32.totalorder %s26, 0
      %p95 = por %p93, %p94
      %s97 = sadd.s32 %s96, 1
      %p100 = scmp.eq.s32.totalorder %s20, 1
      %p101 = scmp.ne.s32.totalorder %s96, %s98
      %p102 = scmp.eq.s32.totalorder %s20, 0
      %p103 = por %p101, %p102
      %p104 = scmp.ne.s32.totalorder %s96, %s98
      %p105 = scmp.eq.s32.totalorder %s25, 1
      %p106 = por %p104, %p105
      %p107 = scmp.ne.s32.totalorder %s98, %s99
      %p108 = scmp.eq.s32.totalorder %s25, 0
      %p109 = por %p107, %p108
      %p110 = scmp.ne.s32.totalorder %s98, %s99
      %p111 = scmp.eq.s32.totalorder %s26, 1
      %p112 = por %p110, %p111
      %p114 = scmp.ne.s32.totalorder %s99, %s113
      %p115 = scmp.eq.s32.totalorder %s26, 0
      %p116 = por %p114, %p115
      %s118 = sadd.s32 %s117, 1
      %p121 = scmp.eq.s32.totalorder %s20, 1
      %p122 = scmp.ne.s32.totalorder %s117, %s119
      %p123 = scmp.eq.s32.totalorder %s20, 0
      %p124 = por %p122, %p123
      %p125 = scmp.ne.s32.totalorder %s117, %s119
      %p126 = scmp.eq.s32.totalorder %s25, 1
      %p127 = por %p125, %p126
      %p128 = scmp.ne.s32.totalorder %s119, %s120
      %p129 = scmp.eq.s32.totalorder %s25, 0
      %p130 = por %p128, %p129
      %p131 = scmp.ne.s32.totalorder %s119, %s120
      %p132 = scmp.eq.s32.totalorder %s26, 1
      %p133 = por %p131, %p132
      %p135 = scmp.ne.s32.totalorder %s120, %s134
      %p136 = scmp.eq.s32.totalorder %s26, 0
      %p137 = por %p135, %p136
      %s139 = sadd.s32 %s138, 1
      %p142 = scmp.eq.s32.totalorder %s20, 1
      %p143 = scmp.ne.s32.totalorder %s138, %s140
      %p144 = scmp.eq.s32.totalorder %s20, 0
      %p145 = por %p143, %p144
      %p146 = scmp.ne.s32.totalorder %s138, %s140
      %p147 = scmp.eq.s32.totalorder %s25, 1
      %p148 = por %p146, %p147
      %p149 = scmp.ne.s32.totalorder %s140, %s141
      %p150 = scmp.eq.s32.totalorder %s25, 0
      %p151 = por %p149, %p150
      %p152 = scmp.ne.s32.totalorder %s140, %s141
      %p153 = scmp.eq.s32.totalorder %s26, 1
      %p154 = por %p152, %p153
      %p156 = scmp.ne.s32.totalorder %s141, %s155
      %p157 = scmp.eq.s32.totalorder %s26, 0
      %p158 = por %p156, %p157
      %s160 = sadd.s32 %s159, 1
      %p163 = scmp.eq.s32.totalorder %s20, 1
      %p164 = scmp.ne.s32.totalorder %s159, %s161
      %p165 = scmp.eq.s32.totalorder %s20, 0
      %p166 = por %p164, %p165
      %p167 = scmp.ne.s32.totalorder %s159, %s161
      %p168 = scmp.eq.s32.totalorder %s25, 1
      %p169 = por %p167, %p168
      %p170 = scmp.ne.s32.totalorder %s161, %s162
      %p171 = scmp.eq.s32.totalorder %s25, 0
      %p172 = por %p170, %p171
      %p173 = scmp.ne.s32.totalorder %s161, %s162
      %p174 = scmp.eq.s32.totalorder %s26, 1
      %p175 = por %p173, %p174
      %p177 = scmp.ne.s32.totalorder %s162, %s176
      %p178 = scmp.eq.s32.totalorder %s26, 0
      %p179 = por %p177, %p178
      %s180 = ssub.s32 %s20, %s27
      %p181 = scmp.eq.s32.totalorder %s180, 0
      %s183 = sadd.s32 %s182, 1
      %s184 = scalar_select %p181, %s182, %s183
      %p187 = pneg %p181
      %p188 = scmp.eq.s32.totalorder %s20, 1
      %p189 = por %p187, %p188
      %p190 = scmp.ne.s32.totalorder %s182, %s185
      %p191 = scmp.eq.s32.totalorder %s20, 0
      %p192 = por %p190, %p191
      %p193 = scmp.ne.s32.totalorder %s182, %s185
      %p194 = scmp.eq.s32.totalorder %s25, 1
      %p195 = por %p193, %p194
      %p196 = scmp.ne.s32.totalorder %s185, %s186
      %p197 = scmp.eq.s32.totalorder %s25, 0
      %p198 = por %p196, %p197
      %p199 = scmp.ne.s32.totalorder %s185, %s186
      %p200 = scmp.eq.s32.totalorder %s26, 1
      %p201 = por %p199, %p200
      %p203 = scmp.ne.s32.totalorder %s186, %s202
      %p204 = scmp.eq.s32.totalorder %s26, 0
      %p205 = por %p203, %p204
      %p206 = scmp.le.s32.totalorder 1, %s20
      %p207 = scmp.lt.s32.totalorder %s20, 3
      %p208 = pnand %p206, %p207
      %p209 = pneg %p208
      // Predicated region
      $region9: #{tpu_custom_call.1} parent=5 // pred_check
        _
      $region10: #{tpu_custom_call.1} parent=5 // pred_check_branch
        %211 = sbr.rel (%p208) target = $region12
      $region11: #{tpu_custom_call.1} parent=5 // pred_region
        %s212 = ssub.s32 %s20, 1
        // Predicated region
        $region13: #{tpu_custom_call.1} parent=11 // pred_check
          %p213 = pneg %p67
        $region14: #{tpu_custom_call.1} parent=11 // pred_check_branch
          %215 = sbr.rel (%p213) target = $region16
        $region15: #{tpu_custom_call.1} parent=11 // pred_region
          _
        $region16: #{tpu_custom_call.1} parent=11 // pred_fallthru
          _
        // Predicated region
        $region17: #{tpu_custom_call.1} parent=11 // pred_check
          %p216 = pneg %p88
        $region18: #{tpu_custom_call.1} parent=11 // pred_check_branch
          %218 = sbr.rel (%p216) target = $region20
        $region19: #{tpu_custom_call.1} parent=11 // pred_region
          _
        $region20: #{tpu_custom_call.1} parent=11 // pred_fallthru
          _
        // Predicated region
        $region21: #{tpu_custom_call.1} parent=11 // pred_check
          %p219 = pneg %p109
        $region22: #{tpu_custom_call.1} parent=11 // pred_check_branch
          %221 = sbr.rel (%p219) target = $region24
        $region23: #{tpu_custom_call.1} parent=11 // pred_region
          %s223 = ssub.s32 2304, 2304
          %224 = vsyncadd [#allocation6], %s223
          %s225 = sshll.u32 [#allocation5], 4
          %s226 = int_to_ptr.vmem [resolvable:$true] %s225
          %231 = dma.hbm_to_vmem [thread:$0]  %s3, 2304, %s226, [#allocation6], 64, 64, 4
        $region24: #{tpu_custom_call.1} parent=11 // pred_fallthru
          _
        // Predicated region
        $region25: #{tpu_custom_call.1} parent=11 // pred_check
          %p232 = pneg %p130
        $region26: #{tpu_custom_call.1} parent=11 // pred_check_branch
          %234 = sbr.rel (%p232) target = $region28
        $region27: #{tpu_custom_call.1} parent=11 // pred_region
          _
        $region28: #{tpu_custom_call.1} parent=11 // pred_fallthru
          _
        // Predicated region
        $region29: #{tpu_custom_call.1} parent=11 // pred_check
          %p235 = pneg %p151
        $region30: #{tpu_custom_call.1} parent=11 // pred_check_branch
          %237 = sbr.rel (%p235) target = $region32
        $region31: #{tpu_custom_call.1} parent=11 // pred_region
          _
        $region32: #{tpu_custom_call.1} parent=11 // pred_fallthru
          _
        // Predicated region
        $region33: #{tpu_custom_call.1} parent=11 // pred_check
          %p238 = pneg %p172
        $region34: #{tpu_custom_call.1} parent=11 // pred_check_branch
          %240 = sbr.rel (%p238) target = $region36
        $region35: #{tpu_custom_call.1} parent=11 // pred_region
          _
        $region36: #{tpu_custom_call.1} parent=11 // pred_fallthru
          _
      $region12: #{tpu_custom_call.1} parent=5 // pred_fallthru
        _
      %p241 = scmp.lt.s32.totalorder %s20, 2
      // Predicated region
      $region37: #{tpu_custom_call.1} parent=5 // pred_check
        %p242 = pneg %p241
      $region38: #{tpu_custom_call.1} parent=5 // pred_check_branch
        %244 = sbr.rel (%p242) target = $region40
      $region39: #{tpu_custom_call.1} parent=5 // pred_region
        // Predicated region
        $region41: #{tpu_custom_call.1} parent=39 // pred_check
          %p245 = pneg %p40
        $region42: #{tpu_custom_call.1} parent=39 // pred_check_branch
          %247 = sbr.rel (%p245) target = $region44
        $region43: #{tpu_custom_call.1} parent=39 // pred_region
          %s248 = sand.u32 %s30, 1
          %s249 = scalar_lea.sflag [#allocation3], %s248
          %s250 = sand.u32 %s30, 1
          %s251 = smul.addr %s250, 128
          %s252 = scalar_lea.vmem [#allocation2], %s251
          %s254 = ssub.s32 2048, 2048
          %255 = vsyncadd %s249, %s254
          %s256 = smul.addr %s20, 32
          %s257 = smul.addr %s256, 64
          %s258 = scalar_lea.hbm %s0, %s257
          %s259 = sshll.u32 %s252, 4
          %s260 = int_to_ptr.vmem [resolvable:$true] %s259
          %265 = dma.hbm_to_vmem [thread:$0]  %s258, 2048, %s260, %s249, 64, 64, 4
        $region44: #{tpu_custom_call.1} parent=39 // pred_fallthru
          _
      $region40: #{tpu_custom_call.1} parent=5 // pred_fallthru
        _
      %p266 = scmp.le.s32.totalorder 1, %s20
      %p267 = scmp.lt.s32.totalorder %s20, 3
      %p268 = pnand %p266, %p267
      %p269 = pneg %p268
      // Predicated region
      $region45: #{tpu_custom_call.1} parent=5 // pred_check
        _
      $region46: #{tpu_custom_call.1} parent=5 // pred_check_branch
        %271 = sbr.rel (%p268) target = $region48
      $region47: #{tpu_custom_call.1} parent=5 // pred_region
        %s272 = ssub.s32 %s20, 1
        %s273 = sand.u32 %s33, 1
        %s274 = scalar_lea.sflag [#allocation3], %s273
        %s275 = sand.u32 %s33, 1
        %s276 = smul.addr %s275, 128
        %s277 = scalar_lea.vmem [#allocation2], %s276
        // Predicated region
        $region49: #{tpu_custom_call.1} parent=47 // pred_check
          %p278 = pneg %p46
        $region50: #{tpu_custom_call.1} parent=47 // pred_check_branch
          %280 = sbr.rel (%p278) target = $region52
        $region51: #{tpu_custom_call.1} parent=47 // pred_region
          %281 = dma.done %s274, 2048
        $region52: #{tpu_custom_call.1} parent=47 // pred_fallthru
          _
        // Predicated region
        $region53: #{tpu_custom_call.1} parent=47 // pred_check
          %p282 = pneg %p109
        $region54: #{tpu_custom_call.1} parent=47 // pred_check_branch
          %284 = sbr.rel (%p282) target = $region56
        $region55: #{tpu_custom_call.1} parent=47 // pred_region
          %285 = dma.done [#allocation6], 2304
        $region56: #{tpu_custom_call.1} parent=47 // pred_fallthru
          _
        %s286 = sand.u32 %s33, 1
        %s287 = scalar_lea.sflag [#allocation3], %s286
        %s288 = sand.u32 %s33, 1
        %s289 = smul.addr %s288, 128
        %s290 = scalar_lea.vmem [#allocation2], %s289
        %p291 = pneg %p46
        %p292 = pneg %p43
        %p293 = pneg %p67
        %p294 = pneg %p64
        %p295 = pneg %p88
        %p296 = pneg %p85
        %p297 = pneg %p109
        %p298 = pneg %p106
        %p299 = pneg %p130
        %p300 = pneg %p127
        %p301 = pneg %p151
        %p302 = pneg %p148
        %p303 = pneg %p172
        %p304 = pneg %p169
        %p305 = pneg %p198
        %p306 = pneg %p195
        %s307 = sand.u32 %s185, 1
        %s308 = scalar_lea.sflag [#allocation4], %s307
        %s309 = sand.u32 %s185, 1
        %s310 = smul.addr %s309, 128
        %s311 = scalar_lea.vmem [#allocation7], %s310
        %v313 = vld [vmem:[%s277] sm:$0xf]
        %v314 = vld [vmem:[%s277 + $0x4] sm:$0xf]
        %v315 = vld [vmem:[%s277 + $0x8] sm:$0xf]
        %v316 = vld [vmem:[%s277 + $0xc] sm:$0xf]
        %v317 = vld [vmem:[%s277 + $0x10] sm:$0xf]
        %v318 = vld [vmem:[%s277 + $0x14] sm:$0xf]
        %v319 = vld [vmem:[%s277 + $0x18] sm:$0xf]
        %v320 = vld [vmem:[%s277 + $0x1c] sm:$0xf]
        %v321 = vld [vmem:[%s277 + $0x20] sm:$0xf]
        %v322 = vld [vmem:[%s277 + $0x24] sm:$0xf]
        %v323 = vld [vmem:[%s277 + $0x28] sm:$0xf]
        %v324 = vld [vmem:[%s277 + $0x2c] sm:$0xf]
        %v325 = vld [vmem:[%s277 + $0x30] sm:$0xf]
        %v326 = vld [vmem:[%s277 + $0x34] sm:$0xf]
        %v327 = vld [vmem:[%s277 + $0x38] sm:$0xf]
        %v328 = vld [vmem:[%s277 + $0x3c] sm:$0xf]
        %v329 = vld [vmem:[%s277 + $0x40] sm:$0xf]
        %v330 = vld [vmem:[%s277 + $0x44] sm:$0xf]
        %v331 = vld [vmem:[%s277 + $0x48] sm:$0xf]
        %v332 = vld [vmem:[%s277 + $0x4c] sm:$0xf]
        %v333 = vld [vmem:[%s277 + $0x50] sm:$0xf]
        %v334 = vld [vmem:[%s277 + $0x54] sm:$0xf]
        %v335 = vld [vmem:[%s277 + $0x58] sm:$0xf]
        %v336 = vld [vmem:[%s277 + $0x5c] sm:$0xf]
        %v337 = vld [vmem:[%s277 + $0x60] sm:$0xf]
        %v338 = vld [vmem:[%s277 + $0x64] sm:$0xf]
        %v339 = vld [vmem:[%s277 + $0x68] sm:$0xf]
        %v340 = vld [vmem:[%s277 + $0x6c] sm:$0xf]
        %v341 = vld [vmem:[%s277 + $0x70] sm:$0xf]
        %v342 = vld [vmem:[%s277 + $0x74] sm:$0xf]
        %v343 = vld [vmem:[%s277 + $0x78] sm:$0xf]
        %v344 = vld [vmem:[%s277 + $0x7c] sm:$0xf]
        %v345 = vld [vmem:[%s1] sm:$0xf]
        %v346 = vld [vmem:[%s1 + $0x4] sm:$0xf]
        %v347 = vld [vmem:[%s1 + $0x8] sm:$0xf]
        %v348 = vld [vmem:[%s1 + $0xc] sm:$0xf]
        %v349 = vld [vmem:[%s1 + $0x10] sm:$0xf]
        %v350 = vld [vmem:[%s1 + $0x14] sm:$0xf]
        %v351 = vld [vmem:[%s1 + $0x18] sm:$0xf]
        %v352 = vld [vmem:[%s1 + $0x1c] sm:$0xf]
        %v353 = vld [vmem:[%s1 + $0x20] sm:$0xf]
        %v354 = vld [vmem:[%s1 + $0x24] sm:$0xf]
        %v355 = vld [vmem:[%s1 + $0x28] sm:$0xf]
        %v356 = vld [vmem:[%s1 + $0x2c] sm:$0xf]
        %v357 = vld [vmem:[%s1 + $0x30] sm:$0xf]
        %v358 = vld [vmem:[%s1 + $0x34] sm:$0xf]
        %v359 = vld [vmem:[%s1 + $0x38] sm:$0xf]
        %v360 = vld [vmem:[%s1 + $0x3c] sm:$0xf]
        %v361 = vld [vmem:[%s2] sm:$0x1]
        %v363 = vlaneseq
        %v364 = vshrl.u32 %v363, 7
        %v365 = vsub.s32 0, %v364
        %v366 = vrot.slane %v361, %v365
        %v400 = vunpack.c.l.b16 %v313
        %v401 = vunpack.c.l.b16 %v314
        %v402 = vunpack.c.l.b16 %v315
        %v403 = vunpack.c.l.b16 %v316
        %v404 = vunpack.c.l.b16 %v317
        %v405 = vunpack.c.l.b16 %v318
        %v406 = vunpack.c.l.b16 %v319
        %v407 = vunpack.c.l.b16 %v320
        %v408 = vunpack.c.l.b16 %v321
        %v409 = vunpack.c.l.b16 %v322
        %v410 = vunpack.c.l.b16 %v323
        %v411 = vunpack.c.l.b16 %v324
        %v412 = vunpack.c.l.b16 %v325
        %v413 = vunpack.c.l.b16 %v326
        %v414 = vunpack.c.l.b16 %v327
        %v415 = vunpack.c.l.b16 %v328
        %v416 = vunpack.c.l.b16 %v329
        %v417 = vunpack.c.l.b16 %v330
        %v418 = vunpack.c.l.b16 %v331
        %v419 = vunpack.c.l.b16 %v332
        %v420 = vunpack.c.l.b16 %v333
        %v421 = vunpack.c.l.b16 %v334
        %v422 = vunpack.c.l.b16 %v335
        %v423 = vunpack.c.l.b16 %v336
        %v424 = vunpack.c.l.b16 %v337
        %v425 = vunpack.c.l.b16 %v338
        %v426 = vunpack.c.l.b16 %v339
        %v427 = vunpack.c.l.b16 %v340
        %v428 = vunpack.c.l.b16 %v341
        %v429 = vunpack.c.l.b16 %v342
        %v430 = vunpack.c.l.b16 %v343
        %v431 = vunpack.c.l.b16 %v344
        %v432 = vpack.c.b16 %v401, %v400
        %v433 = vpack.c.b16 %v403, %v402
        %v434 = vpack.c.b16 %v405, %v404
        %v435 = vpack.c.b16 %v407, %v406
        %v436 = vpack.c.b16 %v409, %v408
        %v437 = vpack.c.b16 %v411, %v410
        %v438 = vpack.c.b16 %v413, %v412
        %v439 = vpack.c.b16 %v415, %v414
        %v440 = vpack.c.b16 %v417, %v416
        %v441 = vpack.c.b16 %v419, %v418
        %v442 = vpack.c.b16 %v421, %v420
        %v443 = vpack.c.b16 %v423, %v422
        %v444 = vpack.c.b16 %v425, %v424
        %v445 = vpack.c.b16 %v427, %v426
        %v446 = vpack.c.b16 %v429, %v428
        %v447 = vpack.c.b16 %v431, %v430
        %v480 = vunpack.c.l.b16 %v345
        %v481 = vunpack.c.l.b16 %v346
        %v482 = vunpack.c.l.b16 %v347
        %v483 = vunpack.c.l.b16 %v348
        %v484 = vunpack.c.l.b16 %v349
        %v485 = vunpack.c.l.b16 %v350
        %v486 = vunpack.c.l.b16 %v351
        %v487 = vunpack.c.l.b16 %v352
        %v488 = vunpack.c.l.b16 %v353
        %v489 = vunpack.c.l.b16 %v354
        %v490 = vunpack.c.l.b16 %v355
        %v491 = vunpack.c.l.b16 %v356
        %v492 = vunpack.c.l.b16 %v357
        %v493 = vunpack.c.l.b16 %v358
        %v494 = vunpack.c.l.b16 %v359
        %v495 = vunpack.c.l.b16 %v360
        %v496 = vpack.c.b16 %v481, %v480
        %v497 = vpack.c.b16 %v483, %v482
        %v498 = vpack.c.b16 %v485, %v484
        %v499 = vpack.c.b16 %v487, %v486
        %v500 = vpack.c.b16 %v489, %v488
        %v501 = vpack.c.b16 %v491, %v490
        %v502 = vpack.c.b16 %v493, %v492
        %v503 = vpack.c.b16 %v495, %v494
        %512 = vmatprep.subr.bf16.mxu0 0
        %513 = vmatpush1.bf16.msra.mxu0 %v496
        %514 = vmatprep.subr.bf16.mxu0 0
        %515 = vmatpush1.bf16.msra.mxu0 %v497
        %516 = vmatprep.subr.bf16.mxu0 0
        %517 = vmatpush1.bf16.msra.mxu0 %v498
        %518 = vmatprep.subr.bf16.mxu0 0
        %519 = vmatpush1.bf16.msra.mxu0 %v499
        %520 = vmatprep.subr.bf16.mxu0 0
        %521 = vmatpush1.bf16.msra.mxu0 %v500
        %522 = vmatprep.subr.bf16.mxu0 0
        %523 = vmatpush1.bf16.msra.mxu0 %v501
        %524 = vmatprep.subr.bf16.mxu0 0
        %525 = vmatpush1.bf16.msra.mxu0 %v502
        %526 = vmatprep.subr.bf16.mxu0 0
        %527 = vmatpush1.bf16.msra.mxu0 %v503
        %528 = vmatprep.subr.bf16.mxu0 0
        %529 = vmatpush1.bf16.msra.mxu0 0
        %530 = vmatprep.subr.bf16.mxu0 0
        %531 = vmatpush1.bf16.msra.mxu0 0
        %532 = vmatprep.subr.bf16.mxu0 0
        %533 = vmatpush1.bf16.msra.mxu0 0
        %534 = vmatprep.subr.bf16.mxu0 0
        %535 = vmatpush1.bf16.msra.mxu0 0
        %536 = vmatprep.subr.bf16.mxu0 0
        %537 = vmatpush1.bf16.msra.mxu0 0
        %538 = vmatprep.subr.bf16.mxu0 0
        %539 = vmatpush1.bf16.msra.mxu0 0
        %540 = vmatprep.subr.bf16.mxu0 0
        %541 = vmatpush1.bf16.msra.mxu0 0
        %542 = vmatprep.subr.bf16.mxu0 0
        %543 = vmatpush1.bf16.msra.mxu0 0
        %544 = vmatprep.mubr.bf16.mxu0 0
        %545 = vmatmul.mubr.bf16.gmra.mrb[0].mxu0 %v432
        %v546 = vpop.f32.mrb[0].mxu0
        %v547 = vadd.f32 %v366, %v546
        %v548 = vpop.f32.mrb[0].mxu0
        %v549 = vpop.f32.mrb[0].mxu0
        %v550 = vadd.f32 %v366, %v549
        %v551 = vpop.f32.mrb[0].mxu0
        %552 = vmatprep.mubr.bf16.mxu0 0
        %553 = vmatmul.mubr.bf16.gmra.mrb[0].mxu0 %v433
        %v554 = vpop.f32.mrb[0].mxu0
        %v555 = vadd.f32 %v366, %v554
        %v556 = vpop.f32.mrb[0].mxu0
        %v557 = vpop.f32.mrb[0].mxu0
        %v558 = vadd.f32 %v366, %v557
        %v559 = vpop.f32.mrb[0].mxu0
        %560 = vmatprep.mubr.bf16.mxu0 0
        %561 = vmatmul.mubr.bf16.gmra.mrb[0].mxu0 %v434
        %v562 = vpop.f32.mrb[0].mxu0
        %v563 = vadd.f32 %v366, %v562
        %v564 = vpop.f32.mrb[0].mxu0
        %v565 = vpop.f32.mrb[0].mxu0
        %v566 = vadd.f32 %v366, %v565
        %v567 = vpop.f32.mrb[0].mxu0
        %568 = vmatprep.mubr.bf16.mxu0 0
        %569 = vmatmul.mubr.bf16.gmra.mrb[0].mxu0 %v435
        %v570 = vpop.f32.mrb[0].mxu0
        %v571 = vadd.f32 %v366, %v570
        %v572 = vpop.f32.mrb[0].mxu0
        %v573 = vpop.f32.mrb[0].mxu0
        %v574 = vadd.f32 %v366, %v573
        %v575 = vpop.f32.mrb[0].mxu0
        %576 = vmatprep.mubr.bf16.mxu0 0
        %577 = vmatmul.mubr.bf16.gmra.mrb[0].mxu0 %v436
        %v578 = vpop.f32.mrb[0].mxu0
        %v579 = vadd.f32 %v366, %v578
        %v580 = vpop.f32.mrb[0].mxu0
        %v581 = vpop.f32.mrb[0].mxu0
        %v582 = vadd.f32 %v366, %v581
        %v583 = vpop.f32.mrb[0].mxu0
        %584 = vmatprep.mubr.bf16.mxu0 0
        %585 = vmatmul.mubr.bf16.gmra.mrb[0].mxu0 %v437
        %v586 = vpop.f32.mrb[0].mxu0
        %v587 = vadd.f32 %v366, %v586
        %v588 = vpop.f32.mrb[0].mxu0
        %v589 = vpop.f32.mrb[0].mxu0
        %v590 = vadd.f32 %v366, %v589
        %v591 = vpop.f32.mrb[0].mxu0
        %592 = vmatprep.mubr.bf16.mxu0 0
        %593 = vmatmul.mubr.bf16.gmra.mrb[0].mxu0 %v438
        %v594 = vpop.f32.mrb[0].mxu0
        %v595 = vadd.f32 %v366, %v594
        %v596 = vpop.f32.mrb[0].mxu0
        %v597 = vpop.f32.mrb[0].mxu0
        %v598 = vadd.f32 %v366, %v597
        %v599 = vpop.f32.mrb[0].mxu0
        %600 = vmatprep.mubr.bf16.mxu0 0
        %601 = vmatmul.mubr.bf16.gmra.mrb[0].mxu0 %v439
        %v602 = vpop.f32.mrb[0].mxu0
        %v603 = vadd.f32 %v366, %v602
        %v604 = vpop.f32.mrb[0].mxu0
        %v605 = vpop.f32.mrb[0].mxu0
        %v606 = vadd.f32 %v366, %v605
        %v607 = vpop.f32.mrb[0].mxu0
        %608 = vmatprep.mubr.bf16.mxu0 0
        %609 = vmatmul.mubr.bf16.gmra.mrb[0].mxu0 %v440
        %v610 = vpop.f32.mrb[0].mxu0
        %v611 = vadd.f32 %v366, %v610
        %v612 = vpop.f32.mrb[0].mxu0
        %v613 = vpop.f32.mrb[0].mxu0
        %v614 = vadd.f32 %v366, %v613
        %v615 = vpop.f32.mrb[0].mxu0
        %616 = vmatprep.mubr.bf16.mxu0 0
        %617 = vmatmul.mubr.bf16.gmra.mrb[0].mxu0 %v441
        %v618 = vpop.f32.mrb[0].mxu0
        %v619 = vadd.f32 %v366, %v618
        %v620 = vpop.f32.mrb[0].mxu0
        %v621 = vpop.f32.mrb[0].mxu0
        %v622 = vadd.f32 %v366, %v621
        %v623 = vpop.f32.mrb[0].mxu0
        %624 = vmatprep.mubr.bf16.mxu0 0
        %625 = vmatmul.mubr.bf16.gmra.mrb[0].mxu0 %v442
        %v626 = vpop.f32.mrb[0].mxu0
        %v627 = vadd.f32 %v366, %v626
        %v628 = vpop.f32.mrb[0].mxu0
        %v629 = vpop.f32.mrb[0].mxu0
        %v630 = vadd.f32 %v366, %v629
        %v631 = vpop.f32.mrb[0].mxu0
        %632 = vmatprep.mubr.bf16.mxu0 0
        %633 = vmatmul.mubr.bf16.gmra.mrb[0].mxu0 %v443
        %v634 = vpop.f32.mrb[0].mxu0
        %v635 = vadd.f32 %v366, %v634
        %v636 = vpop.f32.mrb[0].mxu0
        %v637 = vpop.f32.mrb[0].mxu0
        %v638 = vadd.f32 %v366, %v637
        %v639 = vpop.f32.mrb[0].mxu0
        %640 = vmatprep.mubr.bf16.mxu0 0
        %641 = vmatmul.mubr.bf16.gmra.mrb[0].mxu0 %v444
        %v642 = vpop.f32.mrb[0].mxu0
        %v643 = vadd.f32 %v366, %v642
        %v644 = vpop.f32.mrb[0].mxu0
        %v645 = vpop.f32.mrb[0].mxu0
        %v646 = vadd.f32 %v366, %v645
        %v647 = vpop.f32.mrb[0].mxu0
        %648 = vmatprep.mubr.bf16.mxu0 0
        %649 = vmatmul.mubr.bf16.gmra.mrb[0].mxu0 %v445
        %v650 = vpop.f32.mrb[0].mxu0
        %v651 = vadd.f32 %v366, %v650
        %v652 = vpop.f32.mrb[0].mxu0
        %v653 = vpop.f32.mrb[0].mxu0
        %v654 = vadd.f32 %v366, %v653
        %v655 = vpop.f32.mrb[0].mxu0
        %656 = vmatprep.mubr.bf16.mxu0 0
        %657 = vmatmul.mubr.bf16.gmra.mrb[0].mxu0 %v446
        %v658 = vpop.f32.mrb[0].mxu0
        %v659 = vadd.f32 %v366, %v658
        %v660 = vpop.f32.mrb[0].mxu0
        %v661 = vpop.f32.mrb[0].mxu0
        %v662 = vadd.f32 %v366, %v661
        %v663 = vpop.f32.mrb[0].mxu0
        %664 = vmatprep.mubr.bf16.mxu0 0
        %665 = vmatmul.mubr.bf16.gmra.mrb[0].mxu0 %v447
        %v666 = vpop.f32.mrb[0].mxu0
        %v667 = vadd.f32 %v366, %v666
        %v668 = vpop.f32.mrb[0].mxu0
        %v669 = vpop.f32.mrb[0].mxu0
        %v670 = vadd.f32 %v366, %v669
        %v671 = vpop.f32.mrb[0].mxu0
        %672 = vdwg.mxu0
        %v673 = vmax.f32 %v547, 0.0
        %v674 = vmax.f32 %v550, 0.0
        %v675 = vmax.f32 %v555, 0.0
        %v676 = vmax.f32 %v558, 0.0
        %v677 = vmax.f32 %v563, 0.0
        %v678 = vmax.f32 %v566, 0.0
        %v679 = vmax.f32 %v571, 0.0
        %v680 = vmax.f32 %v574, 0.0
        %v681 = vmax.f32 %v579, 0.0
        %v682 = vmax.f32 %v582, 0.0
        %v683 = vmax.f32 %v587, 0.0
        %v684 = vmax.f32 %v590, 0.0
        %v685 = vmax.f32 %v595, 0.0
        %v686 = vmax.f32 %v598, 0.0
        %v687 = vmax.f32 %v603, 0.0
        %v688 = vmax.f32 %v606, 0.0
        %v689 = vmax.f32 %v611, 0.0
        %v690 = vmax.f32 %v614, 0.0
        %v691 = vmax.f32 %v619, 0.0
        %v692 = vmax.f32 %v622, 0.0
        %v693 = vmax.f32 %v627, 0.0
        %v694 = vmax.f32 %v630, 0.0
        %v695 = vmax.f32 %v635, 0.0
        %v696 = vmax.f32 %v638, 0.0
        %v697 = vmax.f32 %v643, 0.0
        %v698 = vmax.f32 %v646, 0.0
        %v699 = vmax.f32 %v651, 0.0
        %v700 = vmax.f32 %v654, 0.0
        %v701 = vmax.f32 %v659, 0.0
        %v702 = vmax.f32 %v662, 0.0
        %v703 = vmax.f32 %v667, 0.0
        %v704 = vmax.f32 %v670, 0.0
        %vm737 = vcmask 1040384
        %v738 = vrot.slane %v673, 7
        %v739 = vrot.slane %v674, 7
        %v740 = vsel %vm737, %v738, %v739
        %v741 = vrot.slane %v675, 7
        %v742 = vrot.slane %v676, 7
        %v743 = vsel %vm737, %v741, %v742
        %v744 = vrot.slane %v677, 7
        %v745 = vrot.slane %v678, 7
        %v746 = vsel %vm737, %v744, %v745
        %v747 = vrot.slane %v679, 7
        %v748 = vrot.slane %v680, 7
        %v749 = vsel %vm737, %v747, %v748
        %v750 = vrot.slane %v681, 7
        %v751 = vrot.slane %v682, 7
        %v752 = vsel %vm737, %v750, %v751
        %v753 = vrot.slane %v683, 7
        %v754 = vrot.slane %v684, 7
        %v755 = vsel %vm737, %v753, %v754
        %v756 = vrot.slane %v685, 7
        %v757 = vrot.slane %v686, 7
        %v758 = vsel %vm737, %v756, %v757
        %v759 = vrot.slane %v687, 7
        %v760 = vrot.slane %v688, 7
        %v761 = vsel %vm737, %v759, %v760
        %v762 = vrot.slane %v689, 7
        %v763 = vrot.slane %v690, 7
        %v764 = vsel %vm737, %v762, %v763
        %v765 = vrot.slane %v691, 7
        %v766 = vrot.slane %v692, 7
        %v767 = vsel %vm737, %v765, %v766
        %v768 = vrot.slane %v693, 7
        %v769 = vrot.slane %v694, 7
        %v770 = vsel %vm737, %v768, %v769
        %v771 = vrot.slane %v695, 7
        %v772 = vrot.slane %v696, 7
        %v773 = vsel %vm737, %v771, %v772
        %v774 = vrot.slane %v697, 7
        %v775 = vrot.slane %v698, 7
        %v776 = vsel %vm737, %v774, %v775
        %v777 = vrot.slane %v699, 7
        %v778 = vrot.slane %v700, 7
        %v779 = vsel %vm737, %v777, %v778
        %v780 = vrot.slane %v701, 7
        %v781 = vrot.slane %v702, 7
        %v782 = vsel %vm737, %v780, %v781
        %v783 = vrot.slane %v703, 7
        %v784 = vrot.slane %v704, 7
        %v785 = vsel %vm737, %v783, %v784
        %v818 = vsel %vm737, 0.0, %v738
        %v819 = vsel %vm737, 0.0, %v741
        %v820 = vsel %vm737, 0.0, %v744
        %v821 = vsel %vm737, 0.0, %v747
        %v822 = vsel %vm737, 0.0, %v750
        %v823 = vsel %vm737, 0.0, %v753
        %v824 = vsel %vm737, 0.0, %v756
        %v825 = vsel %vm737, 0.0, %v759
        %v826 = vsel %vm737, 0.0, %v762
        %v827 = vsel %vm737, 0.0, %v765
        %v828 = vsel %vm737, 0.0, %v768
        %v829 = vsel %vm737, 0.0, %v771
        %v830 = vsel %vm737, 0.0, %v774
        %v831 = vsel %vm737, 0.0, %v777
        %v832 = vsel %vm737, 0.0, %v780
        %v833 = vsel %vm737, 0.0, %v783
        %vm834 = vcmask 1046528
        %v835 = vrot.slane %v673, 1
        %v836 = vrot.slane %v674, 1
        %v837 = vsel %vm834, %v835, %v836
        %v838 = vrot.slane %v675, 1
        %v839 = vrot.slane %v676, 1
        %v840 = vsel %vm834, %v838, %v839
        %v841 = vrot.slane %v677, 1
        %v842 = vrot.slane %v678, 1
        %v843 = vsel %vm834, %v841, %v842
        %v844 = vrot.slane %v679, 1
        %v845 = vrot.slane %v680, 1
        %v846 = vsel %vm834, %v844, %v845
        %v847 = vrot.slane %v681, 1
        %v848 = vrot.slane %v682, 1
        %v849 = vsel %vm834, %v847, %v848
        %v850 = vrot.slane %v683, 1
        %v851 = vrot.slane %v684, 1
        %v852 = vsel %vm834, %v850, %v851
        %v853 = vrot.slane %v685, 1
        %v854 = vrot.slane %v686, 1
        %v855 = vsel %vm834, %v853, %v854
        %v856 = vrot.slane %v687, 1
        %v857 = vrot.slane %v688, 1
        %v858 = vsel %vm834, %v856, %v857
        %v859 = vrot.slane %v689, 1
        %v860 = vrot.slane %v690, 1
        %v861 = vsel %vm834, %v859, %v860
        %v862 = vrot.slane %v691, 1
        %v863 = vrot.slane %v692, 1
        %v864 = vsel %vm834, %v862, %v863
        %v865 = vrot.slane %v693, 1
        %v866 = vrot.slane %v694, 1
        %v867 = vsel %vm834, %v865, %v866
        %v868 = vrot.slane %v695, 1
        %v869 = vrot.slane %v696, 1
        %v870 = vsel %vm834, %v868, %v869
        %v871 = vrot.slane %v697, 1
        %v872 = vrot.slane %v698, 1
        %v873 = vsel %vm834, %v871, %v872
        %v874 = vrot.slane %v699, 1
        %v875 = vrot.slane %v700, 1
        %v876 = vsel %vm834, %v874, %v875
        %v877 = vrot.slane %v701, 1
        %v878 = vrot.slane %v702, 1
        %v879 = vsel %vm834, %v877, %v878
        %v880 = vrot.slane %v703, 1
        %v881 = vrot.slane %v704, 1
        %v882 = vsel %vm834, %v880, %v881
        %v915 = vsel %vm834, %v836, 0.0
        %v916 = vsel %vm834, %v839, 0.0
        %v917 = vsel %vm834, %v842, 0.0
        %v918 = vsel %vm834, %v845, 0.0
        %v919 = vsel %vm834, %v848, 0.0
        %v920 = vsel %vm834, %v851, 0.0
        %v921 = vsel %vm834, %v854, 0.0
        %v922 = vsel %vm834, %v857, 0.0
        %v923 = vsel %vm834, %v860, 0.0
        %v924 = vsel %vm834, %v863, 0.0
        %v925 = vsel %vm834, %v866, 0.0
        %v926 = vsel %vm834, %v869, 0.0
        %v927 = vsel %vm834, %v872, 0.0
        %v928 = vsel %vm834, %v875, 0.0
        %v929 = vsel %vm834, %v878, 0.0
        %v930 = vsel %vm834, %v881, 0.0
        %v931 = vpack.c.bf16 %v740, %v818
        %v932 = vpack.c.bf16 %v743, %v819
        %v933 = vpack.c.bf16 %v746, %v820
        %v934 = vpack.c.bf16 %v749, %v821
        %v935 = vpack.c.bf16 %v752, %v822
        %v936 = vpack.c.bf16 %v755, %v823
        %v937 = vpack.c.bf16 %v758, %v824
        %v938 = vpack.c.bf16 %v761, %v825
        %v939 = vpack.c.bf16 %v764, %v826
        %v940 = vpack.c.bf16 %v767, %v827
        %v941 = vpack.c.bf16 %v770, %v828
        %v942 = vpack.c.bf16 %v773, %v829
        %v943 = vpack.c.bf16 %v776, %v830
        %v944 = vpack.c.bf16 %v779, %v831
        %v945 = vpack.c.bf16 %v782, %v832
        %v946 = vpack.c.bf16 %v785, %v833
        %v947 = vpack.c.bf16 %v674, %v673
        %v948 = vpack.c.bf16 %v676, %v675
        %v949 = vpack.c.bf16 %v678, %v677
        %v950 = vpack.c.bf16 %v680, %v679
        %v951 = vpack.c.bf16 %v682, %v681
        %v952 = vpack.c.bf16 %v684, %v683
        %v953 = vpack.c.bf16 %v686, %v685
        %v954 = vpack.c.bf16 %v688, %v687
        %v955 = vpack.c.bf16 %v690, %v689
        %v956 = vpack.c.bf16 %v692, %v691
        %v957 = vpack.c.bf16 %v694, %v693
        %v958 = vpack.c.bf16 %v696, %v695
        %v959 = vpack.c.bf16 %v698, %v697
        %v960 = vpack.c.bf16 %v700, %v699
        %v961 = vpack.c.bf16 %v702, %v701
        %v962 = vpack.c.bf16 %v704, %v703
        %v963 = vpack.c.bf16 %v915, %v837
        %v964 = vpack.c.bf16 %v916, %v840
        %v965 = vpack.c.bf16 %v917, %v843
        %v966 = vpack.c.bf16 %v918, %v846
        %v967 = vpack.c.bf16 %v919, %v849
        %v968 = vpack.c.bf16 %v920, %v852
        %v969 = vpack.c.bf16 %v921, %v855
        %v970 = vpack.c.bf16 %v922, %v858
        %v971 = vpack.c.bf16 %v923, %v861
        %v972 = vpack.c.bf16 %v924, %v864
        %v973 = vpack.c.bf16 %v925, %v867
        %v974 = vpack.c.bf16 %v926, %v870
        %v975 = vpack.c.bf16 %v927, %v873
        %v976 = vpack.c.bf16 %v928, %v876
        %v977 = vpack.c.bf16 %v929, %v879
        %v978 = vpack.c.bf16 %v930, %v882
        %v979 = vld [vmem:[#allocation5] sm:$0xf]
        %v980 = vld [vmem:[#allocation5 + $0x4] sm:$0xf]
        %v981 = vld [vmem:[#allocation5 + $0x8] sm:$0xf]
        %v982 = vld [vmem:[#allocation5 + $0xc] sm:$0xf]
        %s983 = scalar_lea.vmem [#allocation5], 16
        %v984 = vld [vmem:[%s983] sm:$0xf]
        %v985 = vld [vmem:[%s983 + $0x4] sm:$0xf]
        %v986 = vld [vmem:[%s983 + $0x8] sm:$0xf]
        %v987 = vld [vmem:[%s983 + $0xc] sm:$0xf]
        %v992 = vunpack.c.l.b16 %v984
        %v993 = vunpack.c.l.b16 %v985
        %v994 = vunpack.c.l.b16 %v986
        %v995 = vunpack.c.l.b16 %v987
        %v996 = vpack.c.b16 %v993, %v992
        %v997 = vpack.c.b16 %v995, %v994
        %vm1000 = vcmask 261120
        %v1002 = vsel %vm1000, 0, 0
        %v1005 = vsel %vm1000, %v947, 0
        %v1008 = vsel %vm1000, %v948, 0
        %v1011 = vsel %vm1000, %v949, 0
        %v1014 = vsel %vm1000, %v950, 0
        %v1017 = vsel %vm1000, %v951, 0
        %v1020 = vsel %vm1000, %v952, 0
        %v1023 = vsel %vm1000, %v953, 0
        %v1026 = vsel %vm1000, %v954, 0
        %v1029 = vsel %vm1000, %v955, 0
        %v1032 = vsel %vm1000, %v956, 0
        %v1035 = vsel %vm1000, %v957, 0
        %v1038 = vsel %vm1000, %v958, 0
        %v1041 = vsel %vm1000, %v959, 0
        %v1044 = vsel %vm1000, %v960, 0
        %v1047 = vsel %vm1000, %v961, 0
        %1049 = vmatprep.subr.bf16.mxu0 0
        %1050 = vmatpush1.bf16.msra.mxu0 %v996
        %1051 = vmatprep.subr.bf16.mxu0 0
        %1052 = vmatpush1.bf16.msra.mxu0 %v997
        %1053 = vmatprep.subr.bf16.mxu0 0
        %1054 = vmatpush1.bf16.msra.mxu0 0
        %1055 = vmatprep.subr.bf16.mxu0 0
        %1056 = vmatpush1.bf16.msra.mxu0 0
        %1057 = vmatprep.subr.bf16.mxu0 0
        %1058 = vmatpush1.bf16.msra.mxu0 0
        %1059 = vmatprep.subr.bf16.mxu0 0
        %1060 = vmatpush1.bf16.msra.mxu0 0
        %1061 = vmatprep.subr.bf16.mxu0 0
        %1062 = vmatpush1.bf16.msra.mxu0 0
        %1063 = vmatprep.subr.bf16.mxu0 0
        %1064 = vmatpush1.bf16.msra.mxu0 0
        %1065 = vmatprep.subr.bf16.mxu0 0
        %1066 = vmatpush1.bf16.msra.mxu0 0
        %1067 = vmatprep.subr.bf16.mxu0 0
        %1068 = vmatpush1.bf16.msra.mxu0 0
        %1069 = vmatprep.subr.bf16.mxu0 0
        %1070 = vmatpush1.bf16.msra.mxu0 0
        %1071 = vmatprep.subr.bf16.mxu0 0
        %1072 = vmatpush1.bf16.msra.mxu0 0
        %1073 = vmatprep.subr.bf16.mxu0 0
        %1074 = vmatpush1.bf16.msra.mxu0 0
        %1075 = vmatprep.subr.bf16.mxu0 0
        %1076 = vmatpush1.bf16.msra.mxu0 0
        %1077 = vmatprep.subr.bf16.mxu0 0
        %1078 = vmatpush1.bf16.msra.mxu0 0
        %1079 = vmatprep.subr.bf16.mxu0 0
        %1080 = vmatpush1.bf16.msra.mxu0 0
        %1081 = vmatprep.mubr.bf16.mxu0 0
        %1082 = vmatmul.mubr.bf16.gmra.mrb[0].mxu0 %v1002
        %v1083 = vpop.f32.mrb[0].mxu0
        %v1084 = vadd.f32 0.0, %v1083
        %v1085 = vpop.f32.mrb[0].mxu0
        %v1086 = vpop.f32.mrb[0].mxu0
        %v1087 = vadd.f32 0.0, %v1086
        %v1088 = vpop.f32.mrb[0].mxu0
        %1089 = vmatprep.mubr.bf16.mxu0 0
        %1090 = vmatmul.mubr.bf16.gmra.mrb[0].mxu0 %v1005
        %v1091 = vpop.f32.mrb[0].mxu0
        %v1092 = vadd.f32 0.0, %v1091
        %v1093 = vpop.f32.mrb[0].mxu0
        %v1094 = vpop.f32.mrb[0].mxu0
        %v1095 = vadd.f32 0.0, %v1094
        %v1096 = vpop.f32.mrb[0].mxu0
        %1097 = vmatprep.mubr.bf16.mxu0 0
        %1098 = vmatmul.mubr.bf16.gmra.mrb[0].mxu0 %v1008
        %v1099 = vpop.f32.mrb[0].mxu0
        %v1100 = vadd.f32 0.0, %v1099
        %v1101 = vpop.f32.mrb[0].mxu0
        %v1102 = vpop.f32.mrb[0].mxu0
        %v1103 = vadd.f32 0.0, %v1102
        %v1104 = vpop.f32.mrb[0].mxu0
        %1105 = vmatprep.mubr.bf16.mxu0 0
        %1106 = vmatmul.mubr.bf16.gmra.mrb[0].mxu0 %v1011
        %v1107 = vpop.f32.mrb[0].mxu0
        %v1108 = vadd.f32 0.0, %v1107
        %v1109 = vpop.f32.mrb[0].mxu0
        %v1110 = vpop.f32.mrb[0].mxu0
        %v1111 = vadd.f32 0.0, %v1110
        %v1112 = vpop.f32.mrb[0].mxu0
        %1113 = vmatprep.mubr.bf16.mxu0 0
        %1114 = vmatmul.mubr.bf16.gmra.mrb[0].mxu0 %v1014
        %v1115 = vpop.f32.mrb[0].mxu0
        %v1116 = vadd.f32 0.0, %v1115
        %v1117 = vpop.f32.mrb[0].mxu0
        %v1118 = vpop.f32.mrb[0].mxu0
        %v1119 = vadd.f32 0.0, %v1118
        %v1120 = vpop.f32.mrb[0].mxu0
        %1121 = vmatprep.mubr.bf16.mxu0 0
        %1122 = vmatmul.mubr.bf16.gmra.mrb[0].mxu0 %v1017
        %v1123 = vpop.f32.mrb[0].mxu0
        %v1124 = vadd.f32 0.0, %v1123
        %v1125 = vpop.f32.mrb[0].mxu0
        %v1126 = vpop.f32.mrb[0].mxu0
        %v1127 = vadd.f32 0.0, %v1126
        %v1128 = vpop.f32.mrb[0].mxu0
        %1129 = vmatprep.mubr.bf16.mxu0 0
        %1130 = vmatmul.mubr.bf16.gmra.mrb[0].mxu0 %v1020
        %v1131 = vpop.f32.mrb[0].mxu0
        %v1132 = vadd.f32 0.0, %v1131
        %v1133 = vpop.f32.mrb[0].mxu0
        %v1134 = vpop.f32.mrb[0].mxu0
        %v1135 = vadd.f32 0.0, %v1134
        %v1136 = vpop.f32.mrb[0].mxu0
        %1137 = vmatprep.mubr.bf16.mxu0 0
        %1138 = vmatmul.mubr.bf16.gmra.mrb[0].mxu0 %v1023
        %v1139 = vpop.f32.mrb[0].mxu0
        %v1140 = vadd.f32 0.0, %v1139
        %v1141 = vpop.f32.mrb[0].mxu0
        %v1142 = vpop.f32.mrb[0].mxu0
        %v1143 = vadd.f32 0.0, %v1142
        %v1144 = vpop.f32.mrb[0].mxu0
        %1145 = vmatprep.mubr.bf16.mxu0 0
        %1146 = vmatmul.mubr.bf16.gmra.mrb[0].mxu0 %v1026
        %v1147 = vpop.f32.mrb[0].mxu0
        %v1148 = vadd.f32 0.0, %v1147
        %v1149 = vpop.f32.mrb[0].mxu0
        %v1150 = vpop.f32.mrb[0].mxu0
        %v1151 = vadd.f32 0.0, %v1150
        %v1152 = vpop.f32.mrb[0].mxu0
        %1153 = vmatprep.mubr.bf16.mxu0 0
        %1154 = vmatmul.mubr.bf16.gmra.mrb[0].mxu0 %v1029
        %v1155 = vpop.f32.mrb[0].mxu0
        %v1156 = vadd.f32 0.0, %v1155
        %v1157 = vpop.f32.mrb[0].mxu0
        %v1158 = vpop.f32.mrb[0].mxu0
        %v1159 = vadd.f32 0.0, %v1158
        %v1160 = vpop.f32.mrb[0].mxu0
        %1161 = vmatprep.mubr.bf16.mxu0 0
        %1162 = vmatmul.mubr.bf16.gmra.mrb[0].mxu0 %v1032
        %v1163 = vpop.f32.mrb[0].mxu0
        %v1164 = vadd.f32 0.0, %v1163
        %v1165 = vpop.f32.mrb[0].mxu0
        %v1166 = vpop.f32.mrb[0].mxu0
        %v1167 = vadd.f32 0.0, %v1166
        %v1168 = vpop.f32.mrb[0].mxu0
        %1169 = vmatprep.mubr.bf16.mxu0 0
        %1170 = vmatmul.mubr.bf16.gmra.mrb[0].mxu0 %v1035
        %v1171 = vpop.f32.mrb[0].mxu0
        %v1172 = vadd.f32 0.0, %v1171
        %v1173 = vpop.f32.mrb[0].mxu0
        %v1174 = vpop.f32.mrb[0].mxu0
        %v1175 = vadd.f32 0.0, %v1174
        %v1176 = vpop.f32.mrb[0].mxu0
        %1177 = vmatprep.mubr.bf16.mxu0 0
        %1178 = vmatmul.mubr.bf16.gmra.mrb[0].mxu0 %v1038
        %v1179 = vpop.f32.mrb[0].mxu0
        %v1180 = vadd.f32 0.0, %v1179
        %v1181 = vpop.f32.mrb[0].mxu0
        %v1182 = vpop.f32.mrb[0].mxu0
        %v1183 = vadd.f32 0.0, %v1182
        %v1184 = vpop.f32.mrb[0].mxu0
        %1185 = vmatprep.mubr.bf16.mxu0 0
        %1186 = vmatmul.mubr.bf16.gmra.mrb[0].mxu0 %v1041
        %v1187 = vpop.f32.mrb[0].mxu0
        %v1188 = vadd.f32 0.0, %v1187
        %v1189 = vpop.f32.mrb[0].mxu0
        %v1190 = vpop.f32.mrb[0].mxu0
        %v1191 = vadd.f32 0.0, %v1190
        %v1192 = vpop.f32.mrb[0].mxu0
        %1193 = vmatprep.mubr.bf16.mxu0 0
        %1194 = vmatmul.mubr.bf16.gmra.mrb[0].mxu0 %v1044
        %v1195 = vpop.f32.mrb[0].mxu0
        %v1196 = vadd.f32 0.0, %v1195
        %v1197 = vpop.f32.mrb[0].mxu0
        %v1198 = vpop.f32.mrb[0].mxu0
        %v1199 = vadd.f32 0.0, %v1198
        %v1200 = vpop.f32.mrb[0].mxu0
        %1201 = vmatprep.mubr.bf16.mxu0 0
        %1202 = vmatmul.mubr.bf16.gmra.mrb[0].mxu0 %v1047
        %v1203 = vpop.f32.mrb[0].mxu0
        %v1204 = vadd.f32 0.0, %v1203
        %v1205 = vpop.f32.mrb[0].mxu0
        %v1206 = vpop.f32.mrb[0].mxu0
        %v1207 = vadd.f32 0.0, %v1206
        %v1208 = vpop.f32.mrb[0].mxu0
        %1209 = vdwg.mxu0
        %v1214 = vunpack.c.l.b16 %v979
        %v1215 = vunpack.c.l.b16 %v980
        %v1216 = vunpack.c.l.b16 %v981
        %v1217 = vunpack.c.l.b16 %v982
        %v1218 = vpack.c.b16 %v1215, %v1214
        %v1219 = vpack.c.b16 %v1217, %v1216
        %v1223 = vsel %vm1000, %v931, 0
        %v1226 = vsel %vm1000, %v932, 0
        %v1229 = vsel %vm1000, %v933, 0
        %v1232 = vsel %vm1000, %v934, 0
        %v1235 = vsel %vm1000, %v935, 0
        %v1238 = vsel %vm1000, %v936, 0
        %v1241 = vsel %vm1000, %v937, 0
        %v1244 = vsel %vm1000, %v938, 0
        %v1247 = vsel %vm1000, %v939, 0
        %v1250 = vsel %vm1000, %v940, 0
        %v1253 = vsel %vm1000, %v941, 0
        %v1256 = vsel %vm1000, %v942, 0
        %v1259 = vsel %vm1000, %v943, 0
        %v1262 = vsel %vm1000, %v944, 0
        %v1265 = vsel %vm1000, %v945, 0
        %1267 = vmatprep.subr.bf16.mxu0 0
        %1268 = vmatpush1.bf16.msra.mxu0 %v1218
        %1269 = vmatprep.subr.bf16.mxu0 0
        %1270 = vmatpush1.bf16.msra.mxu0 %v1219
        %1271 = vmatprep.subr.bf16.mxu0 0
        %1272 = vmatpush1.bf16.msra.mxu0 0
        %1273 = vmatprep.subr.bf16.mxu0 0
        %1274 = vmatpush1.bf16.msra.mxu0 0
        %1275 = vmatprep.subr.bf16.mxu0 0
        %1276 = vmatpush1.bf16.msra.mxu0 0
        %1277 = vmatprep.subr.bf16.mxu0 0
        %1278 = vmatpush1.bf16.msra.mxu0 0
        %1279 = vmatprep.subr.bf16.mxu0 0
        %1280 = vmatpush1.bf16.msra.mxu0 0
        %1281 = vmatprep.subr.bf16.mxu0 0
        %1282 = vmatpush1.bf16.msra.mxu0 0
        %1283 = vmatprep.subr.bf16.mxu0 0
        %1284 = vmatpush1.bf16.msra.mxu0 0
        %1285 = vmatprep.subr.bf16.mxu0 0
        %1286 = vmatpush1.bf16.msra.mxu0 0
        %1287 = vmatprep.subr.bf16.mxu0 0
        %1288 = vmatpush1.bf16.msra.mxu0 0
        %1289 = vmatprep.subr.bf16.mxu0 0
        %1290 = vmatpush1.bf16.msra.mxu0 0
        %1291 = vmatprep.subr.bf16.mxu0 0
        %1292 = vmatpush1.bf16.msra.mxu0 0
        %1293 = vmatprep.subr.bf16.mxu0 0
        %1294 = vmatpush1.bf16.msra.mxu0 0
        %1295 = vmatprep.subr.bf16.mxu0 0
        %1296 = vmatpush1.bf16.msra.mxu0 0
        %1297 = vmatprep.subr.bf16.mxu0 0
        %1298 = vmatpush1.bf16.msra.mxu0 0
        %1299 = vmatprep.mubr.bf16.mxu0 0
        %1300 = vmatmul.mubr.bf16.gmra.mrb[0].mxu0 %v1002
        %v1301 = vpop.f32.mrb[0].mxu0
        %v1302 = vadd.f32 %v1084, %v1301
        %v1303 = vpop.f32.mrb[0].mxu0
        %v1304 = vpop.f32.mrb[0].mxu0
        %v1305 = vadd.f32 %v1087, %v1304
        %v1306 = vpop.f32.mrb[0].mxu0
        %1307 = vmatprep.mubr.bf16.mxu0 0
        %1308 = vmatmul.mubr.bf16.gmra.mrb[0].mxu0 %v1223
        %v1309 = vpop.f32.mrb[0].mxu0
        %v1310 = vadd.f32 %v1092, %v1309
        %v1311 = vpop.f32.mrb[0].mxu0
        %v1312 = vpop.f32.mrb[0].mxu0
        %v1313 = vadd.f32 %v1095, %v1312
        %v1314 = vpop.f32.mrb[0].mxu0
        %1315 = vmatprep.mubr.bf16.mxu0 0
        %1316 = vmatmul.mubr.bf16.gmra.mrb[0].mxu0 %v1226
        %v1317 = vpop.f32.mrb[0].mxu0
        %v1318 = vadd.f32 %v1100, %v1317
        %v1319 = vpop.f32.mrb[0].mxu0
        %v1320 = vpop.f32.mrb[0].mxu0
        %v1321 = vadd.f32 %v1103, %v1320
        %v1322 = vpop.f32.mrb[0].mxu0
        %1323 = vmatprep.mubr.bf16.mxu0 0
        %1324 = vmatmul.mubr.bf16.gmra.mrb[0].mxu0 %v1229
        %v1325 = vpop.f32.mrb[0].mxu0
        %v1326 = vadd.f32 %v1108, %v1325
        %v1327 = vpop.f32.mrb[0].mxu0
        %v1328 = vpop.f32.mrb[0].mxu0
        %v1329 = vadd.f32 %v1111, %v1328
        %v1330 = vpop.f32.mrb[0].mxu0
        %1331 = vmatprep.mubr.bf16.mxu0 0
        %1332 = vmatmul.mubr.bf16.gmra.mrb[0].mxu0 %v1232
        %v1333 = vpop.f32.mrb[0].mxu0
        %v1334 = vadd.f32 %v1116, %v1333
        %v1335 = vpop.f32.mrb[0].mxu0
        %v1336 = vpop.f32.mrb[0].mxu0
        %v1337 = vadd.f32 %v1119, %v1336
        %v1338 = vpop.f32.mrb[0].mxu0
        %1339 = vmatprep.mubr.bf16.mxu0 0
        %1340 = vmatmul.mubr.bf16.gmra.mrb[0].mxu0 %v1235
        %v1341 = vpop.f32.mrb[0].mxu0
        %v1342 = vadd.f32 %v1124, %v1341
        %v1343 = vpop.f32.mrb[0].mxu0
        %v1344 = vpop.f32.mrb[0].mxu0
        %v1345 = vadd.f32 %v1127, %v1344
        %v1346 = vpop.f32.mrb[0].mxu0
        %1347 = vmatprep.mubr.bf16.mxu0 0
        %1348 = vmatmul.mubr.bf16.gmra.mrb[0].mxu0 %v1238
        %v1349 = vpop.f32.mrb[0].mxu0
        %v1350 = vadd.f32 %v1132, %v1349
        %v1351 = vpop.f32.mrb[0].mxu0
        %v1352 = vpop.f32.mrb[0].mxu0
        %v1353 = vadd.f32 %v1135, %v1352
        %v1354 = vpop.f32.mrb[0].mxu0
        %1355 = vmatprep.mubr.bf16.mxu0 0
        %1356 = vmatmul.mubr.bf16.gmra.mrb[0].mxu0 %v1241
        %v1357 = vpop.f32.mrb[0].mxu0
        %v1358 = vadd.f32 %v1140, %v1357
        %v1359 = vpop.f32.mrb[0].mxu0
        %v1360 = vpop.f32.mrb[0].mxu0
        %v1361 = vadd.f32 %v1143, %v1360
        %v1362 = vpop.f32.mrb[0].mxu0
        %1363 = vmatprep.mubr.bf16.mxu0 0
        %1364 = vmatmul.mubr.bf16.gmra.mrb[0].mxu0 %v1244
        %v1365 = vpop.f32.mrb[0].mxu0
        %v1366 = vadd.f32 %v1148, %v1365
        %v1367 = vpop.f32.mrb[0].mxu0
        %v1368 = vpop.f32.mrb[0].mxu0
        %v1369 = vadd.f32 %v1151, %v1368
        %v1370 = vpop.f32.mrb[0].mxu0
        %1371 = vmatprep.mubr.bf16.mxu0 0
        %1372 = vmatmul.mubr.bf16.gmra.mrb[0].mxu0 %v1247
        %v1373 = vpop.f32.mrb[0].mxu0
        %v1374 = vadd.f32 %v1156, %v1373
        %v1375 = vpop.f32.mrb[0].mxu0
        %v1376 = vpop.f32.mrb[0].mxu0
        %v1377 = vadd.f32 %v1159, %v1376
        %v1378 = vpop.f32.mrb[0].mxu0
        %1379 = vmatprep.mubr.bf16.mxu0 0
        %1380 = vmatmul.mubr.bf16.gmra.mrb[0].mxu0 %v1250
        %v1381 = vpop.f32.mrb[0].mxu0
        %v1382 = vadd.f32 %v1164, %v1381
        %v1383 = vpop.f32.mrb[0].mxu0
        %v1384 = vpop.f32.mrb[0].mxu0
        %v1385 = vadd.f32 %v1167, %v1384
        %v1386 = vpop.f32.mrb[0].mxu0
        %1387 = vmatprep.mubr.bf16.mxu0 0
        %1388 = vmatmul.mubr.bf16.gmra.mrb[0].mxu0 %v1253
        %v1389 = vpop.f32.mrb[0].mxu0
        %v1390 = vadd.f32 %v1172, %v1389
        %v1391 = vpop.f32.mrb[0].mxu0
        %v1392 = vpop.f32.mrb[0].mxu0
        %v1393 = vadd.f32 %v1175, %v1392
        %v1394 = vpop.f32.mrb[0].mxu0
        %1395 = vmatprep.mubr.bf16.mxu0 0
        %1396 = vmatmul.mubr.bf16.gmra.mrb[0].mxu0 %v1256
        %v1397 = vpop.f32.mrb[0].mxu0
        %v1398 = vadd.f32 %v1180, %v1397
        %v1399 = vpop.f32.mrb[0].mxu0
        %v1400 = vpop.f32.mrb[0].mxu0
        %v1401 = vadd.f32 %v1183, %v1400
        %v1402 = vpop.f32.mrb[0].mxu0
        %1403 = vmatprep.mubr.bf16.mxu0 0
        %1404 = vmatmul.mubr.bf16.gmra.mrb[0].mxu0 %v1259
        %v1405 = vpop.f32.mrb[0].mxu0
        %v1406 = vadd.f32 %v1188, %v1405
        %v1407 = vpop.f32.mrb[0].mxu0
        %v1408 = vpop.f32.mrb[0].mxu0
        %v1409 = vadd.f32 %v1191, %v1408
        %v1410 = vpop.f32.mrb[0].mxu0
        %1411 = vmatprep.mubr.bf16.mxu0 0
        %1412 = vmatmul.mubr.bf16.gmra.mrb[0].mxu0 %v1262
        %v1413 = vpop.f32.mrb[0].mxu0
        %v1414 = vadd.f32 %v1196, %v1413
        %v1415 = vpop.f32.mrb[0].mxu0
        %v1416 = vpop.f32.mrb[0].mxu0
        %v1417 = vadd.f32 %v1199, %v1416
        %v1418 = vpop.f32.mrb[0].mxu0
        %1419 = vmatprep.mubr.bf16.mxu0 0
        %1420 = vmatmul.mubr.bf16.gmra.mrb[0].mxu0 %v1265
        %v1421 = vpop.f32.mrb[0].mxu0
        %v1422 = vadd.f32 %v1204, %v1421
        %v1423 = vpop.f32.mrb[0].mxu0
        %v1424 = vpop.f32.mrb[0].mxu0
        %v1425 = vadd.f32 %v1207, %v1424
        %v1426 = vpop.f32.mrb[0].mxu0
        %1427 = vdwg.mxu0
        %s1428 = scalar_lea.vmem [#allocation5], 32
        %v1429 = vld [vmem:[%s1428] sm:$0xf]
        %v1430 = vld [vmem:[%s1428 + $0x4] sm:$0xf]
        %v1431 = vld [vmem:[%s1428 + $0x8] sm:$0xf]
        %v1432 = vld [vmem:[%s1428 + $0xc] sm:$0xf]
        %v1437 = vunpack.c.l.b16 %v1429
        %v1438 = vunpack.c.l.b16 %v1430
        %v1439 = vunpack.c.l.b16 %v1431
        %v1440 = vunpack.c.l.b16 %v1432
        %v1441 = vpack.c.b16 %v1438, %v1437
        %v1442 = vpack.c.b16 %v1440, %v1439
        %v1446 = vsel %vm1000, %v963, 0
        %v1449 = vsel %vm1000, %v964, 0
        %v1452 = vsel %vm1000, %v965, 0
        %v1455 = vsel %vm1000, %v966, 0
        %v1458 = vsel %vm1000, %v967, 0
        %v1461 = vsel %vm1000, %v968, 0
        %v1464 = vsel %vm1000, %v969, 0
        %v1467 = vsel %vm1000, %v970, 0
        %v1470 = vsel %vm1000, %v971, 0
        %v1473 = vsel %vm1000, %v972, 0
        %v1476 = vsel %vm1000, %v973, 0
        %v1479 = vsel %vm1000, %v974, 0
        %v1482 = vsel %vm1000, %v975, 0
        %v1485 = vsel %vm1000, %v976, 0
        %v1488 = vsel %vm1000, %v977, 0
        %1490 = vmatprep.subr.bf16.mxu0 0
        %1491 = vmatpush1.bf16.msra.mxu0 %v1441
        %1492 = vmatprep.subr.bf16.mxu0 0
        %1493 = vmatpush1.bf16.msra.mxu0 %v1442
        %1494 = vmatprep.subr.bf16.mxu0 0
        %1495 = vmatpush1.bf16.msra.mxu0 0
        %1496 = vmatprep.subr.bf16.mxu0 0
        %1497 = vmatpush1.bf16.msra.mxu0 0
        %1498 = vmatprep.subr.bf16.mxu0 0
        %1499 = vmatpush1.bf16.msra.mxu0 0
        %1500 = vmatprep.subr.bf16.mxu0 0
        %1501 = vmatpush1.bf16.msra.mxu0 0
        %1502 = vmatprep.subr.bf16.mxu0 0
        %1503 = vmatpush1.bf16.msra.mxu0 0
        %1504 = vmatprep.subr.bf16.mxu0 0
        %1505 = vmatpush1.bf16.msra.mxu0 0
        %1506 = vmatprep.subr.bf16.mxu0 0
        %1507 = vmatpush1.bf16.msra.mxu0 0
        %1508 = vmatprep.subr.bf16.mxu0 0
        %1509 = vmatpush1.bf16.msra.mxu0 0
        %1510 = vmatprep.subr.bf16.mxu0 0
        %1511 = vmatpush1.bf16.msra.mxu0 0
        %1512 = vmatprep.subr.bf16.mxu0 0
        %1513 = vmatpush1.bf16.msra.mxu0 0
        %1514 = vmatprep.subr.bf16.mxu0 0
        %1515 = vmatpush1.bf16.msra.mxu0 0
        %1516 = vmatprep.subr.bf16.mxu0 0
        %1517 = vmatpush1.bf16.msra.mxu0 0
        %1518 = vmatprep.subr.bf16.mxu0 0
        %1519 = vmatpush1.bf16.msra.mxu0 0
        %1520 = vmatprep.subr.bf16.mxu0 0
        %1521 = vmatpush1.bf16.msra.mxu0 0
        %1522 = vmatprep.mubr.bf16.mxu0 0
        %1523 = vmatmul.mubr.bf16.gmra.mrb[0].mxu0 %v1002
        %v1524 = vpop.f32.mrb[0].mxu0
        %v1525 = vadd.f32 0.0, %v1524
        %v1526 = vpop.f32.mrb[0].mxu0
        %v1527 = vpop.f32.mrb[0].mxu0
        %v1528 = vadd.f32 0.0, %v1527
        %v1529 = vpop.f32.mrb[0].mxu0
        %1530 = vmatprep.mubr.bf16.mxu0 0
        %1531 = vmatmul.mubr.bf16.gmra.mrb[0].mxu0 %v1446
        %v1532 = vpop.f32.mrb[0].mxu0
        %v1533 = vadd.f32 0.0, %v1532
        %v1534 = vpop.f32.mrb[0].mxu0
        %v1535 = vpop.f32.mrb[0].mxu0
        %v1536 = vadd.f32 0.0, %v1535
        %v1537 = vpop.f32.mrb[0].mxu0
        %1538 = vmatprep.mubr.bf16.mxu0 0
        %1539 = vmatmul.mubr.bf16.gmra.mrb[0].mxu0 %v1449
        %v1540 = vpop.f32.mrb[0].mxu0
        %v1541 = vadd.f32 0.0, %v1540
        %v1542 = vpop.f32.mrb[0].mxu0
        %v1543 = vpop.f32.mrb[0].mxu0
        %v1544 = vadd.f32 0.0, %v1543
        %v1545 = vpop.f32.mrb[0].mxu0
        %1546 = vmatprep.mubr.bf16.mxu0 0
        %1547 = vmatmul.mubr.bf16.gmra.mrb[0].mxu0 %v1452
        %v1548 = vpop.f32.mrb[0].mxu0
        %v1549 = vadd.f32 0.0, %v1548
        %v1550 = vpop.f32.mrb[0].mxu0
        %v1551 = vpop.f32.mrb[0].mxu0
        %v1552 = vadd.f32 0.0, %v1551
        %v1553 = vpop.f32.mrb[0].mxu0
        %1554 = vmatprep.mubr.bf16.mxu0 0
        %1555 = vmatmul.mubr.bf16.gmra.mrb[0].mxu0 %v1455
        %v1556 = vpop.f32.mrb[0].mxu0
        %v1557 = vadd.f32 0.0, %v1556
        %v1558 = vpop.f32.mrb[0].mxu0
        %v1559 = vpop.f32.mrb[0].mxu0
        %v1560 = vadd.f32 0.0, %v1559
        %v1561 = vpop.f32.mrb[0].mxu0
        %1562 = vmatprep.mubr.bf16.mxu0 0
        %1563 = vmatmul.mubr.bf16.gmra.mrb[0].mxu0 %v1458
        %v1564 = vpop.f32.mrb[0].mxu0
        %v1565 = vadd.f32 0.0, %v1564
        %v1566 = vpop.f32.mrb[0].mxu0
        %v1567 = vpop.f32.mrb[0].mxu0
        %v1568 = vadd.f32 0.0, %v1567
        %v1569 = vpop.f32.mrb[0].mxu0
        %1570 = vmatprep.mubr.bf16.mxu0 0
        %1571 = vmatmul.mubr.bf16.gmra.mrb[0].mxu0 %v1461
        %v1572 = vpop.f32.mrb[0].mxu0
        %v1573 = vadd.f32 0.0, %v1572
        %v1574 = vpop.f32.mrb[0].mxu0
        %v1575 = vpop.f32.mrb[0].mxu0
        %v1576 = vadd.f32 0.0, %v1575
        %v1577 = vpop.f32.mrb[0].mxu0
        %1578 = vmatprep.mubr.bf16.mxu0 0
        %1579 = vmatmul.mubr.bf16.gmra.mrb[0].mxu0 %v1464
        %v1580 = vpop.f32.mrb[0].mxu0
        %v1581 = vadd.f32 0.0, %v1580
        %v1582 = vpop.f32.mrb[0].mxu0
        %v1583 = vpop.f32.mrb[0].mxu0
        %v1584 = vadd.f32 0.0, %v1583
        %v1585 = vpop.f32.mrb[0].mxu0
        %1586 = vmatprep.mubr.bf16.mxu0 0
        %1587 = vmatmul.mubr.bf16.gmra.mrb[0].mxu0 %v1467
        %v1588 = vpop.f32.mrb[0].mxu0
        %v1589 = vadd.f32 0.0, %v1588
        %v1590 = vpop.f32.mrb[0].mxu0
        %v1591 = vpop.f32.mrb[0].mxu0
        %v1592 = vadd.f32 0.0, %v1591
        %v1593 = vpop.f32.mrb[0].mxu0
        %1594 = vmatprep.mubr.bf16.mxu0 0
        %1595 = vmatmul.mubr.bf16.gmra.mrb[0].mxu0 %v1470
        %v1596 = vpop.f32.mrb[0].mxu0
        %v1597 = vadd.f32 0.0, %v1596
        %v1598 = vpop.f32.mrb[0].mxu0
        %v1599 = vpop.f32.mrb[0].mxu0
        %v1600 = vadd.f32 0.0, %v1599
        %v1601 = vpop.f32.mrb[0].mxu0
        %1602 = vmatprep.mubr.bf16.mxu0 0
        %1603 = vmatmul.mubr.bf16.gmra.mrb[0].mxu0 %v1473
        %v1604 = vpop.f32.mrb[0].mxu0
        %v1605 = vadd.f32 0.0, %v1604
        %v1606 = vpop.f32.mrb[0].mxu0
        %v1607 = vpop.f32.mrb[0].mxu0
        %v1608 = vadd.f32 0.0, %v1607
        %v1609 = vpop.f32.mrb[0].mxu0
        %1610 = vmatprep.mubr.bf16.mxu0 0
        %1611 = vmatmul.mubr.bf16.gmra.mrb[0].mxu0 %v1476
        %v1612 = vpop.f32.mrb[0].mxu0
        %v1613 = vadd.f32 0.0, %v1612
        %v1614 = vpop.f32.mrb[0].mxu0
        %v1615 = vpop.f32.mrb[0].mxu0
        %v1616 = vadd.f32 0.0, %v1615
        %v1617 = vpop.f32.mrb[0].mxu0
        %1618 = vmatprep.mubr.bf16.mxu0 0
        %1619 = vmatmul.mubr.bf16.gmra.mrb[0].mxu0 %v1479
        %v1620 = vpop.f32.mrb[0].mxu0
        %v1621 = vadd.f32 0.0, %v1620
        %v1622 = vpop.f32.mrb[0].mxu0
        %v1623 = vpop.f32.mrb[0].mxu0
        %v1624 = vadd.f32 0.0, %v1623
        %v1625 = vpop.f32.mrb[0].mxu0
        %1626 = vmatprep.mubr.bf16.mxu0 0
        %1627 = vmatmul.mubr.bf16.gmra.mrb[0].mxu0 %v1482
        %v1628 = vpop.f32.mrb[0].mxu0
        %v1629 = vadd.f32 0.0, %v1628
        %v1630 = vpop.f32.mrb[0].mxu0
        %v1631 = vpop.f32.mrb[0].mxu0
        %v1632 = vadd.f32 0.0, %v1631
        %v1633 = vpop.f32.mrb[0].mxu0
        %1634 = vmatprep.mubr.bf16.mxu0 0
        %1635 = vmatmul.mubr.bf16.gmra.mrb[0].mxu0 %v1485
        %v1636 = vpop.f32.mrb[0].mxu0
        %v1637 = vadd.f32 0.0, %v1636
        %v1638 = vpop.f32.mrb[0].mxu0
        %v1639 = vpop.f32.mrb[0].mxu0
        %v1640 = vadd.f32 0.0, %v1639
        %v1641 = vpop.f32.mrb[0].mxu0
        %1642 = vmatprep.mubr.bf16.mxu0 0
        %1643 = vmatmul.mubr.bf16.gmra.mrb[0].mxu0 %v1488
        %v1644 = vpop.f32.mrb[0].mxu0
        %v1645 = vadd.f32 0.0, %v1644
        %v1646 = vpop.f32.mrb[0].mxu0
        %v1647 = vpop.f32.mrb[0].mxu0
        %v1648 = vadd.f32 0.0, %v1647
        %v1649 = vpop.f32.mrb[0].mxu0
        %1650 = vdwg.mxu0
        %v1651 = vadd.f32 %v1302, %v1525
        %v1652 = vadd.f32 %v1305, %v1528
        %v1653 = vadd.f32 %v1310, %v1533
        %v1654 = vadd.f32 %v1313, %v1536
        %v1655 = vadd.f32 %v1318, %v1541
        %v1656 = vadd.f32 %v1321, %v1544
        %v1657 = vadd.f32 %v1326, %v1549
        %v1658 = vadd.f32 %v1329, %v1552
        %v1659 = vadd.f32 %v1334, %v1557
        %v1660 = vadd.f32 %v1337, %v1560
        %v1661 = vadd.f32 %v1342, %v1565
        %v1662 = vadd.f32 %v1345, %v1568
        %v1663 = vadd.f32 %v1350, %v1573
        %v1664 = vadd.f32 %v1353, %v1576
        %v1665 = vadd.f32 %v1358, %v1581
        %v1666 = vadd.f32 %v1361, %v1584
        %v1667 = vadd.f32 %v1366, %v1589
        %v1668 = vadd.f32 %v1369, %v1592
        %v1669 = vadd.f32 %v1374, %v1597
        %v1670 = vadd.f32 %v1377, %v1600
        %v1671 = vadd.f32 %v1382, %v1605
        %v1672 = vadd.f32 %v1385, %v1608
        %v1673 = vadd.f32 %v1390, %v1613
        %v1674 = vadd.f32 %v1393, %v1616
        %v1675 = vadd.f32 %v1398, %v1621
        %v1676 = vadd.f32 %v1401, %v1624
        %v1677 = vadd.f32 %v1406, %v1629
        %v1678 = vadd.f32 %v1409, %v1632
        %v1679 = vadd.f32 %v1414, %v1637
        %v1680 = vadd.f32 %v1417, %v1640
        %v1681 = vadd.f32 %v1422, %v1645
        %v1682 = vadd.f32 %v1425, %v1648
        %s1683 = scalar_lea.vmem [#allocation5], 48
        %v1684 = vld [vmem:[%s1683] sm:$0xf]
        %v1685 = vld [vmem:[%s1683 + $0x4] sm:$0xf]
        %v1686 = vld [vmem:[%s1683 + $0x8] sm:$0xf]
        %v1687 = vld [vmem:[%s1683 + $0xc] sm:$0xf]
        %v1692 = vunpack.c.l.b16 %v1684
        %v1693 = vunpack.c.l.b16 %v1685
        %v1694 = vunpack.c.l.b16 %v1686
        %v1695 = vunpack.c.l.b16 %v1687
        %v1696 = vpack.c.b16 %v1693, %v1692
        %v1697 = vpack.c.b16 %v1695, %v1694
        %v1701 = vsel %vm1000, %v946, 0
        %1703 = vmatprep.subr.bf16.mxu0 0
        %1704 = vmatpush1.bf16.msra.mxu0 %v1696
        %1705 = vmatprep.subr.bf16.mxu0 0
        %1706 = vmatpush1.bf16.msra.mxu0 %v1697
        %1707 = vmatprep.subr.bf16.mxu0 0
        %1708 = vmatpush1.bf16.msra.mxu0 0
        %1709 = vmatprep.subr.bf16.mxu0 0
        %1710 = vmatpush1.bf16.msra.mxu0 0
        %1711 = vmatprep.subr.bf16.mxu0 0
        %1712 = vmatpush1.bf16.msra.mxu0 0
        %1713 = vmatprep.subr.bf16.mxu0 0
        %1714 = vmatpush1.bf16.msra.mxu0 0
        %1715 = vmatprep.subr.bf16.mxu0 0
        %1716 = vmatpush1.bf16.msra.mxu0 0
        %1717 = vmatprep.subr.bf16.mxu0 0
        %1718 = vmatpush1.bf16.msra.mxu0 0
        %1719 = vmatprep.subr.bf16.mxu0 0
        %1720 = vmatpush1.bf16.msra.mxu0 0
        %1721 = vmatprep.subr.bf16.mxu0 0
        %1722 = vmatpush1.bf16.msra.mxu0 0
        %1723 = vmatprep.subr.bf16.mxu0 0
        %1724 = vmatpush1.bf16.msra.mxu0 0
        %1725 = vmatprep.subr.bf16.mxu0 0
        %1726 = vmatpush1.bf16.msra.mxu0 0
        %1727 = vmatprep.subr.bf16.mxu0 0
        %1728 = vmatpush1.bf16.msra.mxu0 0
        %1729 = vmatprep.subr.bf16.mxu0 0
        %1730 = vmatpush1.bf16.msra.mxu0 0
        %1731 = vmatprep.subr.bf16.mxu0 0
        %1732 = vmatpush1.bf16.msra.mxu0 0
        %1733 = vmatprep.subr.bf16.mxu0 0
        %1734 = vmatpush1.bf16.msra.mxu0 0
        %1735 = vmatprep.mubr.bf16.mxu0 0
        %1736 = vmatmul.mubr.bf16.gmra.mrb[0].mxu0 %v1223
        %v1737 = vpop.f32.mrb[0].mxu0
        %v1738 = vadd.f32 0.0, %v1737
        %v1739 = vpop.f32.mrb[0].mxu0
        %v1740 = vpop.f32.mrb[0].mxu0
        %v1741 = vadd.f32 0.0, %v1740
        %v1742 = vpop.f32.mrb[0].mxu0
        %1743 = vmatprep.mubr.bf16.mxu0 0
        %1744 = vmatmul.mubr.bf16.gmra.mrb[0].mxu0 %v1226
        %v1745 = vpop.f32.mrb[0].mxu0
        %v1746 = vadd.f32 0.0, %v1745
        %v1747 = vpop.f32.mrb[0].mxu0
        %v1748 = vpop.f32.mrb[0].mxu0
        %v1749 = vadd.f32 0.0, %v1748
        %v1750 = vpop.f32.mrb[0].mxu0
        %1751 = vmatprep.mubr.bf16.mxu0 0
        %1752 = vmatmul.mubr.bf16.gmra.mrb[0].mxu0 %v1229
        %v1753 = vpop.f32.mrb[0].mxu0
        %v1754 = vadd.f32 0.0, %v1753
        %v1755 = vpop.f32.mrb[0].mxu0
        %v1756 = vpop.f32.mrb[0].mxu0
        %v1757 = vadd.f32 0.0, %v1756
        %v1758 = vpop.f32.mrb[0].mxu0
        %1759 = vmatprep.mubr.bf16.mxu0 0
        %1760 = vmatmul.mubr.bf16.gmra.mrb[0].mxu0 %v1232
        %v1761 = vpop.f32.mrb[0].mxu0
        %v1762 = vadd.f32 0.0, %v1761
        %v1763 = vpop.f32.mrb[0].mxu0
        %v1764 = vpop.f32.mrb[0].mxu0
        %v1765 = vadd.f32 0.0, %v1764
        %v1766 = vpop.f32.mrb[0].mxu0
        %1767 = vmatprep.mubr.bf16.mxu0 0
        %1768 = vmatmul.mubr.bf16.gmra.mrb[0].mxu0 %v1235
        %v1769 = vpop.f32.mrb[0].mxu0
        %v1770 = vadd.f32 0.0, %v1769
        %v1771 = vpop.f32.mrb[0].mxu0
        %v1772 = vpop.f32.mrb[0].mxu0
        %v1773 = vadd.f32 0.0, %v1772
        %v1774 = vpop.f32.mrb[0].mxu0
        %1775 = vmatprep.mubr.bf16.mxu0 0
        %1776 = vmatmul.mubr.bf16.gmra.mrb[0].mxu0 %v1238
        %v1777 = vpop.f32.mrb[0].mxu0
        %v1778 = vadd.f32 0.0, %v1777
        %v1779 = vpop.f32.mrb[0].mxu0
        %v1780 = vpop.f32.mrb[0].mxu0
        %v1781 = vadd.f32 0.0, %v1780
        %v1782 = vpop.f32.mrb[0].mxu0
        %1783 = vmatprep.mubr.bf16.mxu0 0
        %1784 = vmatmul.mubr.bf16.gmra.mrb[0].mxu0 %v1241
        %v1785 = vpop.f32.mrb[0].mxu0
        %v1786 = vadd.f32 0.0, %v1785
        %v1787 = vpop.f32.mrb[0].mxu0
        %v1788 = vpop.f32.mrb[0].mxu0
        %v1789 = vadd.f32 0.0, %v1788
        %v1790 = vpop.f32.mrb[0].mxu0
        %1791 = vmatprep.mubr.bf16.mxu0 0
        %1792 = vmatmul.mubr.bf16.gmra.mrb[0].mxu0 %v1244
        %v1793 = vpop.f32.mrb[0].mxu0
        %v1794 = vadd.f32 0.0, %v1793
        %v1795 = vpop.f32.mrb[0].mxu0
        %v1796 = vpop.f32.mrb[0].mxu0
        %v1797 = vadd.f32 0.0, %v1796
        %v1798 = vpop.f32.mrb[0].mxu0
        %1799 = vmatprep.mubr.bf16.mxu0 0
        %1800 = vmatmul.mubr.bf16.gmra.mrb[0].mxu0 %v1247
        %v1801 = vpop.f32.mrb[0].mxu0
        %v1802 = vadd.f32 0.0, %v1801
        %v1803 = vpop.f32.mrb[0].mxu0
        %v1804 = vpop.f32.mrb[0].mxu0
        %v1805 = vadd.f32 0.0, %v1804
        %v1806 = vpop.f32.mrb[0].mxu0
        %1807 = vmatprep.mubr.bf16.mxu0 0
        %1808 = vmatmul.mubr.bf16.gmra.mrb[0].mxu0 %v1250
        %v1809 = vpop.f32.mrb[0].mxu0
        %v1810 = vadd.f32 0.0, %v1809
        %v1811 = vpop.f32.mrb[0].mxu0
        %v1812 = vpop.f32.mrb[0].mxu0
        %v1813 = vadd.f32 0.0, %v1812
        %v1814 = vpop.f32.mrb[0].mxu0
        %1815 = vmatprep.mubr.bf16.mxu0 0
        %1816 = vmatmul.mubr.bf16.gmra.mrb[0].mxu0 %v1253
        %v1817 = vpop.f32.mrb[0].mxu0
        %v1818 = vadd.f32 0.0, %v1817
        %v1819 = vpop.f32.mrb[0].mxu0
        %v1820 = vpop.f32.mrb[0].mxu0
        %v1821 = vadd.f32 0.0, %v1820
        %v1822 = vpop.f32.mrb[0].mxu0
        %1823 = vmatprep.mubr.bf16.mxu0 0
        %1824 = vmatmul.mubr.bf16.gmra.mrb[0].mxu0 %v1256
        %v1825 = vpop.f32.mrb[0].mxu0
        %v1826 = vadd.f32 0.0, %v1825
        %v1827 = vpop.f32.mrb[0].mxu0
        %v1828 = vpop.f32.mrb[0].mxu0
        %v1829 = vadd.f32 0.0, %v1828
        %v1830 = vpop.f32.mrb[0].mxu0
        %1831 = vmatprep.mubr.bf16.mxu0 0
        %1832 = vmatmul.mubr.bf16.gmra.mrb[0].mxu0 %v1259
        %v1833 = vpop.f32.mrb[0].mxu0
        %v1834 = vadd.f32 0.0, %v1833
        %v1835 = vpop.f32.mrb[0].mxu0
        %v1836 = vpop.f32.mrb[0].mxu0
        %v1837 = vadd.f32 0.0, %v1836
        %v1838 = vpop.f32.mrb[0].mxu0
        %1839 = vmatprep.mubr.bf16.mxu0 0
        %1840 = vmatmul.mubr.bf16.gmra.mrb[0].mxu0 %v1262
        %v1841 = vpop.f32.mrb[0].mxu0
        %v1842 = vadd.f32 0.0, %v1841
        %v1843 = vpop.f32.mrb[0].mxu0
        %v1844 = vpop.f32.mrb[0].mxu0
        %v1845 = vadd.f32 0.0, %v1844
        %v1846 = vpop.f32.mrb[0].mxu0
        %1847 = vmatprep.mubr.bf16.mxu0 0
        %1848 = vmatmul.mubr.bf16.gmra.mrb[0].mxu0 %v1265
        %v1849 = vpop.f32.mrb[0].mxu0
        %v1850 = vadd.f32 0.0, %v1849
        %v1851 = vpop.f32.mrb[0].mxu0
        %v1852 = vpop.f32.mrb[0].mxu0
        %v1853 = vadd.f32 0.0, %v1852
        %v1854 = vpop.f32.mrb[0].mxu0
        %1855 = vmatprep.mubr.bf16.mxu0 0
        %1856 = vmatmul.mubr.bf16.gmra.mrb[0].mxu0 %v1701
        %v1857 = vpop.f32.mrb[0].mxu0
        %v1858 = vadd.f32 0.0, %v1857
        %v1859 = vpop.f32.mrb[0].mxu0
        %v1860 = vpop.f32.mrb[0].mxu0
        %v1861 = vadd.f32 0.0, %v1860
        %v1862 = vpop.f32.mrb[0].mxu0
        %1863 = vdwg.mxu0
        %v1864 = vadd.f32 %v1651, %v1738
        %v1865 = vadd.f32 %v1652, %v1741
        %v1866 = vadd.f32 %v1653, %v1746
        %v1867 = vadd.f32 %v1654, %v1749
        %v1868 = vadd.f32 %v1655, %v1754
        %v1869 = vadd.f32 %v1656, %v1757
        %v1870 = vadd.f32 %v1657, %v1762
        %v1871 = vadd.f32 %v1658, %v1765
        %v1872 = vadd.f32 %v1659, %v1770
        %v1873 = vadd.f32 %v1660, %v1773
        %v1874 = vadd.f32 %v1661, %v1778
        %v1875 = vadd.f32 %v1662, %v1781
        %v1876 = vadd.f32 %v1663, %v1786
        %v1877 = vadd.f32 %v1664, %v1789
        %v1878 = vadd.f32 %v1665, %v1794
        %v1879 = vadd.f32 %v1666, %v1797
        %v1880 = vadd.f32 %v1667, %v1802
        %v1881 = vadd.f32 %v1668, %v1805
        %v1882 = vadd.f32 %v1669, %v1810
        %v1883 = vadd.f32 %v1670, %v1813
        %v1884 = vadd.f32 %v1671, %v1818
        %v1885 = vadd.f32 %v1672, %v1821
        %v1886 = vadd.f32 %v1673, %v1826
        %v1887 = vadd.f32 %v1674, %v1829
        %v1888 = vadd.f32 %v1675, %v1834
        %v1889 = vadd.f32 %v1676, %v1837
        %v1890 = vadd.f32 %v1677, %v1842
        %v1891 = vadd.f32 %v1678, %v1845
        %v1892 = vadd.f32 %v1679, %v1850
        %v1893 = vadd.f32 %v1680, %v1853
        %v1894 = vadd.f32 %v1681, %v1858
        %v1895 = vadd.f32 %v1682, %v1861
        %s1896 = scalar_lea.vmem [#allocation5], 64
        %v1897 = vld [vmem:[%s1896] sm:$0xf]
        %v1898 = vld [vmem:[%s1896 + $0x4] sm:$0xf]
        %v1899 = vld [vmem:[%s1896 + $0x8] sm:$0xf]
        %v1900 = vld [vmem:[%s1896 + $0xc] sm:$0xf]
        %v1905 = vunpack.c.l.b16 %v1897
        %v1906 = vunpack.c.l.b16 %v1898
        %v1907 = vunpack.c.l.b16 %v1899
        %v1908 = vunpack.c.l.b16 %v1900
        %v1909 = vpack.c.b16 %v1906, %v1905
        %v1910 = vpack.c.b16 %v1908, %v1907
        %v1914 = vsel %vm1000, %v962, 0
        %1916 = vmatprep.subr.bf16.mxu0 0
        %1917 = vmatpush1.bf16.msra.mxu0 %v1909
        %1918 = vmatprep.subr.bf16.mxu0 0
        %1919 = vmatpush1.bf16.msra.mxu0 %v1910
        %1920 = vmatprep.subr.bf16.mxu0 0
        %1921 = vmatpush1.bf16.msra.mxu0 0
        %1922 = vmatprep.subr.bf16.mxu0 0
        %1923 = vmatpush1.bf16.msra.mxu0 0
        %1924 = vmatprep.subr.bf16.mxu0 0
        %1925 = vmatpush1.bf16.msra.mxu0 0
        %1926 = vmatprep.subr.bf16.mxu0 0
        %1927 = vmatpush1.bf16.msra.mxu0 0
        %1928 = vmatprep.subr.bf16.mxu0 0
        %1929 = vmatpush1.bf16.msra.mxu0 0
        %1930 = vmatprep.subr.bf16.mxu0 0
        %1931 = vmatpush1.bf16.msra.mxu0 0
        %1932 = vmatprep.subr.bf16.mxu0 0
        %1933 = vmatpush1.bf16.msra.mxu0 0
        %1934 = vmatprep.subr.bf16.mxu0 0
        %1935 = vmatpush1.bf16.msra.mxu0 0
        %1936 = vmatprep.subr.bf16.mxu0 0
        %1937 = vmatpush1.bf16.msra.mxu0 0
        %1938 = vmatprep.subr.bf16.mxu0 0
        %1939 = vmatpush1.bf16.msra.mxu0 0
        %1940 = vmatprep.subr.bf16.mxu0 0
        %1941 = vmatpush1.bf16.msra.mxu0 0
        %1942 = vmatprep.subr.bf16.mxu0 0
        %1943 = vmatpush1.bf16.msra.mxu0 0
        %1944 = vmatprep.subr.bf16.mxu0 0
        %1945 = vmatpush1.bf16.msra.mxu0 0
        %1946 = vmatprep.subr.bf16.mxu0 0
        %1947 = vmatpush1.bf16.msra.mxu0 0
        %1948 = vmatprep.mubr.bf16.mxu0 0
        %1949 = vmatmul.mubr.bf16.gmra.mrb[0].mxu0 %v1005
        %v1950 = vpop.f32.mrb[0].mxu0
        %v1951 = vadd.f32 0.0, %v1950
        %v1952 = vpop.f32.mrb[0].mxu0
        %v1953 = vpop.f32.mrb[0].mxu0
        %v1954 = vadd.f32 0.0, %v1953
        %v1955 = vpop.f32.mrb[0].mxu0
        %1956 = vmatprep.mubr.bf16.mxu0 0
        %1957 = vmatmul.mubr.bf16.gmra.mrb[0].mxu0 %v1008
        %v1958 = vpop.f32.mrb[0].mxu0
        %v1959 = vadd.f32 0.0, %v1958
        %v1960 = vpop.f32.mrb[0].mxu0
        %v1961 = vpop.f32.mrb[0].mxu0
        %v1962 = vadd.f32 0.0, %v1961
        %v1963 = vpop.f32.mrb[0].mxu0
        %1964 = vmatprep.mubr.bf16.mxu0 0
        %1965 = vmatmul.mubr.bf16.gmra.mrb[0].mxu0 %v1011
        %v1966 = vpop.f32.mrb[0].mxu0
        %v1967 = vadd.f32 0.0, %v1966
        %v1968 = vpop.f32.mrb[0].mxu0
        %v1969 = vpop.f32.mrb[0].mxu0
        %v1970 = vadd.f32 0.0, %v1969
        %v1971 = vpop.f32.mrb[0].mxu0
        %1972 = vmatprep.mubr.bf16.mxu0 0
        %1973 = vmatmul.mubr.bf16.gmra.mrb[0].mxu0 %v1014
        %v1974 = vpop.f32.mrb[0].mxu0
        %v1975 = vadd.f32 0.0, %v1974
        %v1976 = vpop.f32.mrb[0].mxu0
        %v1977 = vpop.f32.mrb[0].mxu0
        %v1978 = vadd.f32 0.0, %v1977
        %v1979 = vpop.f32.mrb[0].mxu0
        %1980 = vmatprep.mubr.bf16.mxu0 0
        %1981 = vmatmul.mubr.bf16.gmra.mrb[0].mxu0 %v1017
        %v1982 = vpop.f32.mrb[0].mxu0
        %v1983 = vadd.f32 0.0, %v1982
        %v1984 = vpop.f32.mrb[0].mxu0
        %v1985 = vpop.f32.mrb[0].mxu0
        %v1986 = vadd.f32 0.0, %v1985
        %v1987 = vpop.f32.mrb[0].mxu0
        %1988 = vmatprep.mubr.bf16.mxu0 0
        %1989 = vmatmul.mubr.bf16.gmra.mrb[0].mxu0 %v1020
        %v1990 = vpop.f32.mrb[0].mxu0
        %v1991 = vadd.f32 0.0, %v1990
        %v1992 = vpop.f32.mrb[0].mxu0
        %v1993 = vpop.f32.mrb[0].mxu0
        %v1994 = vadd.f32 0.0, %v1993
        %v1995 = vpop.f32.mrb[0].mxu0
        %1996 = vmatprep.mubr.bf16.mxu0 0
        %1997 = vmatmul.mubr.bf16.gmra.mrb[0].mxu0 %v1023
        %v1998 = vpop.f32.mrb[0].mxu0
        %v1999 = vadd.f32 0.0, %v1998
        %v2000 = vpop.f32.mrb[0].mxu0
        %v2001 = vpop.f32.mrb[0].mxu0
        %v2002 = vadd.f32 0.0, %v2001
        %v2003 = vpop.f32.mrb[0].mxu0
        %2004 = vmatprep.mubr.bf16.mxu0 0
        %2005 = vmatmul.mubr.bf16.gmra.mrb[0].mxu0 %v1026
        %v2006 = vpop.f32.mrb[0].mxu0
        %v2007 = vadd.f32 0.0, %v2006
        %v2008 = vpop.f32.mrb[0].mxu0
        %v2009 = vpop.f32.mrb[0].mxu0
        %v2010 = vadd.f32 0.0, %v2009
        %v2011 = vpop.f32.mrb[0].mxu0
        %2012 = vmatprep.mubr.bf16.mxu0 0
        %2013 = vmatmul.mubr.bf16.gmra.mrb[0].mxu0 %v1029
        %v2014 = vpop.f32.mrb[0].mxu0
        %v2015 = vadd.f32 0.0, %v2014
        %v2016 = vpop.f32.mrb[0].mxu0
        %v2017 = vpop.f32.mrb[0].mxu0
        %v2018 = vadd.f32 0.0, %v2017
        %v2019 = vpop.f32.mrb[0].mxu0
        %2020 = vmatprep.mubr.bf16.mxu0 0
        %2021 = vmatmul.mubr.bf16.gmra.mrb[0].mxu0 %v1032
        %v2022 = vpop.f32.mrb[0].mxu0
        %v2023 = vadd.f32 0.0, %v2022
        %v2024 = vpop.f32.mrb[0].mxu0
        %v2025 = vpop.f32.mrb[0].mxu0
        %v2026 = vadd.f32 0.0, %v2025
        %v2027 = vpop.f32.mrb[0].mxu0
        %2028 = vmatprep.mubr.bf16.mxu0 0
        %2029 = vmatmul.mubr.bf16.gmra.mrb[0].mxu0 %v1035
        %v2030 = vpop.f32.mrb[0].mxu0
        %v2031 = vadd.f32 0.0, %v2030
        %v2032 = vpop.f32.mrb[0].mxu0
        %v2033 = vpop.f32.mrb[0].mxu0
        %v2034 = vadd.f32 0.0, %v2033
        %v2035 = vpop.f32.mrb[0].mxu0
        %2036 = vmatprep.mubr.bf16.mxu0 0
        %2037 = vmatmul.mubr.bf16.gmra.mrb[0].mxu0 %v1038
        %v2038 = vpop.f32.mrb[0].mxu0
        %v2039 = vadd.f32 0.0, %v2038
        %v2040 = vpop.f32.mrb[0].mxu0
        %v2041 = vpop.f32.mrb[0].mxu0
        %v2042 = vadd.f32 0.0, %v2041
        %v2043 = vpop.f32.mrb[0].mxu0
        %2044 = vmatprep.mubr.bf16.mxu0 0
        %2045 = vmatmul.mubr.bf16.gmra.mrb[0].mxu0 %v1041
        %v2046 = vpop.f32.mrb[0].mxu0
        %v2047 = vadd.f32 0.0, %v2046
        %v2048 = vpop.f32.mrb[0].mxu0
        %v2049 = vpop.f32.mrb[0].mxu0
        %v2050 = vadd.f32 0.0, %v2049
        %v2051 = vpop.f32.mrb[0].mxu0
        %2052 = vmatprep.mubr.bf16.mxu0 0
        %2053 = vmatmul.mubr.bf16.gmra.mrb[0].mxu0 %v1044
        %v2054 = vpop.f32.mrb[0].mxu0
        %v2055 = vadd.f32 0.0, %v2054
        %v2056 = vpop.f32.mrb[0].mxu0
        %v2057 = vpop.f32.mrb[0].mxu0
        %v2058 = vadd.f32 0.0, %v2057
        %v2059 = vpop.f32.mrb[0].mxu0
        %2060 = vmatprep.mubr.bf16.mxu0 0
        %2061 = vmatmul.mubr.bf16.gmra.mrb[0].mxu0 %v1047
        %v2062 = vpop.f32.mrb[0].mxu0
        %v2063 = vadd.f32 0.0, %v2062
        %v2064 = vpop.f32.mrb[0].mxu0
        %v2065 = vpop.f32.mrb[0].mxu0
        %v2066 = vadd.f32 0.0, %v2065
        %v2067 = vpop.f32.mrb[0].mxu0
        %2068 = vmatprep.mubr.bf16.mxu0 0
        %2069 = vmatmul.mubr.bf16.gmra.mrb[0].mxu0 %v1914
        %v2070 = vpop.f32.mrb[0].mxu0
        %v2071 = vadd.f32 0.0, %v2070
        %v2072 = vpop.f32.mrb[0].mxu0
        %v2073 = vpop.f32.mrb[0].mxu0
        %v2074 = vadd.f32 0.0, %v2073
        %v2075 = vpop.f32.mrb[0].mxu0
        %2076 = vdwg.mxu0
        %v2077 = vadd.f32 %v1864, %v1951
        %v2078 = vadd.f32 %v1865, %v1954
        %v2079 = vadd.f32 %v1866, %v1959
        %v2080 = vadd.f32 %v1867, %v1962
        %v2081 = vadd.f32 %v1868, %v1967
        %v2082 = vadd.f32 %v1869, %v1970
        %v2083 = vadd.f32 %v1870, %v1975
        %v2084 = vadd.f32 %v1871, %v1978
        %v2085 = vadd.f32 %v1872, %v1983
        %v2086 = vadd.f32 %v1873, %v1986
        %v2087 = vadd.f32 %v1874, %v1991
        %v2088 = vadd.f32 %v1875, %v1994
        %v2089 = vadd.f32 %v1876, %v1999
        %v2090 = vadd.f32 %v1877, %v2002
        %v2091 = vadd.f32 %v1878, %v2007
        %v2092 = vadd.f32 %v1879, %v2010
        %v2093 = vadd.f32 %v1880, %v2015
        %v2094 = vadd.f32 %v1881, %v2018
        %v2095 = vadd.f32 %v1882, %v2023
        %v2096 = vadd.f32 %v1883, %v2026
        %v2097 = vadd.f32 %v1884, %v2031
        %v2098 = vadd.f32 %v1885, %v2034
        %v2099 = vadd.f32 %v1886, %v2039
        %v2100 = vadd.f32 %v1887, %v2042
        %v2101 = vadd.f32 %v1888, %v2047
        %v2102 = vadd.f32 %v1889, %v2050
        %v2103 = vadd.f32 %v1890, %v2055
        %v2104 = vadd.f32 %v1891, %v2058
        %v2105 = vadd.f32 %v1892, %v2063
        %v2106 = vadd.f32 %v1893, %v2066
        %v2107 = vadd.f32 %v1894, %v2071
        %v2108 = vadd.f32 %v1895, %v2074
        %s2109 = scalar_lea.vmem [#allocation5], 80
        %v2110 = vld [vmem:[%s2109] sm:$0xf]
        %v2111 = vld [vmem:[%s2109 + $0x4] sm:$0xf]
        %v2112 = vld [vmem:[%s2109 + $0x8] sm:$0xf]
        %v2113 = vld [vmem:[%s2109 + $0xc] sm:$0xf]
        %v2118 = vunpack.c.l.b16 %v2110
        %v2119 = vunpack.c.l.b16 %v2111
        %v2120 = vunpack.c.l.b16 %v2112
        %v2121 = vunpack.c.l.b16 %v2113
        %v2122 = vpack.c.b16 %v2119, %v2118
        %v2123 = vpack.c.b16 %v2121, %v2120
        %v2127 = vsel %vm1000, %v978, 0
        %2129 = vmatprep.subr.bf16.mxu0 0
        %2130 = vmatpush1.bf16.msra.mxu0 %v2122
        %2131 = vmatprep.subr.bf16.mxu0 0
        %2132 = vmatpush1.bf16.msra.mxu0 %v2123
        %2133 = vmatprep.subr.bf16.mxu0 0
        %2134 = vmatpush1.bf16.msra.mxu0 0
        %2135 = vmatprep.subr.bf16.mxu0 0
        %2136 = vmatpush1.bf16.msra.mxu0 0
        %2137 = vmatprep.subr.bf16.mxu0 0
        %2138 = vmatpush1.bf16.msra.mxu0 0
        %2139 = vmatprep.subr.bf16.mxu0 0
        %2140 = vmatpush1.bf16.msra.mxu0 0
        %2141 = vmatprep.subr.bf16.mxu0 0
        %2142 = vmatpush1.bf16.msra.mxu0 0
        %2143 = vmatprep.subr.bf16.mxu0 0
        %2144 = vmatpush1.bf16.msra.mxu0 0
        %2145 = vmatprep.subr.bf16.mxu0 0
        %2146 = vmatpush1.bf16.msra.mxu0 0
        %2147 = vmatprep.subr.bf16.mxu0 0
        %2148 = vmatpush1.bf16.msra.mxu0 0
        %2149 = vmatprep.subr.bf16.mxu0 0
        %2150 = vmatpush1.bf16.msra.mxu0 0
        %2151 = vmatprep.subr.bf16.mxu0 0
        %2152 = vmatpush1.bf16.msra.mxu0 0
        %2153 = vmatprep.subr.bf16.mxu0 0
        %2154 = vmatpush1.bf16.msra.mxu0 0
        %2155 = vmatprep.subr.bf16.mxu0 0
        %2156 = vmatpush1.bf16.msra.mxu0 0
        %2157 = vmatprep.subr.bf16.mxu0 0
        %2158 = vmatpush1.bf16.msra.mxu0 0
        %2159 = vmatprep.subr.bf16.mxu0 0
        %2160 = vmatpush1.bf16.msra.mxu0 0
        %2161 = vmatprep.mubr.bf16.mxu0 0
        %2162 = vmatmul.mubr.bf16.gmra.mrb[0].mxu0 %v1446
        %v2163 = vpop.f32.mrb[0].mxu0
        %v2164 = vadd.f32 0.0, %v2163
        %v2165 = vpop.f32.mrb[0].mxu0
        %v2166 = vpop.f32.mrb[0].mxu0
        %v2167 = vadd.f32 0.0, %v2166
        %v2168 = vpop.f32.mrb[0].mxu0
        %2169 = vmatprep.mubr.bf16.mxu0 0
        %2170 = vmatmul.mubr.bf16.gmra.mrb[0].mxu0 %v1449
        %v2171 = vpop.f32.mrb[0].mxu0
        %v2172 = vadd.f32 0.0, %v2171
        %v2173 = vpop.f32.mrb[0].mxu0
        %v2174 = vpop.f32.mrb[0].mxu0
        %v2175 = vadd.f32 0.0, %v2174
        %v2176 = vpop.f32.mrb[0].mxu0
        %2177 = vmatprep.mubr.bf16.mxu0 0
        %2178 = vmatmul.mubr.bf16.gmra.mrb[0].mxu0 %v1452
        %v2179 = vpop.f32.mrb[0].mxu0
        %v2180 = vadd.f32 0.0, %v2179
        %v2181 = vpop.f32.mrb[0].mxu0
        %v2182 = vpop.f32.mrb[0].mxu0
        %v2183 = vadd.f32 0.0, %v2182
        %v2184 = vpop.f32.mrb[0].mxu0
        %2185 = vmatprep.mubr.bf16.mxu0 0
        %2186 = vmatmul.mubr.bf16.gmra.mrb[0].mxu0 %v1455
        %v2187 = vpop.f32.mrb[0].mxu0
        %v2188 = vadd.f32 0.0, %v2187
        %v2189 = vpop.f32.mrb[0].mxu0
        %v2190 = vpop.f32.mrb[0].mxu0
        %v2191 = vadd.f32 0.0, %v2190
        %v2192 = vpop.f32.mrb[0].mxu0
        %2193 = vmatprep.mubr.bf16.mxu0 0
        %2194 = vmatmul.mubr.bf16.gmra.mrb[0].mxu0 %v1458
        %v2195 = vpop.f32.mrb[0].mxu0
        %v2196 = vadd.f32 0.0, %v2195
        %v2197 = vpop.f32.mrb[0].mxu0
        %v2198 = vpop.f32.mrb[0].mxu0
        %v2199 = vadd.f32 0.0, %v2198
        %v2200 = vpop.f32.mrb[0].mxu0
        %2201 = vmatprep.mubr.bf16.mxu0 0
        %2202 = vmatmul.mubr.bf16.gmra.mrb[0].mxu0 %v1461
        %v2203 = vpop.f32.mrb[0].mxu0
        %v2204 = vadd.f32 0.0, %v2203
        %v2205 = vpop.f32.mrb[0].mxu0
        %v2206 = vpop.f32.mrb[0].mxu0
        %v2207 = vadd.f32 0.0, %v2206
        %v2208 = vpop.f32.mrb[0].mxu0
        %2209 = vmatprep.mubr.bf16.mxu0 0
        %2210 = vmatmul.mubr.bf16.gmra.mrb[0].mxu0 %v1464
        %v2211 = vpop.f32.mrb[0].mxu0
        %v2212 = vadd.f32 0.0, %v2211
        %v2213 = vpop.f32.mrb[0].mxu0
        %v2214 = vpop.f32.mrb[0].mxu0
        %v2215 = vadd.f32 0.0, %v2214
        %v2216 = vpop.f32.mrb[0].mxu0
        %2217 = vmatprep.mubr.bf16.mxu0 0
        %2218 = vmatmul.mubr.bf16.gmra.mrb[0].mxu0 %v1467
        %v2219 = vpop.f32.mrb[0].mxu0
        %v2220 = vadd.f32 0.0, %v2219
        %v2221 = vpop.f32.mrb[0].mxu0
        %v2222 = vpop.f32.mrb[0].mxu0
        %v2223 = vadd.f32 0.0, %v2222
        %v2224 = vpop.f32.mrb[0].mxu0
        %2225 = vmatprep.mubr.bf16.mxu0 0
        %2226 = vmatmul.mubr.bf16.gmra.mrb[0].mxu0 %v1470
        %v2227 = vpop.f32.mrb[0].mxu0
        %v2228 = vadd.f32 0.0, %v2227
        %v2229 = vpop.f32.mrb[0].mxu0
        %v2230 = vpop.f32.mrb[0].mxu0
        %v2231 = vadd.f32 0.0, %v2230
        %v2232 = vpop.f32.mrb[0].mxu0
        %2233 = vmatprep.mubr.bf16.mxu0 0
        %2234 = vmatmul.mubr.bf16.gmra.mrb[0].mxu0 %v1473
        %v2235 = vpop.f32.mrb[0].mxu0
        %v2236 = vadd.f32 0.0, %v2235
        %v2237 = vpop.f32.mrb[0].mxu0
        %v2238 = vpop.f32.mrb[0].mxu0
        %v2239 = vadd.f32 0.0, %v2238
        %v2240 = vpop.f32.mrb[0].mxu0
        %2241 = vmatprep.mubr.bf16.mxu0 0
        %2242 = vmatmul.mubr.bf16.gmra.mrb[0].mxu0 %v1476
        %v2243 = vpop.f32.mrb[0].mxu0
        %v2244 = vadd.f32 0.0, %v2243
        %v2245 = vpop.f32.mrb[0].mxu0
        %v2246 = vpop.f32.mrb[0].mxu0
        %v2247 = vadd.f32 0.0, %v2246
        %v2248 = vpop.f32.mrb[0].mxu0
        %2249 = vmatprep.mubr.bf16.mxu0 0
        %2250 = vmatmul.mubr.bf16.gmra.mrb[0].mxu0 %v1479
        %v2251 = vpop.f32.mrb[0].mxu0
        %v2252 = vadd.f32 0.0, %v2251
        %v2253 = vpop.f32.mrb[0].mxu0
        %v2254 = vpop.f32.mrb[0].mxu0
        %v2255 = vadd.f32 0.0, %v2254
        %v2256 = vpop.f32.mrb[0].mxu0
        %2257 = vmatprep.mubr.bf16.mxu0 0
        %2258 = vmatmul.mubr.bf16.gmra.mrb[0].mxu0 %v1482
        %v2259 = vpop.f32.mrb[0].mxu0
        %v2260 = vadd.f32 0.0, %v2259
        %v2261 = vpop.f32.mrb[0].mxu0
        %v2262 = vpop.f32.mrb[0].mxu0
        %v2263 = vadd.f32 0.0, %v2262
        %v2264 = vpop.f32.mrb[0].mxu0
        %2265 = vmatprep.mubr.bf16.mxu0 0
        %2266 = vmatmul.mubr.bf16.gmra.mrb[0].mxu0 %v1485
        %v2267 = vpop.f32.mrb[0].mxu0
        %v2268 = vadd.f32 0.0, %v2267
        %v2269 = vpop.f32.mrb[0].mxu0
        %v2270 = vpop.f32.mrb[0].mxu0
        %v2271 = vadd.f32 0.0, %v2270
        %v2272 = vpop.f32.mrb[0].mxu0
        %2273 = vmatprep.mubr.bf16.mxu0 0
        %2274 = vmatmul.mubr.bf16.gmra.mrb[0].mxu0 %v1488
        %v2275 = vpop.f32.mrb[0].mxu0
        %v2276 = vadd.f32 0.0, %v2275
        %v2277 = vpop.f32.mrb[0].mxu0
        %v2278 = vpop.f32.mrb[0].mxu0
        %v2279 = vadd.f32 0.0, %v2278
        %v2280 = vpop.f32.mrb[0].mxu0
        %2281 = vmatprep.mubr.bf16.mxu0 0
        %2282 = vmatmul.mubr.bf16.gmra.mrb[0].mxu0 %v2127
        %v2283 = vpop.f32.mrb[0].mxu0
        %v2284 = vadd.f32 0.0, %v2283
        %v2285 = vpop.f32.mrb[0].mxu0
        %v2286 = vpop.f32.mrb[0].mxu0
        %v2287 = vadd.f32 0.0, %v2286
        %v2288 = vpop.f32.mrb[0].mxu0
        %2289 = vdwg.mxu0
        %v2290 = vadd.f32 %v2077, %v2164
        %v2291 = vadd.f32 %v2078, %v2167
        %v2292 = vadd.f32 %v2079, %v2172
        %v2293 = vadd.f32 %v2080, %v2175
        %v2294 = vadd.f32 %v2081, %v2180
        %v2295 = vadd.f32 %v2082, %v2183
        %v2296 = vadd.f32 %v2083, %v2188
        %v2297 = vadd.f32 %v2084, %v2191
        %v2298 = vadd.f32 %v2085, %v2196
        %v2299 = vadd.f32 %v2086, %v2199
        %v2300 = vadd.f32 %v2087, %v2204
        %v2301 = vadd.f32 %v2088, %v2207
        %v2302 = vadd.f32 %v2089, %v2212
        %v2303 = vadd.f32 %v2090, %v2215
        %v2304 = vadd.f32 %v2091, %v2220
        %v2305 = vadd.f32 %v2092, %v2223
        %v2306 = vadd.f32 %v2093, %v2228
        %v2307 = vadd.f32 %v2094, %v2231
        %v2308 = vadd.f32 %v2095, %v2236
        %v2309 = vadd.f32 %v2096, %v2239
        %v2310 = vadd.f32 %v2097, %v2244
        %v2311 = vadd.f32 %v2098, %v2247
        %v2312 = vadd.f32 %v2099, %v2252
        %v2313 = vadd.f32 %v2100, %v2255
        %v2314 = vadd.f32 %v2101, %v2260
        %v2315 = vadd.f32 %v2102, %v2263
        %v2316 = vadd.f32 %v2103, %v2268
        %v2317 = vadd.f32 %v2104, %v2271
        %v2318 = vadd.f32 %v2105, %v2276
        %v2319 = vadd.f32 %v2106, %v2279
        %v2320 = vadd.f32 %v2107, %v2284
        %v2321 = vadd.f32 %v2108, %v2287
        %s2322 = scalar_lea.vmem [#allocation5], 96
        %v2323 = vld [vmem:[%s2322] sm:$0xf]
        %v2324 = vld [vmem:[%s2322 + $0x4] sm:$0xf]
        %v2325 = vld [vmem:[%s2322 + $0x8] sm:$0xf]
        %v2326 = vld [vmem:[%s2322 + $0xc] sm:$0xf]
        %v2331 = vunpack.c.l.b16 %v2323
        %v2332 = vunpack.c.l.b16 %v2324
        %v2333 = vunpack.c.l.b16 %v2325
        %v2334 = vunpack.c.l.b16 %v2326
        %v2335 = vpack.c.b16 %v2332, %v2331
        %v2336 = vpack.c.b16 %v2334, %v2333
        %2339 = vmatprep.subr.bf16.mxu0 0
        %2340 = vmatpush1.bf16.msra.mxu0 %v2335
        %2341 = vmatprep.subr.bf16.mxu0 0
        %2342 = vmatpush1.bf16.msra.mxu0 %v2336
        %2343 = vmatprep.subr.bf16.mxu0 0
        %2344 = vmatpush1.bf16.msra.mxu0 0
        %2345 = vmatprep.subr.bf16.mxu0 0
        %2346 = vmatpush1.bf16.msra.mxu0 0
        %2347 = vmatprep.subr.bf16.mxu0 0
        %2348 = vmatpush1.bf16.msra.mxu0 0
        %2349 = vmatprep.subr.bf16.mxu0 0
        %2350 = vmatpush1.bf16.msra.mxu0 0
        %2351 = vmatprep.subr.bf16.mxu0 0
        %2352 = vmatpush1.bf16.msra.mxu0 0
        %2353 = vmatprep.subr.bf16.mxu0 0
        %2354 = vmatpush1.bf16.msra.mxu0 0
        %2355 = vmatprep.subr.bf16.mxu0 0
        %2356 = vmatpush1.bf16.msra.mxu0 0
        %2357 = vmatprep.subr.bf16.mxu0 0
        %2358 = vmatpush1.bf16.msra.mxu0 0
        %2359 = vmatprep.subr.bf16.mxu0 0
        %2360 = vmatpush1.bf16.msra.mxu0 0
        %2361 = vmatprep.subr.bf16.mxu0 0
        %2362 = vmatpush1.bf16.msra.mxu0 0
        %2363 = vmatprep.subr.bf16.mxu0 0
        %2364 = vmatpush1.bf16.msra.mxu0 0
        %2365 = vmatprep.subr.bf16.mxu0 0
        %2366 = vmatpush1.bf16.msra.mxu0 0
        %2367 = vmatprep.subr.bf16.mxu0 0
        %2368 = vmatpush1.bf16.msra.mxu0 0
        %2369 = vmatprep.subr.bf16.mxu0 0
        %2370 = vmatpush1.bf16.msra.mxu0 0
        %2371 = vmatprep.mubr.bf16.mxu0 0
        %2372 = vmatmul.mubr.bf16.gmra.mrb[0].mxu0 %v1226
        %v2373 = vpop.f32.mrb[0].mxu0
        %v2374 = vadd.f32 0.0, %v2373
        %v2375 = vpop.f32.mrb[0].mxu0
        %v2376 = vpop.f32.mrb[0].mxu0
        %v2377 = vadd.f32 0.0, %v2376
        %v2378 = vpop.f32.mrb[0].mxu0
        %2379 = vmatprep.mubr.bf16.mxu0 0
        %2380 = vmatmul.mubr.bf16.gmra.mrb[0].mxu0 %v1229
        %v2381 = vpop.f32.mrb[0].mxu0
        %v2382 = vadd.f32 0.0, %v2381
        %v2383 = vpop.f32.mrb[0].mxu0
        %v2384 = vpop.f32.mrb[0].mxu0
        %v2385 = vadd.f32 0.0, %v2384
        %v2386 = vpop.f32.mrb[0].mxu0
        %2387 = vmatprep.mubr.bf16.mxu0 0
        %2388 = vmatmul.mubr.bf16.gmra.mrb[0].mxu0 %v1232
        %v2389 = vpop.f32.mrb[0].mxu0
        %v2390 = vadd.f32 0.0, %v2389
        %v2391 = vpop.f32.mrb[0].mxu0
        %v2392 = vpop.f32.mrb[0].mxu0
        %v2393 = vadd.f32 0.0, %v2392
        %v2394 = vpop.f32.mrb[0].mxu0
        %2395 = vmatprep.mubr.bf16.mxu0 0
        %2396 = vmatmul.mubr.bf16.gmra.mrb[0].mxu0 %v1235
        %v2397 = vpop.f32.mrb[0].mxu0
        %v2398 = vadd.f32 0.0, %v2397
        %v2399 = vpop.f32.mrb[0].mxu0
        %v2400 = vpop.f32.mrb[0].mxu0
        %v2401 = vadd.f32 0.0, %v2400
        %v2402 = vpop.f32.mrb[0].mxu0
        %2403 = vmatprep.mubr.bf16.mxu0 0
        %2404 = vmatmul.mubr.bf16.gmra.mrb[0].mxu0 %v1238
        %v2405 = vpop.f32.mrb[0].mxu0
        %v2406 = vadd.f32 0.0, %v2405
        %v2407 = vpop.f32.mrb[0].mxu0
        %v2408 = vpop.f32.mrb[0].mxu0
        %v2409 = vadd.f32 0.0, %v2408
        %v2410 = vpop.f32.mrb[0].mxu0
        %2411 = vmatprep.mubr.bf16.mxu0 0
        %2412 = vmatmul.mubr.bf16.gmra.mrb[0].mxu0 %v1241
        %v2413 = vpop.f32.mrb[0].mxu0
        %v2414 = vadd.f32 0.0, %v2413
        %v2415 = vpop.f32.mrb[0].mxu0
        %v2416 = vpop.f32.mrb[0].mxu0
        %v2417 = vadd.f32 0.0, %v2416
        %v2418 = vpop.f32.mrb[0].mxu0
        %2419 = vmatprep.mubr.bf16.mxu0 0
        %2420 = vmatmul.mubr.bf16.gmra.mrb[0].mxu0 %v1244
        %v2421 = vpop.f32.mrb[0].mxu0
        %v2422 = vadd.f32 0.0, %v2421
        %v2423 = vpop.f32.mrb[0].mxu0
        %v2424 = vpop.f32.mrb[0].mxu0
        %v2425 = vadd.f32 0.0, %v2424
        %v2426 = vpop.f32.mrb[0].mxu0
        %2427 = vmatprep.mubr.bf16.mxu0 0
        %2428 = vmatmul.mubr.bf16.gmra.mrb[0].mxu0 %v1247
        %v2429 = vpop.f32.mrb[0].mxu0
        %v2430 = vadd.f32 0.0, %v2429
        %v2431 = vpop.f32.mrb[0].mxu0
        %v2432 = vpop.f32.mrb[0].mxu0
        %v2433 = vadd.f32 0.0, %v2432
        %v2434 = vpop.f32.mrb[0].mxu0
        %2435 = vmatprep.mubr.bf16.mxu0 0
        %2436 = vmatmul.mubr.bf16.gmra.mrb[0].mxu0 %v1250
        %v2437 = vpop.f32.mrb[0].mxu0
        %v2438 = vadd.f32 0.0, %v2437
        %v2439 = vpop.f32.mrb[0].mxu0
        %v2440 = vpop.f32.mrb[0].mxu0
        %v2441 = vadd.f32 0.0, %v2440
        %v2442 = vpop.f32.mrb[0].mxu0
        %2443 = vmatprep.mubr.bf16.mxu0 0
        %2444 = vmatmul.mubr.bf16.gmra.mrb[0].mxu0 %v1253
        %v2445 = vpop.f32.mrb[0].mxu0
        %v2446 = vadd.f32 0.0, %v2445
        %v2447 = vpop.f32.mrb[0].mxu0
        %v2448 = vpop.f32.mrb[0].mxu0
        %v2449 = vadd.f32 0.0, %v2448
        %v2450 = vpop.f32.mrb[0].mxu0
        %2451 = vmatprep.mubr.bf16.mxu0 0
        %2452 = vmatmul.mubr.bf16.gmra.mrb[0].mxu0 %v1256
        %v2453 = vpop.f32.mrb[0].mxu0
        %v2454 = vadd.f32 0.0, %v2453
        %v2455 = vpop.f32.mrb[0].mxu0
        %v2456 = vpop.f32.mrb[0].mxu0
        %v2457 = vadd.f32 0.0, %v2456
        %v2458 = vpop.f32.mrb[0].mxu0
        %2459 = vmatprep.mubr.bf16.mxu0 0
        %2460 = vmatmul.mubr.bf16.gmra.mrb[0].mxu0 %v1259
        %v2461 = vpop.f32.mrb[0].mxu0
        %v2462 = vadd.f32 0.0, %v2461
        %v2463 = vpop.f32.mrb[0].mxu0
        %v2464 = vpop.f32.mrb[0].mxu0
        %v2465 = vadd.f32 0.0, %v2464
        %v2466 = vpop.f32.mrb[0].mxu0
        %2467 = vmatprep.mubr.bf16.mxu0 0
        %2468 = vmatmul.mubr.bf16.gmra.mrb[0].mxu0 %v1262
        %v2469 = vpop.f32.mrb[0].mxu0
        %v2470 = vadd.f32 0.0, %v2469
        %v2471 = vpop.f32.mrb[0].mxu0
        %v2472 = vpop.f32.mrb[0].mxu0
        %v2473 = vadd.f32 0.0, %v2472
        %v2474 = vpop.f32.mrb[0].mxu0
        %2475 = vmatprep.mubr.bf16.mxu0 0
        %2476 = vmatmul.mubr.bf16.gmra.mrb[0].mxu0 %v1265
        %v2477 = vpop.f32.mrb[0].mxu0
        %v2478 = vadd.f32 0.0, %v2477
        %v2479 = vpop.f32.mrb[0].mxu0
        %v2480 = vpop.f32.mrb[0].mxu0
        %v2481 = vadd.f32 0.0, %v2480
        %v2482 = vpop.f32.mrb[0].mxu0
        %2483 = vmatprep.mubr.bf16.mxu0 0
        %2484 = vmatmul.mubr.bf16.gmra.mrb[0].mxu0 %v1701
        %v2485 = vpop.f32.mrb[0].mxu0
        %v2486 = vadd.f32 0.0, %v2485
        %v2487 = vpop.f32.mrb[0].mxu0
        %v2488 = vpop.f32.mrb[0].mxu0
        %v2489 = vadd.f32 0.0, %v2488
        %v2490 = vpop.f32.mrb[0].mxu0
        %2491 = vmatprep.mubr.bf16.mxu0 0
        %2492 = vmatmul.mubr.bf16.gmra.mrb[0].mxu0 %v1002
        %v2493 = vpop.f32.mrb[0].mxu0
        %v2494 = vadd.f32 0.0, %v2493
        %v2495 = vpop.f32.mrb[0].mxu0
        %v2496 = vpop.f32.mrb[0].mxu0
        %v2497 = vadd.f32 0.0, %v2496
        %v2498 = vpop.f32.mrb[0].mxu0
        %2499 = vdwg.mxu0
        %v2500 = vadd.f32 %v2290, %v2374
        %v2501 = vadd.f32 %v2291, %v2377
        %v2502 = vadd.f32 %v2292, %v2382
        %v2503 = vadd.f32 %v2293, %v2385
        %v2504 = vadd.f32 %v2294, %v2390
        %v2505 = vadd.f32 %v2295, %v2393
        %v2506 = vadd.f32 %v2296, %v2398
        %v2507 = vadd.f32 %v2297, %v2401
        %v2508 = vadd.f32 %v2298, %v2406
        %v2509 = vadd.f32 %v2299, %v2409
        %v2510 = vadd.f32 %v2300, %v2414
        %v2511 = vadd.f32 %v2301, %v2417
        %v2512 = vadd.f32 %v2302, %v2422
        %v2513 = vadd.f32 %v2303, %v2425
        %v2514 = vadd.f32 %v2304, %v2430
        %v2515 = vadd.f32 %v2305, %v2433
        %v2516 = vadd.f32 %v2306, %v2438
        %v2517 = vadd.f32 %v2307, %v2441
        %v2518 = vadd.f32 %v2308, %v2446
        %v2519 = vadd.f32 %v2309, %v2449
        %v2520 = vadd.f32 %v2310, %v2454
        %v2521 = vadd.f32 %v2311, %v2457
        %v2522 = vadd.f32 %v2312, %v2462
        %v2523 = vadd.f32 %v2313, %v2465
        %v2524 = vadd.f32 %v2314, %v2470
        %v2525 = vadd.f32 %v2315, %v2473
        %v2526 = vadd.f32 %v2316, %v2478
        %v2527 = vadd.f32 %v2317, %v2481
        %v2528 = vadd.f32 %v2318, %v2486
        %v2529 = vadd.f32 %v2319, %v2489
        %v2530 = vadd.f32 %v2320, %v2494
        %v2531 = vadd.f32 %v2321, %v2497
        %s2532 = scalar_lea.vmem [#allocation5], 112
        %v2533 = vld [vmem:[%s2532] sm:$0xf]
        %v2534 = vld [vmem:[%s2532 + $0x4] sm:$0xf]
        %v2535 = vld [vmem:[%s2532 + $0x8] sm:$0xf]
        %v2536 = vld [vmem:[%s2532 + $0xc] sm:$0xf]
        %v2541 = vunpack.c.l.b16 %v2533
        %v2542 = vunpack.c.l.b16 %v2534
        %v2543 = vunpack.c.l.b16 %v2535
        %v2544 = vunpack.c.l.b16 %v2536
        %v2545 = vpack.c.b16 %v2542, %v2541
        %v2546 = vpack.c.b16 %v2544, %v2543
        %2549 = vmatprep.subr.bf16.mxu0 0
        %2550 = vmatpush1.bf16.msra.mxu0 %v2545
        %2551 = vmatprep.subr.bf16.mxu0 0
        %2552 = vmatpush1.bf16.msra.mxu0 %v2546
        %2553 = vmatprep.subr.bf16.mxu0 0
        %2554 = vmatpush1.bf16.msra.mxu0 0
        %2555 = vmatprep.subr.bf16.mxu0 0
        %2556 = vmatpush1.bf16.msra.mxu0 0
        %2557 = vmatprep.subr.bf16.mxu0 0
        %2558 = vmatpush1.bf16.msra.mxu0 0
        %2559 = vmatprep.subr.bf16.mxu0 0
        %2560 = vmatpush1.bf16.msra.mxu0 0
        %2561 = vmatprep.subr.bf16.mxu0 0
        %2562 = vmatpush1.bf16.msra.mxu0 0
        %2563 = vmatprep.subr.bf16.mxu0 0
        %2564 = vmatpush1.bf16.msra.mxu0 0
        %2565 = vmatprep.subr.bf16.mxu0 0
        %2566 = vmatpush1.bf16.msra.mxu0 0
        %2567 = vmatprep.subr.bf16.mxu0 0
        %2568 = vmatpush1.bf16.msra.mxu0 0
        %2569 = vmatprep.subr.bf16.mxu0 0
        %2570 = vmatpush1.bf16.msra.mxu0 0
        %2571 = vmatprep.subr.bf16.mxu0 0
        %2572 = vmatpush1.bf16.msra.mxu0 0
        %2573 = vmatprep.subr.bf16.mxu0 0
        %2574 = vmatpush1.bf16.msra.mxu0 0
        %2575 = vmatprep.subr.bf16.mxu0 0
        %2576 = vmatpush1.bf16.msra.mxu0 0
        %2577 = vmatprep.subr.bf16.mxu0 0
        %2578 = vmatpush1.bf16.msra.mxu0 0
        %2579 = vmatprep.subr.bf16.mxu0 0
        %2580 = vmatpush1.bf16.msra.mxu0 0
        %2581 = vmatprep.mubr.bf16.mxu0 0
        %2582 = vmatmul.mubr.bf16.gmra.mrb[0].mxu0 %v1008
        %v2583 = vpop.f32.mrb[0].mxu0
        %v2584 = vadd.f32 0.0, %v2583
        %v2585 = vpop.f32.mrb[0].mxu0
        %v2586 = vpop.f32.mrb[0].mxu0
        %v2587 = vadd.f32 0.0, %v2586
        %v2588 = vpop.f32.mrb[0].mxu0
        %2589 = vmatprep.mubr.bf16.mxu0 0
        %2590 = vmatmul.mubr.bf16.gmra.mrb[0].mxu0 %v1011
        %v2591 = vpop.f32.mrb[0].mxu0
        %v2592 = vadd.f32 0.0, %v2591
        %v2593 = vpop.f32.mrb[0].mxu0
        %v2594 = vpop.f32.mrb[0].mxu0
        %v2595 = vadd.f32 0.0, %v2594
        %v2596 = vpop.f32.mrb[0].mxu0
        %2597 = vmatprep.mubr.bf16.mxu0 0
        %2598 = vmatmul.mubr.bf16.gmra.mrb[0].mxu0 %v1014
        %v2599 = vpop.f32.mrb[0].mxu0
        %v2600 = vadd.f32 0.0, %v2599
        %v2601 = vpop.f32.mrb[0].mxu0
        %v2602 = vpop.f32.mrb[0].mxu0
        %v2603 = vadd.f32 0.0, %v2602
        %v2604 = vpop.f32.mrb[0].mxu0
        %2605 = vmatprep.mubr.bf16.mxu0 0
        %2606 = vmatmul.mubr.bf16.gmra.mrb[0].mxu0 %v1017
        %v2607 = vpop.f32.mrb[0].mxu0
        %v2608 = vadd.f32 0.0, %v2607
        %v2609 = vpop.f32.mrb[0].mxu0
        %v2610 = vpop.f32.mrb[0].mxu0
        %v2611 = vadd.f32 0.0, %v2610
        %v2612 = vpop.f32.mrb[0].mxu0
        %2613 = vmatprep.mubr.bf16.mxu0 0
        %2614 = vmatmul.mubr.bf16.gmra.mrb[0].mxu0 %v1020
        %v2615 = vpop.f32.mrb[0].mxu0
        %v2616 = vadd.f32 0.0, %v2615
        %v2617 = vpop.f32.mrb[0].mxu0
        %v2618 = vpop.f32.mrb[0].mxu0
        %v2619 = vadd.f32 0.0, %v2618
        %v2620 = vpop.f32.mrb[0].mxu0
        %2621 = vmatprep.mubr.bf16.mxu0 0
        %2622 = vmatmul.mubr.bf16.gmra.mrb[0].mxu0 %v1023
        %v2623 = vpop.f32.mrb[0].mxu0
        %v2624 = vadd.f32 0.0, %v2623
        %v2625 = vpop.f32.mrb[0].mxu0
        %v2626 = vpop.f32.mrb[0].mxu0
        %v2627 = vadd.f32 0.0, %v2626
        %v2628 = vpop.f32.mrb[0].mxu0
        %2629 = vmatprep.mubr.bf16.mxu0 0
        %2630 = vmatmul.mubr.bf16.gmra.mrb[0].mxu0 %v1026
        %v2631 = vpop.f32.mrb[0].mxu0
        %v2632 = vadd.f32 0.0, %v2631
        %v2633 = vpop.f32.mrb[0].mxu0
        %v2634 = vpop.f32.mrb[0].mxu0
        %v2635 = vadd.f32 0.0, %v2634
        %v2636 = vpop.f32.mrb[0].mxu0
        %2637 = vmatprep.mubr.bf16.mxu0 0
        %2638 = vmatmul.mubr.bf16.gmra.mrb[0].mxu0 %v1029
        %v2639 = vpop.f32.mrb[0].mxu0
        %v2640 = vadd.f32 0.0, %v2639
        %v2641 = vpop.f32.mrb[0].mxu0
        %v2642 = vpop.f32.mrb[0].mxu0
        %v2643 = vadd.f32 0.0, %v2642
        %v2644 = vpop.f32.mrb[0].mxu0
        %2645 = vmatprep.mubr.bf16.mxu0 0
        %2646 = vmatmul.mubr.bf16.gmra.mrb[0].mxu0 %v1032
        %v2647 = vpop.f32.mrb[0].mxu0
        %v2648 = vadd.f32 0.0, %v2647
        %v2649 = vpop.f32.mrb[0].mxu0
        %v2650 = vpop.f32.mrb[0].mxu0
        %v2651 = vadd.f32 0.0, %v2650
        %v2652 = vpop.f32.mrb[0].mxu0
        %2653 = vmatprep.mubr.bf16.mxu0 0
        %2654 = vmatmul.mubr.bf16.gmra.mrb[0].mxu0 %v1035
        %v2655 = vpop.f32.mrb[0].mxu0
        %v2656 = vadd.f32 0.0, %v2655
        %v2657 = vpop.f32.mrb[0].mxu0
        %v2658 = vpop.f32.mrb[0].mxu0
        %v2659 = vadd.f32 0.0, %v2658
        %v2660 = vpop.f32.mrb[0].mxu0
        %2661 = vmatprep.mubr.bf16.mxu0 0
        %2662 = vmatmul.mubr.bf16.gmra.mrb[0].mxu0 %v1038
        %v2663 = vpop.f32.mrb[0].mxu0
        %v2664 = vadd.f32 0.0, %v2663
        %v2665 = vpop.f32.mrb[0].mxu0
        %v2666 = vpop.f32.mrb[0].mxu0
        %v2667 = vadd.f32 0.0, %v2666
        %v2668 = vpop.f32.mrb[0].mxu0
        %2669 = vmatprep.mubr.bf16.mxu0 0
        %2670 = vmatmul.mubr.bf16.gmra.mrb[0].mxu0 %v1041
        %v2671 = vpop.f32.mrb[0].mxu0
        %v2672 = vadd.f32 0.0, %v2671
        %v2673 = vpop.f32.mrb[0].mxu0
        %v2674 = vpop.f32.mrb[0].mxu0
        %v2675 = vadd.f32 0.0, %v2674
        %v2676 = vpop.f32.mrb[0].mxu0
        %2677 = vmatprep.mubr.bf16.mxu0 0
        %2678 = vmatmul.mubr.bf16.gmra.mrb[0].mxu0 %v1044
        %v2679 = vpop.f32.mrb[0].mxu0
        %v2680 = vadd.f32 0.0, %v2679
        %v2681 = vpop.f32.mrb[0].mxu0
        %v2682 = vpop.f32.mrb[0].mxu0
        %v2683 = vadd.f32 0.0, %v2682
        %v2684 = vpop.f32.mrb[0].mxu0
        %2685 = vmatprep.mubr.bf16.mxu0 0
        %2686 = vmatmul.mubr.bf16.gmra.mrb[0].mxu0 %v1047
        %v2687 = vpop.f32.mrb[0].mxu0
        %v2688 = vadd.f32 0.0, %v2687
        %v2689 = vpop.f32.mrb[0].mxu0
        %v2690 = vpop.f32.mrb[0].mxu0
        %v2691 = vadd.f32 0.0, %v2690
        %v2692 = vpop.f32.mrb[0].mxu0
        %2693 = vmatprep.mubr.bf16.mxu0 0
        %2694 = vmatmul.mubr.bf16.gmra.mrb[0].mxu0 %v1914
        %v2695 = vpop.f32.mrb[0].mxu0
        %v2696 = vadd.f32 0.0, %v2695
        %v2697 = vpop.f32.mrb[0].mxu0
        %v2698 = vpop.f32.mrb[0].mxu0
        %v2699 = vadd.f32 0.0, %v2698
        %v2700 = vpop.f32.mrb[0].mxu0
        %2701 = vmatprep.mubr.bf16.mxu0 0
        %2702 = vmatmul.mubr.bf16.gmra.mrb[0].mxu0 %v1002
        %v2703 = vpop.f32.mrb[0].mxu0
        %v2704 = vadd.f32 0.0, %v2703
        %v2705 = vpop.f32.mrb[0].mxu0
        %v2706 = vpop.f32.mrb[0].mxu0
        %v2707 = vadd.f32 0.0, %v2706
        %v2708 = vpop.f32.mrb[0].mxu0
        %2709 = vdwg.mxu0
        %v2710 = vadd.f32 %v2500, %v2584
        %v2711 = vadd.f32 %v2501, %v2587
        %v2712 = vadd.f32 %v2502, %v2592
        %v2713 = vadd.f32 %v2503, %v2595
        %v2714 = vadd.f32 %v2504, %v2600
        %v2715 = vadd.f32 %v2505, %v2603
        %v2716 = vadd.f32 %v2506, %v2608
        %v2717 = vadd.f32 %v2507, %v2611
        %v2718 = vadd.f32 %v2508, %v2616
        %v2719 = vadd.f32 %v2509, %v2619
        %v2720 = vadd.f32 %v2510, %v2624
        %v2721 = vadd.f32 %v2511, %v2627
        %v2722 = vadd.f32 %v2512, %v2632
        %v2723 = vadd.f32 %v2513, %v2635
        %v2724 = vadd.f32 %v2514, %v2640
        %v2725 = vadd.f32 %v2515, %v2643
        %v2726 = vadd.f32 %v2516, %v2648
        %v2727 = vadd.f32 %v2517, %v2651
        %v2728 = vadd.f32 %v2518, %v2656
        %v2729 = vadd.f32 %v2519, %v2659
        %v2730 = vadd.f32 %v2520, %v2664
        %v2731 = vadd.f32 %v2521, %v2667
        %v2732 = vadd.f32 %v2522, %v2672
        %v2733 = vadd.f32 %v2523, %v2675
        %v2734 = vadd.f32 %v2524, %v2680
        %v2735 = vadd.f32 %v2525, %v2683
        %v2736 = vadd.f32 %v2526, %v2688
        %v2737 = vadd.f32 %v2527, %v2691
        %v2738 = vadd.f32 %v2528, %v2696
        %v2739 = vadd.f32 %v2529, %v2699
        %v2740 = vadd.f32 %v2530, %v2704
        %v2741 = vadd.f32 %v2531, %v2707
        %s2742 = scalar_lea.vmem [#allocation5], 128
        %v2743 = vld [vmem:[%s2742] sm:$0xf]
        %v2744 = vld [vmem:[%s2742 + $0x4] sm:$0xf]
        %v2745 = vld [vmem:[%s2742 + $0x8] sm:$0xf]
        %v2746 = vld [vmem:[%s2742 + $0xc] sm:$0xf]
        %v2751 = vunpack.c.l.b16 %v2743
        %v2752 = vunpack.c.l.b16 %v2744
        %v2753 = vunpack.c.l.b16 %v2745
        %v2754 = vunpack.c.l.b16 %v2746
        %v2755 = vpack.c.b16 %v2752, %v2751
        %v2756 = vpack.c.b16 %v2754, %v2753
        %2759 = vmatprep.subr.bf16.mxu0 0
        %2760 = vmatpush1.bf16.msra.mxu0 %v2755
        %2761 = vmatprep.subr.bf16.mxu0 0
        %2762 = vmatpush1.bf16.msra.mxu0 %v2756
        %2763 = vmatprep.subr.bf16.mxu0 0
        %2764 = vmatpush1.bf16.msra.mxu0 0
        %2765 = vmatprep.subr.bf16.mxu0 0
        %2766 = vmatpush1.bf16.msra.mxu0 0
        %2767 = vmatprep.subr.bf16.mxu0 0
        %2768 = vmatpush1.bf16.msra.mxu0 0
        %2769 = vmatprep.subr.bf16.mxu0 0
        %2770 = vmatpush1.bf16.msra.mxu0 0
        %2771 = vmatprep.subr.bf16.mxu0 0
        %2772 = vmatpush1.bf16.msra.mxu0 0
        %2773 = vmatprep.subr.bf16.mxu0 0
        %2774 = vmatpush1.bf16.msra.mxu0 0
        %2775 = vmatprep.subr.bf16.mxu0 0
        %2776 = vmatpush1.bf16.msra.mxu0 0
        %2777 = vmatprep.subr.bf16.mxu0 0
        %2778 = vmatpush1.bf16.msra.mxu0 0
        %2779 = vmatprep.subr.bf16.mxu0 0
        %2780 = vmatpush1.bf16.msra.mxu0 0
        %2781 = vmatprep.subr.bf16.mxu0 0
        %2782 = vmatpush1.bf16.msra.mxu0 0
        %2783 = vmatprep.subr.bf16.mxu0 0
        %2784 = vmatpush1.bf16.msra.mxu0 0
        %2785 = vmatprep.subr.bf16.mxu0 0
        %2786 = vmatpush1.bf16.msra.mxu0 0
        %2787 = vmatprep.subr.bf16.mxu0 0
        %2788 = vmatpush1.bf16.msra.mxu0 0
        %2789 = vmatprep.subr.bf16.mxu0 0
        %2790 = vmatpush1.bf16.msra.mxu0 0
        %2791 = vmatprep.mubr.bf16.mxu0 0
        %2792 = vmatmul.mubr.bf16.gmra.mrb[0].mxu0 %v1449
        %v2793 = vpop.f32.mrb[0].mxu0
        %v2794 = vadd.f32 0.0, %v2793
        %v2795 = vpop.f32.mrb[0].mxu0
        %v2796 = vpop.f32.mrb[0].mxu0
        %v2797 = vadd.f32 0.0, %v2796
        %v2798 = vpop.f32.mrb[0].mxu0
        %2799 = vmatprep.mubr.bf16.mxu0 0
        %2800 = vmatmul.mubr.bf16.gmra.mrb[0].mxu0 %v1452
        %v2801 = vpop.f32.mrb[0].mxu0
        %v2802 = vadd.f32 0.0, %v2801
        %v2803 = vpop.f32.mrb[0].mxu0
        %v2804 = vpop.f32.mrb[0].mxu0
        %v2805 = vadd.f32 0.0, %v2804
        %v2806 = vpop.f32.mrb[0].mxu0
        %2807 = vmatprep.mubr.bf16.mxu0 0
        %2808 = vmatmul.mubr.bf16.gmra.mrb[0].mxu0 %v1455
        %v2809 = vpop.f32.mrb[0].mxu0
        %v2810 = vadd.f32 0.0, %v2809
        %v2811 = vpop.f32.mrb[0].mxu0
        %v2812 = vpop.f32.mrb[0].mxu0
        %v2813 = vadd.f32 0.0, %v2812
        %v2814 = vpop.f32.mrb[0].mxu0
        %2815 = vmatprep.mubr.bf16.mxu0 0
        %2816 = vmatmul.mubr.bf16.gmra.mrb[0].mxu0 %v1458
        %v2817 = vpop.f32.mrb[0].mxu0
        %v2818 = vadd.f32 0.0, %v2817
        %v2819 = vpop.f32.mrb[0].mxu0
        %v2820 = vpop.f32.mrb[0].mxu0
        %v2821 = vadd.f32 0.0, %v2820
        %v2822 = vpop.f32.mrb[0].mxu0
        %2823 = vmatprep.mubr.bf16.mxu0 0
        %2824 = vmatmul.mubr.bf16.gmra.mrb[0].mxu0 %v1461
        %v2825 = vpop.f32.mrb[0].mxu0
        %v2826 = vadd.f32 0.0, %v2825
        %v2827 = vpop.f32.mrb[0].mxu0
        %v2828 = vpop.f32.mrb[0].mxu0
        %v2829 = vadd.f32 0.0, %v2828
        %v2830 = vpop.f32.mrb[0].mxu0
        %2831 = vmatprep.mubr.bf16.mxu0 0
        %2832 = vmatmul.mubr.bf16.gmra.mrb[0].mxu0 %v1464
        %v2833 = vpop.f32.mrb[0].mxu0
        %v2834 = vadd.f32 0.0, %v2833
        %v2835 = vpop.f32.mrb[0].mxu0
        %v2836 = vpop.f32.mrb[0].mxu0
        %v2837 = vadd.f32 0.0, %v2836
        %v2838 = vpop.f32.mrb[0].mxu0
        %2839 = vmatprep.mubr.bf16.mxu0 0
        %2840 = vmatmul.mubr.bf16.gmra.mrb[0].mxu0 %v1467
        %v2841 = vpop.f32.mrb[0].mxu0
        %v2842 = vadd.f32 0.0, %v2841
        %v2843 = vpop.f32.mrb[0].mxu0
        %v2844 = vpop.f32.mrb[0].mxu0
        %v2845 = vadd.f32 0.0, %v2844
        %v2846 = vpop.f32.mrb[0].mxu0
        %2847 = vmatprep.mubr.bf16.mxu0 0
        %2848 = vmatmul.mubr.bf16.gmra.mrb[0].mxu0 %v1470
        %v2849 = vpop.f32.mrb[0].mxu0
        %v2850 = vadd.f32 0.0, %v2849
        %v2851 = vpop.f32.mrb[0].mxu0
        %v2852 = vpop.f32.mrb[0].mxu0
        %v2853 = vadd.f32 0.0, %v2852
        %v2854 = vpop.f32.mrb[0].mxu0
        %2855 = vmatprep.mubr.bf16.mxu0 0
        %2856 = vmatmul.mubr.bf16.gmra.mrb[0].mxu0 %v1473
        %v2857 = vpop.f32.mrb[0].mxu0
        %v2858 = vadd.f32 0.0, %v2857
        %v2859 = vpop.f32.mrb[0].mxu0
        %v2860 = vpop.f32.mrb[0].mxu0
        %v2861 = vadd.f32 0.0, %v2860
        %v2862 = vpop.f32.mrb[0].mxu0
        %2863 = vmatprep.mubr.bf16.mxu0 0
        %2864 = vmatmul.mubr.bf16.gmra.mrb[0].mxu0 %v1476
        %v2865 = vpop.f32.mrb[0].mxu0
        %v2866 = vadd.f32 0.0, %v2865
        %v2867 = vpop.f32.mrb[0].mxu0
        %v2868 = vpop.f32.mrb[0].mxu0
        %v2869 = vadd.f32 0.0, %v2868
        %v2870 = vpop.f32.mrb[0].mxu0
        %2871 = vmatprep.mubr.bf16.mxu0 0
        %2872 = vmatmul.mubr.bf16.gmra.mrb[0].mxu0 %v1479
        %v2873 = vpop.f32.mrb[0].mxu0
        %v2874 = vadd.f32 0.0, %v2873
        %v2875 = vpop.f32.mrb[0].mxu0
        %v2876 = vpop.f32.mrb[0].mxu0
        %v2877 = vadd.f32 0.0, %v2876
        %v2878 = vpop.f32.mrb[0].mxu0
        %2879 = vmatprep.mubr.bf16.mxu0 0
        %2880 = vmatmul.mubr.bf16.gmra.mrb[0].mxu0 %v1482
        %v2881 = vpop.f32.mrb[0].mxu0
        %v2882 = vadd.f32 0.0, %v2881
        %v2883 = vpop.f32.mrb[0].mxu0
        %v2884 = vpop.f32.mrb[0].mxu0
        %v2885 = vadd.f32 0.0, %v2884
        %v2886 = vpop.f32.mrb[0].mxu0
        %2887 = vmatprep.mubr.bf16.mxu0 0
        %2888 = vmatmul.mubr.bf16.gmra.mrb[0].mxu0 %v1485
        %v2889 = vpop.f32.mrb[0].mxu0
        %v2890 = vadd.f32 0.0, %v2889
        %v2891 = vpop.f32.mrb[0].mxu0
        %v2892 = vpop.f32.mrb[0].mxu0
        %v2893 = vadd.f32 0.0, %v2892
        %v2894 = vpop.f32.mrb[0].mxu0
        %2895 = vmatprep.mubr.bf16.mxu0 0
        %2896 = vmatmul.mubr.bf16.gmra.mrb[0].mxu0 %v1488
        %v2897 = vpop.f32.mrb[0].mxu0
        %v2898 = vadd.f32 0.0, %v2897
        %v2899 = vpop.f32.mrb[0].mxu0
        %v2900 = vpop.f32.mrb[0].mxu0
        %v2901 = vadd.f32 0.0, %v2900
        %v2902 = vpop.f32.mrb[0].mxu0
        %2903 = vmatprep.mubr.bf16.mxu0 0
        %2904 = vmatmul.mubr.bf16.gmra.mrb[0].mxu0 %v2127
        %v2905 = vpop.f32.mrb[0].mxu0
        %v2906 = vadd.f32 0.0, %v2905
        %v2907 = vpop.f32.mrb[0].mxu0
        %v2908 = vpop.f32.mrb[0].mxu0
        %v2909 = vadd.f32 0.0, %v2908
        %v2910 = vpop.f32.mrb[0].mxu0
        %2911 = vmatprep.mubr.bf16.mxu0 0
        %2912 = vmatmul.mubr.bf16.gmra.mrb[0].mxu0 %v1002
        %v2913 = vpop.f32.mrb[0].mxu0
        %v2914 = vadd.f32 0.0, %v2913
        %v2915 = vpop.f32.mrb[0].mxu0
        %v2916 = vpop.f32.mrb[0].mxu0
        %v2917 = vadd.f32 0.0, %v2916
        %v2918 = vpop.f32.mrb[0].mxu0
        %2919 = vdwg.mxu0
        %v2920 = vadd.f32 %v2710, %v2794
        %v2921 = vadd.f32 %v2711, %v2797
        %v2922 = vadd.f32 %v2712, %v2802
        %v2923 = vadd.f32 %v2713, %v2805
        %v2924 = vadd.f32 %v2714, %v2810
        %v2925 = vadd.f32 %v2715, %v2813
        %v2926 = vadd.f32 %v2716, %v2818
        %v2927 = vadd.f32 %v2717, %v2821
        %v2928 = vadd.f32 %v2718, %v2826
        %v2929 = vadd.f32 %v2719, %v2829
        %v2930 = vadd.f32 %v2720, %v2834
        %v2931 = vadd.f32 %v2721, %v2837
        %v2932 = vadd.f32 %v2722, %v2842
        %v2933 = vadd.f32 %v2723, %v2845
        %v2934 = vadd.f32 %v2724, %v2850
        %v2935 = vadd.f32 %v2725, %v2853
        %v2936 = vadd.f32 %v2726, %v2858
        %v2937 = vadd.f32 %v2727, %v2861
        %v2938 = vadd.f32 %v2728, %v2866
        %v2939 = vadd.f32 %v2729, %v2869
        %v2940 = vadd.f32 %v2730, %v2874
        %v2941 = vadd.f32 %v2731, %v2877
        %v2942 = vadd.f32 %v2732, %v2882
        %v2943 = vadd.f32 %v2733, %v2885
        %v2944 = vadd.f32 %v2734, %v2890
        %v2945 = vadd.f32 %v2735, %v2893
        %v2946 = vadd.f32 %v2736, %v2898
        %v2947 = vadd.f32 %v2737, %v2901
        %v2948 = vadd.f32 %v2738, %v2906
        %v2949 = vadd.f32 %v2739, %v2909
        %v2950 = vadd.f32 %v2740, %v2914
        %v2951 = vadd.f32 %v2741, %v2917
        %v2952 = vld [vmem:[%s4] sm:$0x1]
        %v2954 = vlaneseq
        %v2955 = vshrl.u32 %v2954, 7
        %v2956 = vsub.s32 0, %v2955
        %v2957 = vrot.slane %v2952, %v2956
        %v2959 = vadd.f32 %v2920, %v2957
        %v2960 = vadd.f32 %v2921, %v2957
        %v2961 = vadd.f32 %v2922, %v2957
        %v2962 = vadd.f32 %v2923, %v2957
        %v2963 = vadd.f32 %v2924, %v2957
        %v2964 = vadd.f32 %v2925, %v2957
        %v2965 = vadd.f32 %v2926, %v2957
        %v2966 = vadd.f32 %v2927, %v2957
        %v2967 = vadd.f32 %v2928, %v2957
        %v2968 = vadd.f32 %v2929, %v2957
        %v2969 = vadd.f32 %v2930, %v2957
        %v2970 = vadd.f32 %v2931, %v2957
        %v2971 = vadd.f32 %v2932, %v2957
        %v2972 = vadd.f32 %v2933, %v2957
        %v2973 = vadd.f32 %v2934, %v2957
        %v2974 = vadd.f32 %v2935, %v2957
        %v2975 = vadd.f32 %v2936, %v2957
        %v2976 = vadd.f32 %v2937, %v2957
        %v2977 = vadd.f32 %v2938, %v2957
        %v2978 = vadd.f32 %v2939, %v2957
        %v2979 = vadd.f32 %v2940, %v2957
        %v2980 = vadd.f32 %v2941, %v2957
        %v2981 = vadd.f32 %v2942, %v2957
        %v2982 = vadd.f32 %v2943, %v2957
        %v2983 = vadd.f32 %v2944, %v2957
        %v2984 = vadd.f32 %v2945, %v2957
        %v2985 = vadd.f32 %v2946, %v2957
        %v2986 = vadd.f32 %v2947, %v2957
        %v2987 = vadd.f32 %v2948, %v2957
        %v2988 = vadd.f32 %v2949, %v2957
        %v2989 = vadd.f32 %v2950, %v2957
        %v2990 = vadd.f32 %v2951, %v2957
        %v2991 = vmax.f32 %v2959, 0.0
        %v2992 = vmax.f32 %v2960, 0.0
        %v2993 = vmax.f32 %v2961, 0.0
        %v2994 = vmax.f32 %v2962, 0.0
        %v2995 = vmax.f32 %v2963, 0.0
        %v2996 = vmax.f32 %v2964, 0.0
        %v2997 = vmax.f32 %v2965, 0.0
        %v2998 = vmax.f32 %v2966, 0.0
        %v2999 = vmax.f32 %v2967, 0.0
        %v3000 = vmax.f32 %v2968, 0.0
        %v3001 = vmax.f32 %v2969, 0.0
        %v3002 = vmax.f32 %v2970, 0.0
        %v3003 = vmax.f32 %v2971, 0.0
        %v3004 = vmax.f32 %v2972, 0.0
        %v3005 = vmax.f32 %v2973, 0.0
        %v3006 = vmax.f32 %v2974, 0.0
        %v3007 = vmax.f32 %v2975, 0.0
        %v3008 = vmax.f32 %v2976, 0.0
        %v3009 = vmax.f32 %v2977, 0.0
        %v3010 = vmax.f32 %v2978, 0.0
        %v3011 = vmax.f32 %v2979, 0.0
        %v3012 = vmax.f32 %v2980, 0.0
        %v3013 = vmax.f32 %v2981, 0.0
        %v3014 = vmax.f32 %v2982, 0.0
        %v3015 = vmax.f32 %v2983, 0.0
        %v3016 = vmax.f32 %v2984, 0.0
        %v3017 = vmax.f32 %v2985, 0.0
        %v3018 = vmax.f32 %v2986, 0.0
        %v3019 = vmax.f32 %v2987, 0.0
        %v3020 = vmax.f32 %v2988, 0.0
        %v3021 = vmax.f32 %v2989, 0.0
        %v3022 = vmax.f32 %v2990, 0.0
        %v3023 = vpack.c.bf16 %v2992, %v2991
        %v3024 = vpack.c.bf16 %v2994, %v2993
        %v3025 = vpack.c.bf16 %v2996, %v2995
        %v3026 = vpack.c.bf16 %v2998, %v2997
        %v3027 = vpack.c.bf16 %v3000, %v2999
        %v3028 = vpack.c.bf16 %v3002, %v3001
        %v3029 = vpack.c.bf16 %v3004, %v3003
        %v3030 = vpack.c.bf16 %v3006, %v3005
        %v3031 = vpack.c.bf16 %v3008, %v3007
        %v3032 = vpack.c.bf16 %v3010, %v3009
        %v3033 = vpack.c.bf16 %v3012, %v3011
        %v3034 = vpack.c.bf16 %v3014, %v3013
        %v3035 = vpack.c.bf16 %v3016, %v3015
        %v3036 = vpack.c.bf16 %v3018, %v3017
        %v3037 = vpack.c.bf16 %v3020, %v3019
        %v3038 = vpack.c.bf16 %v3022, %v3021
        %v3039 = vld [vmem:[%s5] sm:$0xf]
        %v3040 = vld [vmem:[%s5 + $0x4] sm:$0xf]
        %v3041 = vld [vmem:[%s5 + $0x8] sm:$0xf]
        %v3042 = vld [vmem:[%s5 + $0xc] sm:$0xf]
        %v3043 = vld [vmem:[%s6] sm:$0x1]
        %v3045 = vlaneseq
        %v3046 = vshrl.u32 %v3045, 7
        %v3047 = vsub.s32 0, %v3046
        %v3048 = vrot.slane %v3043, %v3047
        %v3054 = vunpack.c.l.b16 %v3039
        %v3055 = vunpack.c.l.b16 %v3040
        %v3056 = vunpack.c.l.b16 %v3041
        %v3057 = vunpack.c.l.b16 %v3042
        %v3058 = vpack.c.b16 %v3055, %v3054
        %v3059 = vpack.c.b16 %v3057, %v3056
        %v3063 = vsel %vm1000, %v3023, 0
        %v3066 = vsel %vm1000, %v3024, 0
        %v3069 = vsel %vm1000, %v3025, 0
        %v3072 = vsel %vm1000, %v3026, 0
        %v3075 = vsel %vm1000, %v3027, 0
        %v3078 = vsel %vm1000, %v3028, 0
        %v3081 = vsel %vm1000, %v3029, 0
        %v3084 = vsel %vm1000, %v3030, 0
        %v3087 = vsel %vm1000, %v3031, 0
        %v3090 = vsel %vm1000, %v3032, 0
        %v3093 = vsel %vm1000, %v3033, 0
        %v3096 = vsel %vm1000, %v3034, 0
        %v3099 = vsel %vm1000, %v3035, 0
        %v3102 = vsel %vm1000, %v3036, 0
        %v3105 = vsel %vm1000, %v3037, 0
        %v3108 = vsel %vm1000, %v3038, 0
        %3110 = vmatprep.subr.bf16.mxu0 0
        %3111 = vmatpush1.bf16.msra.mxu0 %v3058
        %3112 = vmatprep.subr.bf16.mxu0 0
        %3113 = vmatpush1.bf16.msra.mxu0 %v3059
        %3114 = vmatprep.subr.bf16.mxu0 0
        %3115 = vmatpush1.bf16.msra.mxu0 0
        %3116 = vmatprep.subr.bf16.mxu0 0
        %3117 = vmatpush1.bf16.msra.mxu0 0
        %3118 = vmatprep.subr.bf16.mxu0 0
        %3119 = vmatpush1.bf16.msra.mxu0 0
        %3120 = vmatprep.subr.bf16.mxu0 0
        %3121 = vmatpush1.bf16.msra.mxu0 0
        %3122 = vmatprep.subr.bf16.mxu0 0
        %3123 = vmatpush1.bf16.msra.mxu0 0
        %3124 = vmatprep.subr.bf16.mxu0 0
        %3125 = vmatpush1.bf16.msra.mxu0 0
        %3126 = vmatprep.subr.bf16.mxu0 0
        %3127 = vmatpush1.bf16.msra.mxu0 0
        %3128 = vmatprep.subr.bf16.mxu0 0
        %3129 = vmatpush1.bf16.msra.mxu0 0
        %3130 = vmatprep.subr.bf16.mxu0 0
        %3131 = vmatpush1.bf16.msra.mxu0 0
        %3132 = vmatprep.subr.bf16.mxu0 0
        %3133 = vmatpush1.bf16.msra.mxu0 0
        %3134 = vmatprep.subr.bf16.mxu0 0
        %3135 = vmatpush1.bf16.msra.mxu0 0
        %3136 = vmatprep.subr.bf16.mxu0 0
        %3137 = vmatpush1.bf16.msra.mxu0 0
        %3138 = vmatprep.subr.bf16.mxu0 0
        %3139 = vmatpush1.bf16.msra.mxu0 0
        %3140 = vmatprep.subr.bf16.mxu0 0
        %3141 = vmatpush1.bf16.msra.mxu0 0
        %3142 = vmatprep.mubr.bf16.mxu0 0
        %3143 = vmatmul.mubr.bf16.gmra.mrb[0].mxu0 %v3063
        %v3144 = vpop.f32.mrb[0].mxu0
        %v3145 = vadd.f32 %v3048, %v3144
        %v3146 = vpop.f32.mrb[0].mxu0
        %v3147 = vpop.f32.mrb[0].mxu0
        %v3148 = vadd.f32 %v3048, %v3147
        %v3149 = vpop.f32.mrb[0].mxu0
        %3150 = vmatprep.mubr.bf16.mxu0 0
        %3151 = vmatmul.mubr.bf16.gmra.mrb[0].mxu0 %v3066
        %v3152 = vpop.f32.mrb[0].mxu0
        %v3153 = vadd.f32 %v3048, %v3152
        %v3154 = vpop.f32.mrb[0].mxu0
        %v3155 = vpop.f32.mrb[0].mxu0
        %v3156 = vadd.f32 %v3048, %v3155
        %v3157 = vpop.f32.mrb[0].mxu0
        %3158 = vmatprep.mubr.bf16.mxu0 0
        %3159 = vmatmul.mubr.bf16.gmra.mrb[0].mxu0 %v3069
        %v3160 = vpop.f32.mrb[0].mxu0
        %v3161 = vadd.f32 %v3048, %v3160
        %v3162 = vpop.f32.mrb[0].mxu0
        %v3163 = vpop.f32.mrb[0].mxu0
        %v3164 = vadd.f32 %v3048, %v3163
        %v3165 = vpop.f32.mrb[0].mxu0
        %3166 = vmatprep.mubr.bf16.mxu0 0
        %3167 = vmatmul.mubr.bf16.gmra.mrb[0].mxu0 %v3072
        %v3168 = vpop.f32.mrb[0].mxu0
        %v3169 = vadd.f32 %v3048, %v3168
        %v3170 = vpop.f32.mrb[0].mxu0
        %v3171 = vpop.f32.mrb[0].mxu0
        %v3172 = vadd.f32 %v3048, %v3171
        %v3173 = vpop.f32.mrb[0].mxu0
        %3174 = vmatprep.mubr.bf16.mxu0 0
        %3175 = vmatmul.mubr.bf16.gmra.mrb[0].mxu0 %v3075
        %v3176 = vpop.f32.mrb[0].mxu0
        %v3177 = vadd.f32 %v3048, %v3176
        %v3178 = vpop.f32.mrb[0].mxu0
        %v3179 = vpop.f32.mrb[0].mxu0
        %v3180 = vadd.f32 %v3048, %v3179
        %v3181 = vpop.f32.mrb[0].mxu0
        %3182 = vmatprep.mubr.bf16.mxu0 0
        %3183 = vmatmul.mubr.bf16.gmra.mrb[0].mxu0 %v3078
        %v3184 = vpop.f32.mrb[0].mxu0
        %v3185 = vadd.f32 %v3048, %v3184
        %v3186 = vpop.f32.mrb[0].mxu0
        %v3187 = vpop.f32.mrb[0].mxu0
        %v3188 = vadd.f32 %v3048, %v3187
        %v3189 = vpop.f32.mrb[0].mxu0
        %3190 = vmatprep.mubr.bf16.mxu0 0
        %3191 = vmatmul.mubr.bf16.gmra.mrb[0].mxu0 %v3081
        %v3192 = vpop.f32.mrb[0].mxu0
        %v3193 = vadd.f32 %v3048, %v3192
        %v3194 = vpop.f32.mrb[0].mxu0
        %v3195 = vpop.f32.mrb[0].mxu0
        %v3196 = vadd.f32 %v3048, %v3195
        %v3197 = vpop.f32.mrb[0].mxu0
        %3198 = vmatprep.mubr.bf16.mxu0 0
        %3199 = vmatmul.mubr.bf16.gmra.mrb[0].mxu0 %v3084
        %v3200 = vpop.f32.mrb[0].mxu0
        %v3201 = vadd.f32 %v3048, %v3200
        %v3202 = vpop.f32.mrb[0].mxu0
        %v3203 = vpop.f32.mrb[0].mxu0
        %v3204 = vadd.f32 %v3048, %v3203
        %v3205 = vpop.f32.mrb[0].mxu0
        %3206 = vmatprep.mubr.bf16.mxu0 0
        %3207 = vmatmul.mubr.bf16.gmra.mrb[0].mxu0 %v3087
        %v3208 = vpop.f32.mrb[0].mxu0
        %v3209 = vadd.f32 %v3048, %v3208
        %v3210 = vpop.f32.mrb[0].mxu0
        %v3211 = vpop.f32.mrb[0].mxu0
        %v3212 = vadd.f32 %v3048, %v3211
        %v3213 = vpop.f32.mrb[0].mxu0
        %3214 = vmatprep.mubr.bf16.mxu0 0
        %3215 = vmatmul.mubr.bf16.gmra.mrb[0].mxu0 %v3090
        %v3216 = vpop.f32.mrb[0].mxu0
        %v3217 = vadd.f32 %v3048, %v3216
        %v3218 = vpop.f32.mrb[0].mxu0
        %v3219 = vpop.f32.mrb[0].mxu0
        %v3220 = vadd.f32 %v3048, %v3219
        %v3221 = vpop.f32.mrb[0].mxu0
        %3222 = vmatprep.mubr.bf16.mxu0 0
        %3223 = vmatmul.mubr.bf16.gmra.mrb[0].mxu0 %v3093
        %v3224 = vpop.f32.mrb[0].mxu0
        %v3225 = vadd.f32 %v3048, %v3224
        %v3226 = vpop.f32.mrb[0].mxu0
        %v3227 = vpop.f32.mrb[0].mxu0
        %v3228 = vadd.f32 %v3048, %v3227
        %v3229 = vpop.f32.mrb[0].mxu0
        %3230 = vmatprep.mubr.bf16.mxu0 0
        %3231 = vmatmul.mubr.bf16.gmra.mrb[0].mxu0 %v3096
        %v3232 = vpop.f32.mrb[0].mxu0
        %v3233 = vadd.f32 %v3048, %v3232
        %v3234 = vpop.f32.mrb[0].mxu0
        %v3235 = vpop.f32.mrb[0].mxu0
        %v3236 = vadd.f32 %v3048, %v3235
        %v3237 = vpop.f32.mrb[0].mxu0
        %3238 = vmatprep.mubr.bf16.mxu0 0
        %3239 = vmatmul.mubr.bf16.gmra.mrb[0].mxu0 %v3099
        %v3240 = vpop.f32.mrb[0].mxu0
        %v3241 = vadd.f32 %v3048, %v3240
        %v3242 = vpop.f32.mrb[0].mxu0
        %v3243 = vpop.f32.mrb[0].mxu0
        %v3244 = vadd.f32 %v3048, %v3243
        %v3245 = vpop.f32.mrb[0].mxu0
        %3246 = vmatprep.mubr.bf16.mxu0 0
        %3247 = vmatmul.mubr.bf16.gmra.mrb[0].mxu0 %v3102
        %v3248 = vpop.f32.mrb[0].mxu0
        %v3249 = vadd.f32 %v3048, %v3248
        %v3250 = vpop.f32.mrb[0].mxu0
        %v3251 = vpop.f32.mrb[0].mxu0
        %v3252 = vadd.f32 %v3048, %v3251
        %v3253 = vpop.f32.mrb[0].mxu0
        %3254 = vmatprep.mubr.bf16.mxu0 0
        %3255 = vmatmul.mubr.bf16.gmra.mrb[0].mxu0 %v3105
        %v3256 = vpop.f32.mrb[0].mxu0
        %v3257 = vadd.f32 %v3048, %v3256
        %v3258 = vpop.f32.mrb[0].mxu0
        %v3259 = vpop.f32.mrb[0].mxu0
        %v3260 = vadd.f32 %v3048, %v3259
        %v3261 = vpop.f32.mrb[0].mxu0
        %3262 = vmatprep.mubr.bf16.mxu0 0
        %3263 = vmatmul.mubr.bf16.gmra.mrb[0].mxu0 %v3108
        %v3264 = vpop.f32.mrb[0].mxu0
        %v3265 = vadd.f32 %v3048, %v3264
        %v3266 = vpop.f32.mrb[0].mxu0
        %v3267 = vpop.f32.mrb[0].mxu0
        %v3268 = vadd.f32 %v3048, %v3267
        %v3269 = vpop.f32.mrb[0].mxu0
        %3270 = vdwg.mxu0
        %v3271 = vunpack.c.l.bf16 %v313
        %v3272 = vunpack.c.l.bf16 %v314
        %v3273 = vunpack.c.l.bf16 %v315
        %v3274 = vunpack.c.l.bf16 %v316
        %v3275 = vunpack.c.l.bf16 %v317
        %v3276 = vunpack.c.l.bf16 %v318
        %v3277 = vunpack.c.l.bf16 %v319
        %v3278 = vunpack.c.l.bf16 %v320
        %v3279 = vunpack.c.l.bf16 %v321
        %v3280 = vunpack.c.l.bf16 %v322
        %v3281 = vunpack.c.l.bf16 %v323
        %v3282 = vunpack.c.l.bf16 %v324
        %v3283 = vunpack.c.l.bf16 %v325
        %v3284 = vunpack.c.l.bf16 %v326
        %v3285 = vunpack.c.l.bf16 %v327
        %v3286 = vunpack.c.l.bf16 %v328
        %v3287 = vunpack.c.l.bf16 %v329
        %v3288 = vunpack.c.l.bf16 %v330
        %v3289 = vunpack.c.l.bf16 %v331
        %v3290 = vunpack.c.l.bf16 %v332
        %v3291 = vunpack.c.l.bf16 %v333
        %v3292 = vunpack.c.l.bf16 %v334
        %v3293 = vunpack.c.l.bf16 %v335
        %v3294 = vunpack.c.l.bf16 %v336
        %v3295 = vunpack.c.l.bf16 %v337
        %v3296 = vunpack.c.l.bf16 %v338
        %v3297 = vunpack.c.l.bf16 %v339
        %v3298 = vunpack.c.l.bf16 %v340
        %v3299 = vunpack.c.l.bf16 %v341
        %v3300 = vunpack.c.l.bf16 %v342
        %v3301 = vunpack.c.l.bf16 %v343
        %v3302 = vunpack.c.l.bf16 %v344
        %v3303 = vadd.f32 %v3145, %v3271
        %v3304 = vadd.f32 %v3148, %v3272
        %v3305 = vadd.f32 %v3153, %v3273
        %v3306 = vadd.f32 %v3156, %v3274
        %v3307 = vadd.f32 %v3161, %v3275
        %v3308 = vadd.f32 %v3164, %v3276
        %v3309 = vadd.f32 %v3169, %v3277
        %v3310 = vadd.f32 %v3172, %v3278
        %v3311 = vadd.f32 %v3177, %v3279
        %v3312 = vadd.f32 %v3180, %v3280
        %v3313 = vadd.f32 %v3185, %v3281
        %v3314 = vadd.f32 %v3188, %v3282
        %v3315 = vadd.f32 %v3193, %v3283
        %v3316 = vadd.f32 %v3196, %v3284
        %v3317 = vadd.f32 %v3201, %v3285
        %v3318 = vadd.f32 %v3204, %v3286
        %v3319 = vadd.f32 %v3209, %v3287
        %v3320 = vadd.f32 %v3212, %v3288
        %v3321 = vadd.f32 %v3217, %v3289
        %v3322 = vadd.f32 %v3220, %v3290
        %v3323 = vadd.f32 %v3225, %v3291
        %v3324 = vadd.f32 %v3228, %v3292
        %v3325 = vadd.f32 %v3233, %v3293
        %v3326 = vadd.f32 %v3236, %v3294
        %v3327 = vadd.f32 %v3241, %v3295
        %v3328 = vadd.f32 %v3244, %v3296
        %v3329 = vadd.f32 %v3249, %v3297
        %v3330 = vadd.f32 %v3252, %v3298
        %v3331 = vadd.f32 %v3257, %v3299
        %v3332 = vadd.f32 %v3260, %v3300
        %v3333 = vadd.f32 %v3265, %v3301
        %v3334 = vadd.f32 %v3268, %v3302
        %v3335 = vmax.f32 %v3303, 0.0
        %v3336 = vmax.f32 %v3304, 0.0
        %v3337 = vmax.f32 %v3305, 0.0
        %v3338 = vmax.f32 %v3306, 0.0
        %v3339 = vmax.f32 %v3307, 0.0
        %v3340 = vmax.f32 %v3308, 0.0
        %v3341 = vmax.f32 %v3309, 0.0
        %v3342 = vmax.f32 %v3310, 0.0
        %v3343 = vmax.f32 %v3311, 0.0
        %v3344 = vmax.f32 %v3312, 0.0
        %v3345 = vmax.f32 %v3313, 0.0
        %v3346 = vmax.f32 %v3314, 0.0
        %v3347 = vmax.f32 %v3315, 0.0
        %v3348 = vmax.f32 %v3316, 0.0
        %v3349 = vmax.f32 %v3317, 0.0
        %v3350 = vmax.f32 %v3318, 0.0
        %v3351 = vmax.f32 %v3319, 0.0
        %v3352 = vmax.f32 %v3320, 0.0
        %v3353 = vmax.f32 %v3321, 0.0
        %v3354 = vmax.f32 %v3322, 0.0
        %v3355 = vmax.f32 %v3323, 0.0
        %v3356 = vmax.f32 %v3324, 0.0
        %v3357 = vmax.f32 %v3325, 0.0
        %v3358 = vmax.f32 %v3326, 0.0
        %v3359 = vmax.f32 %v3327, 0.0
        %v3360 = vmax.f32 %v3328, 0.0
        %v3361 = vmax.f32 %v3329, 0.0
        %v3362 = vmax.f32 %v3330, 0.0
        %v3363 = vmax.f32 %v3331, 0.0
        %v3364 = vmax.f32 %v3332, 0.0
        %v3365 = vmax.f32 %v3333, 0.0
        %v3366 = vmax.f32 %v3334, 0.0
        %v3367 = vpack.c.bf16 %v3336, %v3335
        %v3368 = vpack.c.bf16 %v3338, %v3337
        %v3369 = vpack.c.bf16 %v3340, %v3339
        %v3370 = vpack.c.bf16 %v3342, %v3341
        %v3371 = vpack.c.bf16 %v3344, %v3343
        %v3372 = vpack.c.bf16 %v3346, %v3345
        %v3373 = vpack.c.bf16 %v3348, %v3347
        %v3374 = vpack.c.bf16 %v3350, %v3349
        %v3375 = vpack.c.bf16 %v3352, %v3351
        %v3376 = vpack.c.bf16 %v3354, %v3353
        %v3377 = vpack.c.bf16 %v3356, %v3355
        %v3378 = vpack.c.bf16 %v3358, %v3357
        %v3379 = vpack.c.bf16 %v3360, %v3359
        %v3380 = vpack.c.bf16 %v3362, %v3361
        %v3381 = vpack.c.bf16 %v3364, %v3363
        %v3382 = vpack.c.bf16 %v3366, %v3365
        %v3399 = vunpack.c.l.b16 %v3367
        %v3400 = vunpack.c.h.b16 %v3367
        %v3401 = vunpack.c.l.b16 %v3368
        %v3402 = vunpack.c.h.b16 %v3368
        %v3403 = vunpack.c.l.b16 %v3369
        %v3404 = vunpack.c.h.b16 %v3369
        %v3405 = vunpack.c.l.b16 %v3370
        %v3406 = vunpack.c.h.b16 %v3370
        %v3407 = vunpack.c.l.b16 %v3371
        %v3408 = vunpack.c.h.b16 %v3371
        %v3409 = vunpack.c.l.b16 %v3372
        %v3410 = vunpack.c.h.b16 %v3372
        %v3411 = vunpack.c.l.b16 %v3373
        %v3412 = vunpack.c.h.b16 %v3373
        %v3413 = vunpack.c.l.b16 %v3374
        %v3414 = vunpack.c.h.b16 %v3374
        %v3415 = vunpack.c.l.b16 %v3375
        %v3416 = vunpack.c.h.b16 %v3375
        %v3417 = vunpack.c.l.b16 %v3376
        %v3418 = vunpack.c.h.b16 %v3376
        %v3419 = vunpack.c.l.b16 %v3377
        %v3420 = vunpack.c.h.b16 %v3377
        %v3421 = vunpack.c.l.b16 %v3378
        %v3422 = vunpack.c.h.b16 %v3378
        %v3423 = vunpack.c.l.b16 %v3379
        %v3424 = vunpack.c.h.b16 %v3379
        %v3425 = vunpack.c.l.b16 %v3380
        %v3426 = vunpack.c.h.b16 %v3380
        %v3427 = vunpack.c.l.b16 %v3381
        %v3428 = vunpack.c.h.b16 %v3381
        %v3429 = vunpack.c.l.b16 %v3382
        %v3430 = vunpack.c.h.b16 %v3382
        %v3431 = vpack.c.b16 %v3399, %v3399
        %v3432 = vpack.c.b16 %v3400, %v3400
        %v3433 = vpack.c.b16 %v3401, %v3401
        %v3434 = vpack.c.b16 %v3402, %v3402
        %v3435 = vpack.c.b16 %v3403, %v3403
        %v3436 = vpack.c.b16 %v3404, %v3404
        %v3437 = vpack.c.b16 %v3405, %v3405
        %v3438 = vpack.c.b16 %v3406, %v3406
        %v3439 = vpack.c.b16 %v3407, %v3407
        %v3440 = vpack.c.b16 %v3408, %v3408
        %v3441 = vpack.c.b16 %v3409, %v3409
        %v3442 = vpack.c.b16 %v3410, %v3410
        %v3443 = vpack.c.b16 %v3411, %v3411
        %v3444 = vpack.c.b16 %v3412, %v3412
        %v3445 = vpack.c.b16 %v3413, %v3413
        %v3446 = vpack.c.b16 %v3414, %v3414
        %v3447 = vpack.c.b16 %v3415, %v3415
        %v3448 = vpack.c.b16 %v3416, %v3416
        %v3449 = vpack.c.b16 %v3417, %v3417
        %v3450 = vpack.c.b16 %v3418, %v3418
        %v3451 = vpack.c.b16 %v3419, %v3419
        %v3452 = vpack.c.b16 %v3420, %v3420
        %v3453 = vpack.c.b16 %v3421, %v3421
        %v3454 = vpack.c.b16 %v3422, %v3422
        %v3455 = vpack.c.b16 %v3423, %v3423
        %v3456 = vpack.c.b16 %v3424, %v3424
        %v3457 = vpack.c.b16 %v3425, %v3425
        %v3458 = vpack.c.b16 %v3426, %v3426
        %v3459 = vpack.c.b16 %v3427, %v3427
        %v3460 = vpack.c.b16 %v3428, %v3428
        %v3461 = vpack.c.b16 %v3429, %v3429
        %v3462 = vpack.c.b16 %v3430, %v3430
        %3495 = vst [vmem:[%s311] sm:$0xf] %v3431
        %3496 = vst [vmem:[%s311 + $0x4] sm:$0xf] %v3432
        %3497 = vst [vmem:[%s311 + $0x8] sm:$0xf] %v3433
        %3498 = vst [vmem:[%s311 + $0xc] sm:$0xf] %v3434
        %3499 = vst [vmem:[%s311 + $0x10] sm:$0xf] %v3435
        %3500 = vst [vmem:[%s311 + $0x14] sm:$0xf] %v3436
        %3501 = vst [vmem:[%s311 + $0x18] sm:$0xf] %v3437
        %3502 = vst [vmem:[%s311 + $0x1c] sm:$0xf] %v3438
        %3503 = vst [vmem:[%s311 + $0x20] sm:$0xf] %v3439
        %3504 = vst [vmem:[%s311 + $0x24] sm:$0xf] %v3440
        %3505 = vst [vmem:[%s311 + $0x28] sm:$0xf] %v3441
        %3506 = vst [vmem:[%s311 + $0x2c] sm:$0xf] %v3442
        %3507 = vst [vmem:[%s311 + $0x30] sm:$0xf] %v3443
        %3508 = vst [vmem:[%s311 + $0x34] sm:$0xf] %v3444
        %3509 = vst [vmem:[%s311 + $0x38] sm:$0xf] %v3445
        %3510 = vst [vmem:[%s311 + $0x3c] sm:$0xf] %v3446
        %3511 = vst [vmem:[%s311 + $0x40] sm:$0xf] %v3447
        %3512 = vst [vmem:[%s311 + $0x44] sm:$0xf] %v3448
        %3513 = vst [vmem:[%s311 + $0x48] sm:$0xf] %v3449
        %3514 = vst [vmem:[%s311 + $0x4c] sm:$0xf] %v3450
        %3515 = vst [vmem:[%s311 + $0x50] sm:$0xf] %v3451
        %3516 = vst [vmem:[%s311 + $0x54] sm:$0xf] %v3452
        %3517 = vst [vmem:[%s311 + $0x58] sm:$0xf] %v3453
        %3518 = vst [vmem:[%s311 + $0x5c] sm:$0xf] %v3454
        %3519 = vst [vmem:[%s311 + $0x60] sm:$0xf] %v3455
        %3520 = vst [vmem:[%s311 + $0x64] sm:$0xf] %v3456
        %3521 = vst [vmem:[%s311 + $0x68] sm:$0xf] %v3457
        %3522 = vst [vmem:[%s311 + $0x6c] sm:$0xf] %v3458
        %3523 = vst [vmem:[%s311 + $0x70] sm:$0xf] %v3459
        %3524 = vst [vmem:[%s311 + $0x74] sm:$0xf] %v3460
        %3525 = vst [vmem:[%s311 + $0x78] sm:$0xf] %v3461
        %3526 = vst [vmem:[%s311 + $0x7c] sm:$0xf] %v3462
        %s3527 = sand.u32 %s185, 1
        %s3528 = scalar_lea.sflag [#allocation4], %s3527
        %s3529 = sand.u32 %s185, 1
        %s3530 = smul.addr %s3529, 128
        %s3531 = scalar_lea.vmem [#allocation7], %s3530
        // Predicated region
        $region57: #{tpu_custom_call.1} parent=47 // pred_check
          %p3532 = pneg %p195
        $region58: #{tpu_custom_call.1} parent=47 // pred_check_branch
          %3534 = sbr.rel (%p3532) target = $region60
        $region59: #{tpu_custom_call.1} parent=47 // pred_region
          %s3536 = ssub.s32 2048, 2048
          %3537 = vsyncadd %s3528, %s3536
          %s3538 = smul.addr %s25, 32
          %s3539 = smul.addr %s3538, 64
          %s3540 = scalar_lea.hbm %s7, %s3539
          %s3541 = sshll.u32 %s3531, 4
          %s3542 = int_to_ptr.vmem [resolvable:$true] %s3541
          %3547 = dma.vmem_to_hbm [thread:$0]  %s3542, 2048, %s3540, %s3528, 64, 64, 4
        $region60: #{tpu_custom_call.1} parent=47 // pred_fallthru
          _
      $region48: #{tpu_custom_call.1} parent=5 // pred_fallthru
        _
      %p3548 = scmp.le.s32.totalorder 2, %s20
      // Predicated region
      $region61: #{tpu_custom_call.1} parent=5 // pred_check
        %p3549 = pneg %p3548
      $region62: #{tpu_custom_call.1} parent=5 // pred_check_branch
        %3551 = sbr.rel (%p3549) target = $region64
      $region63: #{tpu_custom_call.1} parent=5 // pred_region
        %s3552 = ssub.s32 %s20, 2
        // Predicated region
        $region65: #{tpu_custom_call.1} parent=63 // pred_check
          %p3553 = pneg %p201
        $region66: #{tpu_custom_call.1} parent=63 // pred_check_branch
          %3555 = sbr.rel (%p3553) target = $region68
        $region67: #{tpu_custom_call.1} parent=63 // pred_region
          %s3556 = sand.u32 %s186, 1
          %s3557 = scalar_lea.sflag [#allocation4], %s3556
          %s3558 = sand.u32 %s186, 1
          %s3559 = smul.addr %s3558, 128
          %s3560 = scalar_lea.vmem [#allocation7], %s3559
          %3561 = dma.done %s3557, 2048
        $region68: #{tpu_custom_call.1} parent=63 // pred_fallthru
          _
      $region64: #{tpu_custom_call.1} parent=5 // pred_fallthru
        _
    $region6: #{tpu_custom_call.1} parent=1 // loop_footer
      %s24 = sadd.s32 1, %s20
    $region7: #{tpu_custom_call.1} parent=1 // loop_footer_branch
      %19 = sbr.rel target = $region3
    $region8: #{tpu_custom_call.1} parent=1 // loop_exit
      _
    %3562 = vsyncpa [#allocation3], 1
    %s3563 = scalar_lea.sflag [#allocation3], 1
    %3564 = vsyncpa %s3563, 1
    %3565 = vsyncpa [#allocation6], 1
    %3566 = vsyncpa [#allocation4], 1
    %s3567 = scalar_lea.sflag [#allocation4], 1
    %3568 = vsyncpa %s3567, 1

</llo_original>
